<compile_context>
chip_gen: v5e
topology: v5e:2x2
jax: 0.10.0
libtpu: 0.0.40
codegen_flags: <defaults>
</compile_context>

<pallas_src>
import functools

import jax
import jax.numpy as jnp
from jax.experimental import pallas as pl
from jax.experimental.pallas import tpu as pltpu

embeddingDim = 128
fBase = 32
maxSentLen = 32
vocabSize = 1590
BN_EPS = 1e-5


# ----------------------------------------------------------------------------
# Fused Pallas kernel:  out = [relu](x [+ pre_bias]) @ w [+ post_bias]
#   - pre_bias/ReLU implement the *previous* layer's (BN-folded) bias + ReLU,
#     deferred so it fuses with this layer's matmul (col2im sits in between).
#   - matmul in bf16 on the MXU, f32 accumulation, epilogue in f32.
# ----------------------------------------------------------------------------
def _fused_matmul_kernel(*refs, pre_relu, has_pre_bias, has_post_bias):
    it = iter(refs)
    x_ref = next(it)
    xb_ref = next(it) if has_pre_bias else None
    w_ref = next(it)
    ob_ref = next(it) if has_post_bias else None
    o_ref = next(it)

    x = x_ref[...].astype(jnp.float32)
    if has_pre_bias:
        x = x + xb_ref[...]
    if pre_relu:
        x = jnp.maximum(x, 0.0)
    acc = jnp.dot(x.astype(jnp.bfloat16), w_ref[...],
                  preferred_element_type=jnp.float32)
    if has_post_bias:
        acc = acc + ob_ref[...]
    o_ref[...] = acc.astype(o_ref.dtype)


def _pick_tiles(M, N, tm_cap=256, tn_cap=512):
    """Divisor-based tiles (no ragged remainder) honoring the (8,128) rule."""
    def pick(X, unit, cap):
        if X % unit != 0 or X <= unit:
            return X                      # must take the full (possibly small) extent
        best, t, lim = unit, unit, min(cap, X)
        while t <= lim:
            if X % t == 0:
                best = t
            t += unit
        return best

    tm = pick(M, 8, tm_cap)
    tn = pick(N, 128, tn_cap)
    # v7x: prefer >=2 grid steps so both TensorCores get work (no-op on v5e/v6e).
    if M // tm == 1 and N // tn == 1:
        if N % 256 == 0:
            tn = N // 2
        elif M % 16 == 0:
            tm = M // 2
    return tm, tn


def fused_matmul(x, w, *, pre_bias=None, post_bias=None, pre_relu=False,
                 tm_cap=256, tn_cap=512):
    """x: (M, K); w: (K, N) bf16; pre_bias: (K,) f32; post_bias: (N,) f32."""
    M, K = x.shape
    Kw, N = w.shape
    assert K == Kw, (K, Kw)
    tm, tn = _pick_tiles(M, N, tm_cap, tn_cap)

    args = [x]
    in_specs = [pl.BlockSpec((tm, K), lambda i, j: (i, 0))]
    if pre_bias is not None:
        args.append(pre_bias.reshape(1, K).astype(jnp.float32))
        in_specs.append(pl.BlockSpec((1, K), lambda i, j: (0, 0)))
    args.append(w)
    in_specs.append(pl.BlockSpec((K, tn), lambda i, j: (0, j)))
    if post_bias is not None:
        args.append(post_bias.reshape(1, N).astype(jnp.float32))
        in_specs.append(pl.BlockSpec((1, tn), lambda i, j: (0, j)))

    kern = functools.partial(
        _fused_matmul_kernel, pre_relu=pre_relu,
        has_pre_bias=pre_bias is not None, has_post_bias=post_bias is not None)

    return pl.pallas_call(
        kern,
        out_shape=jax.ShapeDtypeStruct((M, N), jnp.float32),
        grid=(M // tm, N // tn),
        in_specs=in_specs,
        out_specs=pl.BlockSpec((tm, tn), lambda i, j: (i, j)),
        compiler_params=pltpu.CompilerParams(
            dimension_semantics=("parallel", "parallel")),
    )(*args)


# ----------------------------------------------------------------------------
# col2im: scatter the per-tap contributions y into the transposed-conv output.
# Pure reshape / pad / add glue on output-sized tensors (no zero MACs, no
# jnp-scatter); y: (B*Hin*Win, KH*KW*C) -> (B, Hout, Wout, C) pre-activation.
# ----------------------------------------------------------------------------
def col2im(y, B, Hin, Win, C, KH, KW, sh, sw, ph, pw):
    Hout = (Hin - 1) * sh - 2 * ph + KH
    Wout = (Win - 1) * sw - 2 * pw + KW
    y = y.reshape(B, Hin, Win, KH, KW, C)
    if Hin == 1 and Win == 1 and ph == 0 and pw == 0:
        return y.reshape(B, KH, KW, C)                 # no overlap: pure reshape

    assert KH % sh == 0 and KW % sw == 0, (KH, KW, sh, sw)
    DH, DW = KH // sh, KW // sw                        # taps per output phase
    UH, UW = Hin + DH - 1, Win + DW - 1                # phase-buffer extents

    acc = jnp.zeros((B, UH, sh, UW, sw, C), jnp.float32)
    for dh in range(DH):
        for dw in range(DW):
            # kernel taps kh = sh*dh + rh, kw = sw*dw + rw
            t = y[:, :, :, dh * sh:(dh + 1) * sh, dw * sw:(dw + 1) * sw, :]
            t = jnp.transpose(t, (0, 1, 3, 2, 4, 5))   # (B, Hin, sh, Win, sw, C)
            t = jnp.pad(t, ((0, 0),
                            (dh, UH - Hin - dh), (0, 0),
                            (dw, UW - Win - dw), (0, 0),
                            (0, 0)))
            acc = acc + t
    out_big = acc.reshape(B, UH * sh, UW * sw, C)      # interleave phases
    return out_big[:, ph:ph + Hout, pw:pw + Wout, :]


# ----------------------------------------------------------------------------
# Module definition (mirrors the PyTorch Dec)
# ----------------------------------------------------------------------------
def layer_specs(latent_dim):
    # (Cin, Cout, kernel, stride, padding, has_batchnorm)
    return (
        (latent_dim, fBase * 16, (4, 4), (1, 1), (0, 0), True),
        (fBase * 16, fBase * 8, (1, 4), (1, 2), (0, 1), True),
        (fBase * 8, fBase * 4, (1, 4), (1, 2), (0, 1), True),
        (fBase * 4, fBase * 2, (4, 4), (2, 2), (1, 1), True),
        (fBase * 2, fBase, (4, 4), (2, 2), (1, 1), True),
        (fBase, 1, (4, 4), (2, 2), (1, 1), False),
    )


def init_raw_params(key, latent_dim):
    """Random parameters in the original PyTorch layouts."""
    raw = {"conv": []}
    for (cin, cout, (KH, KW), _, _, has_bn) in layer_specs(latent_dim):
        key, k1, k2, k3, k4, k5, k6 = jax.random.split(key, 7)
        layer = {
            "w": 0.05 * jax.random.normal(k1, (cin, cout, KH, KW), jnp.float32),
            "b": 0.05 * jax.random.normal(k2, (cout,), jnp.float32),
        }
        if has_bn:
            layer["gamma"] = 1.0 + 0.05 * jax.random.normal(k3, (cout,), jnp.float32)
            layer["beta"] = 0.05 * jax.random.normal(k4, (cout,), jnp.float32)
            layer["rmean"] = 0.05 * jax.random.normal(k5, (cout,), jnp.float32)
            layer["rvar"] = 1.0 + 0.1 * jax.random.uniform(k6, (cout,), jnp.float32)
        raw["conv"].append(layer)
    key, k1, k2 = jax.random.split(key, 3)
    raw["lin_w"] = 0.05 * jax.random.normal(k1, (vocabSize, embeddingDim), jnp.float32)
    raw["lin_b"] = 0.05 * jax.random.normal(k2, (vocabSize,), jnp.float32)
    return raw


def prepare_params(raw, latent_dim):
    """One-time weight prep: fold eval-mode BN into weights/bias, reshuffle
    into (K, N) matmul layout, cast weights to bf16, pad the vocab dim."""
    params = {"conv": []}
    for layer, (cin, cout, (KH, KW), _, _, has_bn) in zip(raw["conv"],
                                                          layer_specs(latent_dim)):
        if has_bn:
            scale = layer["gamma"] / jnp.sqrt(layer["rvar"] + BN_EPS)
            shift = layer["beta"] - layer["rmean"] * scale
        else:
            scale = jnp.ones((cout,), jnp.float32)
            shift = jnp.zeros((cout,), jnp.float32)
        # torch (Cin, Cout, KH, KW) -> (Cin, KH, KW, Cout)*scale -> (Cin, KH*KW*Cout)
        wmat = jnp.transpose(layer["w"], (0, 2, 3, 1)) * scale
        params["conv"].append({
            "wmat": wmat.reshape(cin, KH * KW * cout).astype(jnp.bfloat16),
            "bias": (layer["b"] * scale + shift).astype(jnp.float32),
        })

    n_pad = ((vocabSize + 127) // 128) * 128            # 1590 -> 1664 lanes
    lin_w = jnp.zeros((embeddingDim, n_pad), jnp.float32)
    lin_w = lin_w.at[:, :vocabSize].set(raw["lin_w"].T)
    params["lin_w"] = lin_w.astype(jnp.bfloat16)
    params["lin_b"] = jnp.zeros((n_pad,), jnp.float32).at[:vocabSize].set(raw["lin_b"])
    # ReLU(conv6 + b6) is applied in the vocab kernel's prologue; b6 is the
    # single (Cout=1) channel bias broadcast across the embedding lanes.
    params["lin_pre_bias"] = jnp.full((1, embeddingDim),
                                      params["conv"][-1]["bias"][0], jnp.float32)
    return params


def dec_forward(z, params, *, specs):
    """z: (..., latentDim) -> ((..., maxSentLen, vocabSize),)"""
    batch_dims = z.shape[:-1]
    latent_dim = z.shape[-1]

    x = z.reshape(-1, latent_dim).astype(jnp.float32)   # (B, latentDim): 1x1 spatial
    B = x.shape[0]

    pre_bias, pre_relu = None, False
    H = W = 1
    for layer, (_, cout, (KH, KW), (sh, sw), (ph, pw), _) in zip(params["conv"], specs):
        # fused:  [relu(x + prev_layer_bias)] @ Wmat     (Pallas / MXU, bf16)
        y = fused_matmul(x, layer["wmat"], pre_bias=pre_bias, pre_relu=pre_relu)
        # scatter the KH*KW tap contributions into the upsampled output (glue)
        a = col2im(y, B, H, W, cout, KH, KW, sh, sw, ph, pw)
        _, H, W, _ = a.shape
        x = a.reshape(-1, cout)
        pre_bias, pre_relu = layer["bias"], True         # deferred to next kernel

    assert (H, W) == (maxSentLen, embeddingDim), (H, W)
    emb = x.reshape(-1, embeddingDim)                    # (B*32, 128): lanes = width

    # vocab projection: relu(emb + b6) @ lin_w + lin_b, N padded to 1664 lanes
    logits = fused_matmul(emb, params["lin_w"],
                          pre_bias=params["lin_pre_bias"],
                          post_bias=params["lin_b"], pre_relu=True)
    logits = logits[:, :vocabSize]
    return (logits.reshape(*batch_dims, maxSentLen, vocabSize),)


# ----------------------------------------------------------------------------
if __name__ == "__main__":
    latentDim = 64
    batch = 2

    key = jax.random.PRNGKey(0)
    k_param, k_z = jax.random.split(key)
    raw = init_raw_params(k_param, latentDim)
    params = prepare_params(raw, latentDim)              # one-time, hoisted prep
    z = jax.random.normal(k_z, (batch, latentDim), jnp.float32)

    specs = layer_specs(latentDim)
    fwd = jax.jit(functools.partial(dec_forward, specs=specs))

    (out,) = fwd(z, params)
    out = jax.block_until_ready(out)

    assert out.shape == (batch, maxSentLen, vocabSize), out.shape
    assert bool(jnp.isfinite(out).all())
    print("KERNEL_OK")
</pallas_src>

<mosaic_0001>
module attributes {stable_mosaic.version = 11 : i64} {
  func.func @_fused_matmul_kernel(%arg0: i32, %arg1: i32, %arg2: memref<2x64xf32, #tpu.memory_space<vmem>>, %arg3: memref<64x512xbf16, #tpu.memory_space<vmem>>, %arg4: memref<2x512xf32, #tpu.memory_space<vmem>>) attributes {dimension_semantics = [#tpu.dimension_semantics<parallel>, #tpu.dimension_semantics<parallel>], iteration_bounds = array<i64: 1, 16>, scalar_prefetch = 0 : i64, scratch_operands = 0 : i64, tpu.core_type = #tpu.core_type<tc>, window_params = [{transform_indices = @transform_0, window_bounds = array<i64: 2, 64>}, {transform_indices = @transform_1, window_bounds = array<i64: 64, 512>}, {transform_indices = @transform_2, window_bounds = array<i64: 2, 512>}]} {
    %c0 = arith.constant 0 : index
    %c0_0 = arith.constant 0 : index
    %0 = vector.load %arg2[%c0, %c0_0] : memref<2x64xf32, #tpu.memory_space<vmem>>, vector<2x64xf32>
    %1 = arith.truncf %0 : vector<2x64xf32> to vector<2x64xbf16>
    %c0_1 = arith.constant 0 : index
    %c0_2 = arith.constant 0 : index
    %2 = vector.load %arg3[%c0_1, %c0_2] : memref<64x512xbf16, #tpu.memory_space<vmem>>, vector<64x512xbf16>
    %cst = arith.constant dense<0.000000e+00> : vector<2x512xf32>
    %3 = tpu.matmul %1, %2, %cst {dimension_numbers = #tpu.dot_dimension_numbers<[1], [0], [0], [1], [0, 0, 1, 1], [], []>} : vector<2x64xbf16>, vector<64x512xbf16>, vector<2x512xf32> -> vector<2x512xf32>
    %c0_3 = arith.constant 0 : index
    %c0_4 = arith.constant 0 : index
    %4 = vector.load %arg4[%c0_3, %c0_4] : memref<2x512xf32, #tpu.memory_space<vmem>>, vector<2x512xf32>
    tpu.vector_store %arg4[%c0_3, %c0_4], %3 {strides = array<i32>} : memref<2x512xf32, #tpu.memory_space<vmem>>, vector<2x512xf32>,
    return
  }
  func.func @transform_0(%arg0: i32, %arg1: i32) -> (i32, i32) {
    %c0_i32 = arith.constant 0 : i32
    %c0_i32_0 = arith.constant 0 : i32
    return %arg0, %c0_i32 : i32, i32
  }
  func.func @transform_1(%arg0: i32, %arg1: i32) -> (i32, i32) {
    %c0_i32 = arith.constant 0 : i32
    %c0_i32_0 = arith.constant 0 : i32
    return %c0_i32, %arg1 : i32, i32
  }
  func.func @transform_2(%arg0: i32, %arg1: i32) -> (i32, i32) {
    %c0_i32 = arith.constant 0 : i32
    return %arg0, %arg1 : i32, i32
  }
}

module attributes {stable_mosaic.version = 11 : i64} {
  func.func @_fused_matmul_kernel(%arg0: i32, %arg1: i32, %arg2: memref<32x512xf32, #tpu.memory_space<vmem>>, %arg3: memref<1x512xf32, #tpu.memory_space<vmem>>, %arg4: memref<512x512xbf16, #tpu.memory_space<vmem>>, %arg5: memref<32x512xf32, #tpu.memory_space<vmem>>) attributes {dimension_semantics = [#tpu.dimension_semantics<parallel>, #tpu.dimension_semantics<parallel>], iteration_bounds = array<i64: 1, 2>, scalar_prefetch = 0 : i64, scratch_operands = 0 : i64, tpu.core_type = #tpu.core_type<tc>, window_params = [{transform_indices = @transform_0, window_bounds = array<i64: 32, 512>}, {pipeline_mode = #tpu.pipeline_mode<synchronous>, transform_indices = @transform_1, window_bounds = array<i64: 1, 512>}, {transform_indices = @transform_2, window_bounds = array<i64: 512, 512>}, {transform_indices = @transform_3, window_bounds = array<i64: 32, 512>}]} {
    %c0 = arith.constant 0 : index
    %c0_0 = arith.constant 0 : index
    %0 = vector.load %arg2[%c0, %c0_0] : memref<32x512xf32, #tpu.memory_space<vmem>>, vector<32x512xf32>
    %c0_1 = arith.constant 0 : index
    %c0_2 = arith.constant 0 : index
    %1 = vector.load %arg3[%c0_1, %c0_2] : memref<1x512xf32, #tpu.memory_space<vmem>>, vector<1x512xf32>
    %2 = vector.broadcast %1 : vector<1x512xf32> to vector<32x512xf32>
    %3 = arith.addf %0, %2 : vector<32x512xf32>
    %cst = arith.constant 0.000000e+00 : f32
    %4 = vector.broadcast %cst : f32 to vector<32x512xf32>
    %5 = arith.maximumf %3, %4 : vector<32x512xf32>
    %6 = arith.truncf %5 : vector<32x512xf32> to vector<32x512xbf16>
    %c0_3 = arith.constant 0 : index
    %c0_4 = arith.constant 0 : index
    %7 = vector.load %arg4[%c0_3, %c0_4] : memref<512x512xbf16, #tpu.memory_space<vmem>>, vector<512x512xbf16>
    %cst_5 = arith.constant dense<0.000000e+00> : vector<32x512xf32>
    %8 = tpu.matmul %6, %7, %cst_5 {dimension_numbers = #tpu.dot_dimension_numbers<[1], [0], [0], [1], [0, 0, 1, 1], [], []>} : vector<32x512xbf16>, vector<512x512xbf16>, vector<32x512xf32> -> vector<32x512xf32>
    %c0_6 = arith.constant 0 : index
    %c0_7 = arith.constant 0 : index
    %9 = vector.load %arg5[%c0_6, %c0_7] : memref<32x512xf32, #tpu.memory_space<vmem>>, vector<32x512xf32>
    tpu.vector_store %arg5[%c0_6, %c0_7], %8 {strides = array<i32>} : memref<32x512xf32, #tpu.memory_space<vmem>>, vector<32x512xf32>,
    return
  }
  func.func @transform_0(%arg0: i32, %arg1: i32) -> (i32, i32) {
    %c0_i32 = arith.constant 0 : i32
    %c0_i32_0 = arith.constant 0 : i32
    return %arg0, %c0_i32 : i32, i32
  }
  func.func @transform_1(%arg0: i32, %arg1: i32) -> (i32, i32) {
    %c0_i32 = arith.constant 0 : i32
    %c0_i32_0 = arith.constant 0 : i32
    %c0_i32_1 = arith.constant 0 : i32
    return %c0_i32, %c0_i32_0 : i32, i32
  }
  func.func @transform_2(%arg0: i32, %arg1: i32) -> (i32, i32) {
    %c0_i32 = arith.constant 0 : i32
    %c0_i32_0 = arith.constant 0 : i32
    return %c0_i32, %arg1 : i32, i32
  }
  func.func @transform_3(%arg0: i32, %arg1: i32) -> (i32, i32) {
    %c0_i32 = arith.constant 0 : i32
    return %arg0, %arg1 : i32, i32
  }
}

module attributes {stable_mosaic.version = 11 : i64} {
  func.func @_fused_matmul_kernel(%arg0: i32, %arg1: i32, %arg2: memref<64x256xf32, #tpu.memory_space<vmem>>, %arg3: memref<1x256xf32, #tpu.memory_space<vmem>>, %arg4: memref<256x256xbf16, #tpu.memory_space<vmem>>, %arg5: memref<64x256xf32, #tpu.memory_space<vmem>>) attributes {dimension_semantics = [#tpu.dimension_semantics<parallel>, #tpu.dimension_semantics<parallel>], iteration_bounds = array<i64: 1, 2>, scalar_prefetch = 0 : i64, scratch_operands = 0 : i64, tpu.core_type = #tpu.core_type<tc>, window_params = [{transform_indices = @transform_0, window_bounds = array<i64: 64, 256>}, {pipeline_mode = #tpu.pipeline_mode<synchronous>, transform_indices = @transform_1, window_bounds = array<i64: 1, 256>}, {transform_indices = @transform_2, window_bounds = array<i64: 256, 256>}, {transform_indices = @transform_3, window_bounds = array<i64: 64, 256>}]} {
    %c0 = arith.constant 0 : index
    %c0_0 = arith.constant 0 : index
    %0 = vector.load %arg2[%c0, %c0_0] : memref<64x256xf32, #tpu.memory_space<vmem>>, vector<64x256xf32>
    %c0_1 = arith.constant 0 : index
    %c0_2 = arith.constant 0 : index
    %1 = vector.load %arg3[%c0_1, %c0_2] : memref<1x256xf32, #tpu.memory_space<vmem>>, vector<1x256xf32>
    %2 = vector.broadcast %1 : vector<1x256xf32> to vector<64x256xf32>
    %3 = arith.addf %0, %2 : vector<64x256xf32>
    %cst = arith.constant 0.000000e+00 : f32
    %4 = vector.broadcast %cst : f32 to vector<64x256xf32>
    %5 = arith.maximumf %3, %4 : vector<64x256xf32>
    %6 = arith.truncf %5 : vector<64x256xf32> to vector<64x256xbf16>
    %c0_3 = arith.constant 0 : index
    %c0_4 = arith.constant 0 : index
    %7 = vector.load %arg4[%c0_3, %c0_4] : memref<256x256xbf16, #tpu.memory_space<vmem>>, vector<256x256xbf16>
    %cst_5 = arith.constant dense<0.000000e+00> : vector<64x256xf32>
    %8 = tpu.matmul %6, %7, %cst_5 {dimension_numbers = #tpu.dot_dimension_numbers<[1], [0], [0], [1], [0, 0, 1, 1], [], []>} : vector<64x256xbf16>, vector<256x256xbf16>, vector<64x256xf32> -> vector<64x256xf32>
    %c0_6 = arith.constant 0 : index
    %c0_7 = arith.constant 0 : index
    %9 = vector.load %arg5[%c0_6, %c0_7] : memref<64x256xf32, #tpu.memory_space<vmem>>, vector<64x256xf32>
    tpu.vector_store %arg5[%c0_6, %c0_7], %8 {strides = array<i32>} : memref<64x256xf32, #tpu.memory_space<vmem>>, vector<64x256xf32>,
    return
  }
  func.func @transform_0(%arg0: i32, %arg1: i32) -> (i32, i32) {
    %c0_i32 = arith.constant 0 : i32
    %c0_i32_0 = arith.constant 0 : i32
    return %arg0, %c0_i32 : i32, i32
  }
  func.func @transform_1(%arg0: i32, %arg1: i32) -> (i32, i32) {
    %c0_i32 = arith.constant 0 : i32
    %c0_i32_0 = arith.constant 0 : i32
    %c0_i32_1 = arith.constant 0 : i32
    return %c0_i32, %c0_i32_0 : i32, i32
  }
  func.func @transform_2(%arg0: i32, %arg1: i32) -> (i32, i32) {
    %c0_i32 = arith.constant 0 : i32
    %c0_i32_0 = arith.constant 0 : i32
    return %c0_i32, %arg1 : i32, i32
  }
  func.func @transform_3(%arg0: i32, %arg1: i32) -> (i32, i32) {
    %c0_i32 = arith.constant 0 : i32
    return %arg0, %arg1 : i32, i32
  }
}

module attributes {stable_mosaic.version = 11 : i64} {
  func.func @_fused_matmul_kernel(%arg0: i32, %arg1: i32, %arg2: memref<128x128xf32, #tpu.memory_space<vmem>>, %arg3: memref<1x128xf32, #tpu.memory_space<vmem>>, %arg4: memref<128x512xbf16, #tpu.memory_space<vmem>>, %arg5: memref<128x512xf32, #tpu.memory_space<vmem>>) attributes {dimension_semantics = [#tpu.dimension_semantics<parallel>, #tpu.dimension_semantics<parallel>], iteration_bounds = array<i64: 1, 2>, scalar_prefetch = 0 : i64, scratch_operands = 0 : i64, tpu.core_type = #tpu.core_type<tc>, window_params = [{transform_indices = @transform_0, window_bounds = array<i64: 128, 128>}, {pipeline_mode = #tpu.pipeline_mode<synchronous>, transform_indices = @transform_1, window_bounds = array<i64: 1, 128>}, {transform_indices = @transform_2, window_bounds = array<i64: 128, 512>}, {transform_indices = @transform_3, window_bounds = array<i64: 128, 512>}]} {
    %c0 = arith.constant 0 : index
    %c0_0 = arith.constant 0 : index
    %0 = vector.load %arg2[%c0, %c0_0] : memref<128x128xf32, #tpu.memory_space<vmem>>, vector<128x128xf32>
    %c0_1 = arith.constant 0 : index
    %c0_2 = arith.constant 0 : index
    %1 = vector.load %arg3[%c0_1, %c0_2] : memref<1x128xf32, #tpu.memory_space<vmem>>, vector<1x128xf32>
    %2 = vector.broadcast %1 : vector<1x128xf32> to vector<128x128xf32>
    %3 = arith.addf %0, %2 : vector<128x128xf32>
    %cst = arith.constant 0.000000e+00 : f32
    %4 = vector.broadcast %cst : f32 to vector<128x128xf32>
    %5 = arith.maximumf %3, %4 : vector<128x128xf32>
    %6 = arith.truncf %5 : vector<128x128xf32> to vector<128x128xbf16>
    %c0_3 = arith.constant 0 : index
    %c0_4 = arith.constant 0 : index
    %7 = vector.load %arg4[%c0_3, %c0_4] : memref<128x512xbf16, #tpu.memory_space<vmem>>, vector<128x512xbf16>
    %cst_5 = arith.constant dense<0.000000e+00> : vector<128x512xf32>
    %8 = tpu.matmul %6, %7, %cst_5 {dimension_numbers = #tpu.dot_dimension_numbers<[1], [0], [0], [1], [0, 0, 1, 1], [], []>} : vector<128x128xbf16>, vector<128x512xbf16>, vector<128x512xf32> -> vector<128x512xf32>
    %c0_6 = arith.constant 0 : index
    %c0_7 = arith.constant 0 : index
    %9 = vector.load %arg5[%c0_6, %c0_7] : memref<128x512xf32, #tpu.memory_space<vmem>>, vector<128x512xf32>
    tpu.vector_store %arg5[%c0_6, %c0_7], %8 {strides = array<i32>} : memref<128x512xf32, #tpu.memory_space<vmem>>, vector<128x512xf32>,
    return
  }
  func.func @transform_0(%arg0: i32, %arg1: i32) -> (i32, i32) {
    %c0_i32 = arith.constant 0 : i32
    %c0_i32_0 = arith.constant 0 : i32
    return %arg0, %c0_i32 : i32, i32
  }
  func.func @transform_1(%arg0: i32, %arg1: i32) -> (i32, i32) {
    %c0_i32 = arith.constant 0 : i32
    %c0_i32_0 = arith.constant 0 : i32
    %c0_i32_1 = arith.constant 0 : i32
    return %c0_i32, %c0_i32_0 : i32, i32
  }
  func.func @transform_2(%arg0: i32, %arg1: i32) -> (i32, i32) {
    %c0_i32 = arith.constant 0 : i32
    %c0_i32_0 = arith.constant 0 : i32
    return %c0_i32, %arg1 : i32, i32
  }
  func.func @transform_3(%arg0: i32, %arg1: i32) -> (i32, i32) {
    %c0_i32 = arith.constant 0 : i32
    return %arg0, %arg1 : i32, i32
  }
}

module attributes {stable_mosaic.version = 11 : i64} {
  func.func @_fused_matmul_kernel(%arg0: i32, %arg1: i32, %arg2: memref<256x64xf32, #tpu.memory_space<vmem>>, %arg3: memref<1x64xf32, #tpu.memory_space<vmem>>, %arg4: memref<64x512xbf16, #tpu.memory_space<vmem>>, %arg5: memref<256x512xf32, #tpu.memory_space<vmem>>) attributes {dimension_semantics = [#tpu.dimension_semantics<parallel>, #tpu.dimension_semantics<parallel>], iteration_bounds = array<i64: 2, 1>, scalar_prefetch = 0 : i64, scratch_operands = 0 : i64, tpu.core_type = #tpu.core_type<tc>, window_params = [{transform_indices = @transform_0, window_bounds = array<i64: 256, 64>}, {pipeline_mode = #tpu.pipeline_mode<synchronous>, transform_indices = @transform_1, window_bounds = array<i64: 1, 64>}, {transform_indices = @transform_2, window_bounds = array<i64: 64, 512>}, {transform_indices = @transform_3, window_bounds = array<i64: 256, 512>}]} {
    %c0 = arith.constant 0 : index
    %c0_0 = arith.constant 0 : index
    %0 = vector.load %arg2[%c0, %c0_0] : memref<256x64xf32, #tpu.memory_space<vmem>>, vector<256x64xf32>
    %c0_1 = arith.constant 0 : index
    %c0_2 = arith.constant 0 : index
    %1 = vector.load %arg3[%c0_1, %c0_2] : memref<1x64xf32, #tpu.memory_space<vmem>>, vector<1x64xf32>
    %2 = vector.broadcast %1 : vector<1x64xf32> to vector<256x64xf32>
    %3 = arith.addf %0, %2 : vector<256x64xf32>
    %cst = arith.constant 0.000000e+00 : f32
    %4 = vector.broadcast %cst : f32 to vector<256x64xf32>
    %5 = arith.maximumf %3, %4 : vector<256x64xf32>
    %6 = arith.truncf %5 : vector<256x64xf32> to vector<256x64xbf16>
    %c0_3 = arith.constant 0 : index
    %c0_4 = arith.constant 0 : index
    %7 = vector.load %arg4[%c0_3, %c0_4] : memref<64x512xbf16, #tpu.memory_space<vmem>>, vector<64x512xbf16>
    %cst_5 = arith.constant dense<0.000000e+00> : vector<256x512xf32>
    %8 = tpu.matmul %6, %7, %cst_5 {dimension_numbers = #tpu.dot_dimension_numbers<[1], [0], [0], [1], [0, 0, 1, 1], [], []>} : vector<256x64xbf16>, vector<64x512xbf16>, vector<256x512xf32> -> vector<256x512xf32>
    %c0_6 = arith.constant 0 : index
    %c0_7 = arith.constant 0 : index
    %9 = vector.load %arg5[%c0_6, %c0_7] : memref<256x512xf32, #tpu.memory_space<vmem>>, vector<256x512xf32>
    tpu.vector_store %arg5[%c0_6, %c0_7], %8 {strides = array<i32>} : memref<256x512xf32, #tpu.memory_space<vmem>>, vector<256x512xf32>,
    return
  }
  func.func @transform_0(%arg0: i32, %arg1: i32) -> (i32, i32) {
    %c0_i32 = arith.constant 0 : i32
    %c0_i32_0 = arith.constant 0 : i32
    return %arg0, %c0_i32 : i32, i32
  }
  func.func @transform_1(%arg0: i32, %arg1: i32) -> (i32, i32) {
    %c0_i32 = arith.constant 0 : i32
    %c0_i32_0 = arith.constant 0 : i32
    %c0_i32_1 = arith.constant 0 : i32
    return %c0_i32, %c0_i32_0 : i32, i32
  }
  func.func @transform_2(%arg0: i32, %arg1: i32) -> (i32, i32) {
    %c0_i32 = arith.constant 0 : i32
    %c0_i32_0 = arith.constant 0 : i32
    return %c0_i32, %arg1 : i32, i32
  }
  func.func @transform_3(%arg0: i32, %arg1: i32) -> (i32, i32) {
    %c0_i32 = arith.constant 0 : i32
    return %arg0, %arg1 : i32, i32
  }
}

module attributes {stable_mosaic.version = 11 : i64} {
  func.func @_fused_matmul_kernel(%arg0: i32, %arg1: i32, %arg2: memref<256x32xf32, #tpu.memory_space<vmem>>, %arg3: memref<1x32xf32, #tpu.memory_space<vmem>>, %arg4: memref<32x16xbf16, #tpu.memory_space<vmem>>, %arg5: memref<256x16xf32, #tpu.memory_space<vmem>>) attributes {dimension_semantics = [#tpu.dimension_semantics<parallel>, #tpu.dimension_semantics<parallel>], iteration_bounds = array<i64: 8, 1>, scalar_prefetch = 0 : i64, scratch_operands = 0 : i64, tpu.core_type = #tpu.core_type<tc>, window_params = [{transform_indices = @transform_0, window_bounds = array<i64: 256, 32>}, {pipeline_mode = #tpu.pipeline_mode<synchronous>, transform_indices = @transform_1, window_bounds = array<i64: 1, 32>}, {transform_indices = @transform_2, window_bounds = array<i64: 32, 16>}, {transform_indices = @transform_3, window_bounds = array<i64: 256, 16>}]} {
    %c0 = arith.constant 0 : index
    %c0_0 = arith.constant 0 : index
    %0 = vector.load %arg2[%c0, %c0_0] : memref<256x32xf32, #tpu.memory_space<vmem>>, vector<256x32xf32>
    %c0_1 = arith.constant 0 : index
    %c0_2 = arith.constant 0 : index
    %1 = vector.load %arg3[%c0_1, %c0_2] : memref<1x32xf32, #tpu.memory_space<vmem>>, vector<1x32xf32>
    %2 = vector.broadcast %1 : vector<1x32xf32> to vector<256x32xf32>
    %3 = arith.addf %0, %2 : vector<256x32xf32>
    %cst = arith.constant 0.000000e+00 : f32
    %4 = vector.broadcast %cst : f32 to vector<256x32xf32>
    %5 = arith.maximumf %3, %4 : vector<256x32xf32>
    %6 = arith.truncf %5 : vector<256x32xf32> to vector<256x32xbf16>
    %c0_3 = arith.constant 0 : index
    %c0_4 = arith.constant 0 : index
    %7 = vector.load %arg4[%c0_3, %c0_4] : memref<32x16xbf16, #tpu.memory_space<vmem>>, vector<32x16xbf16>
    %cst_5 = arith.constant dense<0.000000e+00> : vector<256x16xf32>
    %8 = tpu.matmul %6, %7, %cst_5 {dimension_numbers = #tpu.dot_dimension_numbers<[1], [0], [0], [1], [0, 0, 1, 1], [], []>} : vector<256x32xbf16>, vector<32x16xbf16>, vector<256x16xf32> -> vector<256x16xf32>
    %c0_6 = arith.constant 0 : index
    %c0_7 = arith.constant 0 : index
    %9 = vector.load %arg5[%c0_6, %c0_7] : memref<256x16xf32, #tpu.memory_space<vmem>>, vector<256x16xf32>
    tpu.vector_store %arg5[%c0_6, %c0_7], %8 {strides = array<i32>} : memref<256x16xf32, #tpu.memory_space<vmem>>, vector<256x16xf32>,
    return
  }
  func.func @transform_0(%arg0: i32, %arg1: i32) -> (i32, i32) {
    %c0_i32 = arith.constant 0 : i32
    %c0_i32_0 = arith.constant 0 : i32
    return %arg0, %c0_i32 : i32, i32
  }
  func.func @transform_1(%arg0: i32, %arg1: i32) -> (i32, i32) {
    %c0_i32 = arith.constant 0 : i32
    %c0_i32_0 = arith.constant 0 : i32
    %c0_i32_1 = arith.constant 0 : i32
    return %c0_i32, %c0_i32_0 : i32, i32
  }
  func.func @transform_2(%arg0: i32, %arg1: i32) -> (i32, i32) {
    %c0_i32 = arith.constant 0 : i32
    %c0_i32_0 = arith.constant 0 : i32
    return %c0_i32, %arg1 : i32, i32
  }
  func.func @transform_3(%arg0: i32, %arg1: i32) -> (i32, i32) {
    %c0_i32 = arith.constant 0 : i32
    return %arg0, %arg1 : i32, i32
  }
}

module attributes {stable_mosaic.version = 11 : i64} {
  func.func @_fused_matmul_kernel(%arg0: i32, %arg1: i32, %arg2: memref<64x128xf32, #tpu.memory_space<vmem>>, %arg3: memref<1x128xf32, #tpu.memory_space<vmem>>, %arg4: memref<128x128xbf16, #tpu.memory_space<vmem>>, %arg5: memref<1x128xf32, #tpu.memory_space<vmem>>, %arg6: memref<64x128xf32, #tpu.memory_space<vmem>>) attributes {dimension_semantics = [#tpu.dimension_semantics<parallel>, #tpu.dimension_semantics<parallel>], iteration_bounds = array<i64: 1, 13>, scalar_prefetch = 0 : i64, scratch_operands = 0 : i64, tpu.core_type = #tpu.core_type<tc>, window_params = [{transform_indices = @transform_0, window_bounds = array<i64: 64, 128>}, {pipeline_mode = #tpu.pipeline_mode<synchronous>, transform_indices = @transform_1, window_bounds = array<i64: 1, 128>}, {transform_indices = @transform_2, window_bounds = array<i64: 128, 128>}, {transform_indices = @transform_3, window_bounds = array<i64: 1, 128>}, {transform_indices = @transform_4, window_bounds = array<i64: 64, 128>}]} {
    %c0 = arith.constant 0 : index
    %c0_0 = arith.constant 0 : index
    %0 = vector.load %arg2[%c0, %c0_0] : memref<64x128xf32, #tpu.memory_space<vmem>>, vector<64x128xf32>
    %c0_1 = arith.constant 0 : index
    %c0_2 = arith.constant 0 : index
    %1 = vector.load %arg3[%c0_1, %c0_2] : memref<1x128xf32, #tpu.memory_space<vmem>>, vector<1x128xf32>
    %2 = vector.broadcast %1 : vector<1x128xf32> to vector<64x128xf32>
    %3 = arith.addf %0, %2 : vector<64x128xf32>
    %cst = arith.constant 0.000000e+00 : f32
    %4 = vector.broadcast %cst : f32 to vector<64x128xf32>
    %5 = arith.maximumf %3, %4 : vector<64x128xf32>
    %6 = arith.truncf %5 : vector<64x128xf32> to vector<64x128xbf16>
    %c0_3 = arith.constant 0 : index
    %c0_4 = arith.constant 0 : index
    %7 = vector.load %arg4[%c0_3, %c0_4] : memref<128x128xbf16, #tpu.memory_space<vmem>>, vector<128x128xbf16>
    %cst_5 = arith.constant dense<0.000000e+00> : vector<64x128xf32>
    %8 = tpu.matmul %6, %7, %cst_5 {dimension_numbers = #tpu.dot_dimension_numbers<[1], [0], [0], [1], [0, 0, 1, 1], [], []>} : vector<64x128xbf16>, vector<128x128xbf16>, vector<64x128xf32> -> vector<64x128xf32>
    %c0_6 = arith.constant 0 : index
    %c0_7 = arith.constant 0 : index
    %9 = vector.load %arg5[%c0_6, %c0_7] : memref<1x128xf32, #tpu.memory_space<vmem>>, vector<1x128xf32>
    %10 = vector.broadcast %9 : vector<1x128xf32> to vector<64x128xf32>
    %11 = arith.addf %8, %10 : vector<64x128xf32>
    %c0_8 = arith.constant 0 : index
    %c0_9 = arith.constant 0 : index
    %12 = vector.load %arg6[%c0_8, %c0_9] : memref<64x128xf32, #tpu.memory_space<vmem>>, vector<64x128xf32>
    tpu.vector_store %arg6[%c0_8, %c0_9], %11 {strides = array<i32>} : memref<64x128xf32, #tpu.memory_space<vmem>>, vector<64x128xf32>,
    return
  }
  func.func @transform_0(%arg0: i32, %arg1: i32) -> (i32, i32) {
    %c0_i32 = arith.constant 0 : i32
    %c0_i32_0 = arith.constant 0 : i32
    return %arg0, %c0_i32 : i32, i32
  }
  func.func @transform_1(%arg0: i32, %arg1: i32) -> (i32, i32) {
    %c0_i32 = arith.constant 0 : i32
    %c0_i32_0 = arith.constant 0 : i32
    %c0_i32_1 = arith.constant 0 : i32
    return %c0_i32, %c0_i32_0 : i32, i32
  }
  func.func @transform_2(%arg0: i32, %arg1: i32) -> (i32, i32) {
    %c0_i32 = arith.constant 0 : i32
    %c0_i32_0 = arith.constant 0 : i32
    return %c0_i32, %arg1 : i32, i32
  }
  func.func @transform_3(%arg0: i32, %arg1: i32) -> (i32, i32) {
    %c0_i32 = arith.constant 0 : i32
    %c0_i32_0 = arith.constant 0 : i32
    return %c0_i32, %arg1 : i32, i32
  }
  func.func @transform_4(%arg0: i32, %arg1: i32) -> (i32, i32) {
    %c0_i32 = arith.constant 0 : i32
    return %arg0, %arg1 : i32, i32
  }
}

</mosaic_0001>

<llo_original>
// kernel: dec_forward.7
$region0: #{dec_forward.7}
  #allocation0 [shape = 'u32[]', space=smem, size = 0x4, offset = 0x4, fixed_abs, tag = 'smem constant byte address 0x4 - core index']
  #allocation1 [shape = 'u32[72,128]{1,0:T(1,128)}', space=vmem, size = 0x9000, scoped, tag = 'internal scratch']
  %s0 = inlined_call_operand.hbm [shape: f32[2,64], index: 0, kind: input, shape index: {}]
  %s1 = inlined_call_operand.hbm [shape: bf16[64,8192], index: 1, kind: input, shape index: {}]
  %s2 = inlined_call_operand.vmem [shape: f32[2,8192], index: 2, kind: output, shape index: {}]
  %s3 = sld [smem:[#allocation0]]
  $region49: #{dec_forward.7} parent=0
    _
  %s5 = ssub.s32 1, %s3
  %s6 = scalar_select 0, %s5, %s3
  $region1: #{dec_forward.7} parent=0
    #allocation2 [shape = 'u8[1024]{0}', space=vmem, size = 0x400, scoped, tag = 'input window, operand 0, single buffered']
    #allocation3 [shape = 's32[2]{0}', space=sflag, size = 0x8, scoped, tag = 'scoped memory for dec_forward.7']
    #allocation4 [shape = 'u8[131072]{0}', space=vmem, size = 0x20000, scoped, tag = 'input window, operand 1']
    #allocation5 [shape = 's32[2]{0}', space=sflag, size = 0x8, scoped, tag = 'scoped memory for dec_forward.7']
    %7 = vsyncpa [#allocation3], 0
    %8 = vsyncpa [#allocation5], 0
    %s9 = scalar_lea.sflag [#allocation5], 1
    %10 = vsyncpa %s9, 0
    loop: start=0, step=1, limit=18
    $region2: #{dec_forward.7} parent=1 // loop_pre_header
      _
    $region3: #{dec_forward.7} parent=1 // loop_header
      %s12 = sphi 0, %s16
      %p13 = scmp.ge.s32.totalorder %s12, 18
      %s19 = sphi 0, %s31
      %s20 = sphi 0, %s27
      %s21 = sphi 0, %s19
      %s22 = sphi 0, %s20
      %s23 = sphi 0, %s21
      %s24 = sphi 0, %s22
      %s34 = sphi 0, %s36
      %s37 = sphi 0, %s34
      %s38 = sphi 0, %s37
      %s54 = sphi 0, %s38
      %s60 = sphi 0, %s62
      %s63 = sphi 0, %s60
      %s64 = sphi 0, %s63
      %s80 = sphi 0, %s64
      %s88 = sphi 0, %s90
      %s91 = sphi 0, %s88
      %s92 = sphi 0, %s91
      %s108 = sphi 0, %s92
    $region4: #{dec_forward.7} parent=1 // loop_header_branch
      %15 = sbr.rel (%p13) target = $region8
    $region5: #{dec_forward.7} parent=1 // loop_body
      %s17 = ssub.s32 %s12, 1
      %s18 = ssub.s32 %s12, 2
      %s25 = sadd.s32 1, %s20
      %p26 = scmp.ge.s32.totalorder %s25, 16
      %s27 = scalar_select %p26, 0, %s25
      %s28 = sadd.s32 1, %s19
      %s29 = scalar_select %p26, %s28, %s19
      %p30 = scmp.ge.s32.totalorder %s29, 1
      %s31 = scalar_select %p30, 0, %s29
      %s32 = ssub.s32 %s19, %s31
      %p33 = scmp.eq.s32.totalorder %s32, 0
      %s35 = sadd.s32 %s34, 1
      %s36 = scalar_select %p33, %s34, %s35
      %p39 = pneg %p33
      %p40 = scmp.eq.s32.totalorder %s12, 15
      %p41 = por %p39, %p40
      %p42 = scmp.ne.s32.totalorder %s34, %s37
      %p43 = scmp.eq.s32.totalorder %s12, 0
      %p44 = por %p42, %p43
      %p45 = scmp.ne.s32.totalorder %s34, %s37
      %p46 = scmp.eq.s32.totalorder %s17, 15
      %p47 = por %p45, %p46
      %p48 = scmp.ne.s32.totalorder %s37, %s38
      %p49 = scmp.eq.s32.totalorder %s17, 0
      %p50 = por %p48, %p49
      %p51 = scmp.ne.s32.totalorder %s37, %s38
      %p52 = scmp.eq.s32.totalorder %s18, 15
      %p53 = por %p51, %p52
      %p55 = scmp.ne.s32.totalorder %s38, %s54
      %p56 = scmp.eq.s32.totalorder %s18, 0
      %p57 = por %p55, %p56
      %s58 = ssub.s32 %s20, %s27
      %p59 = scmp.eq.s32.totalorder %s58, 0
      %s61 = sadd.s32 %s60, 1
      %s62 = scalar_select %p59, %s60, %s61
      %p65 = pneg %p59
      %p66 = scmp.eq.s32.totalorder %s12, 15
      %p67 = por %p65, %p66
      %p68 = scmp.ne.s32.totalorder %s60, %s63
      %p69 = scmp.eq.s32.totalorder %s12, 0
      %p70 = por %p68, %p69
      %p71 = scmp.ne.s32.totalorder %s60, %s63
      %p72 = scmp.eq.s32.totalorder %s17, 15
      %p73 = por %p71, %p72
      %p74 = scmp.ne.s32.totalorder %s63, %s64
      %p75 = scmp.eq.s32.totalorder %s17, 0
      %p76 = por %p74, %p75
      %p77 = scmp.ne.s32.totalorder %s63, %s64
      %p78 = scmp.eq.s32.totalorder %s18, 15
      %p79 = por %p77, %p78
      %p81 = scmp.ne.s32.totalorder %s64, %s80
      %p82 = scmp.eq.s32.totalorder %s18, 0
      %p83 = por %p81, %p82
      %s84 = ssub.s32 %s19, %s31
      %s85 = ssub.s32 %s20, %s27
      %s86 = sor.u32 %s84, %s85
      %p87 = scmp.eq.s32.totalorder %s86, 0
      %s89 = sadd.s32 %s88, 1
      %s90 = scalar_select %p87, %s88, %s89
      %p93 = pneg %p87
      %p94 = scmp.eq.s32.totalorder %s12, 15
      %p95 = por %p93, %p94
      %p96 = scmp.ne.s32.totalorder %s88, %s91
      %p97 = scmp.eq.s32.totalorder %s12, 0
      %p98 = por %p96, %p97
      %p99 = scmp.ne.s32.totalorder %s88, %s91
      %p100 = scmp.eq.s32.totalorder %s17, 15
      %p101 = por %p99, %p100
      %p102 = scmp.ne.s32.totalorder %s91, %s92
      %p103 = scmp.eq.s32.totalorder %s17, 0
      %p104 = por %p102, %p103
      %p105 = scmp.ne.s32.totalorder %s91, %s92
      %p106 = scmp.eq.s32.totalorder %s18, 15
      %p107 = por %p105, %p106
      %p109 = scmp.ne.s32.totalorder %s92, %s108
      %p110 = scmp.eq.s32.totalorder %s18, 0
      %p111 = por %p109, %p110
      %p112 = scmp.le.s32.totalorder 1, %s12
      %p113 = scmp.lt.s32.totalorder %s12, 17
      %p114 = pnand %p112, %p113
      %p115 = pneg %p114
      // Predicated region
      $region9: #{dec_forward.7} parent=5 // pred_check
        _
      $region10: #{dec_forward.7} parent=5 // pred_check_branch
        %117 = sbr.rel (%p114) target = $region12
      $region11: #{dec_forward.7} parent=5 // pred_region
        %s118 = ssub.s32 %s12, 1
        // Predicated region
        $region13: #{dec_forward.7} parent=11 // pred_check
          %p119 = pneg %p50
        $region14: #{dec_forward.7} parent=11 // pred_check_branch
          %121 = sbr.rel (%p119) target = $region16
        $region15: #{dec_forward.7} parent=11 // pred_region
          %123 = vsyncadd [#allocation3], 0
          %s124 = smul.addr %s21, 2
          %s125 = scalar_lea.hbm %s0, %s124
          %s127 = sshll.u32 %s125, 4
          %s128 = int_to_ptr.hbm [resolvable:$true] %s127
          %s129 = sshll.u32 [#allocation2], 4
          %s130 = int_to_ptr.vmem [resolvable:$true] %s129
          %132 = dma.hbm_to_vmem [thread:$0]  %s128, 32, %s130, [#allocation3]
        $region16: #{dec_forward.7} parent=11 // pred_fallthru
          _
      $region12: #{dec_forward.7} parent=5 // pred_fallthru
        _
      %p133 = scmp.lt.s32.totalorder %s12, 16
      // Predicated region
      $region17: #{dec_forward.7} parent=5 // pred_check
        %p134 = pneg %p133
      $region18: #{dec_forward.7} parent=5 // pred_check_branch
        %136 = sbr.rel (%p134) target = $region20
      $region19: #{dec_forward.7} parent=5 // pred_region
        // Predicated region
        $region21: #{dec_forward.7} parent=19 // pred_check
          %p137 = pneg %p70
        $region22: #{dec_forward.7} parent=19 // pred_check_branch
          %139 = sbr.rel (%p137) target = $region24
        $region23: #{dec_forward.7} parent=19 // pred_region
          %s140 = sand.u32 %s60, 1
          %s141 = scalar_lea.sflag [#allocation5], %s140
          %s142 = sand.u32 %s60, 1
          %s143 = smul.addr %s142, 128
          %s144 = scalar_lea.vmem [#allocation4], %s143
          %s145 = smul.u32 4, %s20
          %147 = vsyncadd %s141, 0
          %s148 = smul.addr %s145, 4
          %s149 = scalar_lea.hbm %s1, %s148
          %s150 = sshll.u32 %s149, 4
          %s151 = int_to_ptr.hbm [resolvable:$true] %s150
          %s152 = sshll.u32 %s144, 4
          %s153 = int_to_ptr.vmem [resolvable:$true] %s152
          %158 = dma.hbm_to_vmem [thread:$0]  %s151, 2048, %s153, %s141, 4096, 256, 16
        $region24: #{dec_forward.7} parent=19 // pred_fallthru
          _
      $region20: #{dec_forward.7} parent=5 // pred_fallthru
        _
      %p159 = scmp.le.s32.totalorder 1, %s12
      %p160 = scmp.lt.s32.totalorder %s12, 17
      %p161 = pnand %p159, %p160
      %p162 = pneg %p161
      // Predicated region
      $region25: #{dec_forward.7} parent=5 // pred_check
        _
      $region26: #{dec_forward.7} parent=5 // pred_check_branch
        %164 = sbr.rel (%p161) target = $region28
      $region27: #{dec_forward.7} parent=5 // pred_region
        %s165 = ssub.s32 %s12, 1
        // Predicated region
        $region29: #{dec_forward.7} parent=27 // pred_check
          %p166 = pneg %p50
        $region30: #{dec_forward.7} parent=27 // pred_check_branch
          %168 = sbr.rel (%p166) target = $region32
        $region31: #{dec_forward.7} parent=27 // pred_region
          %170 = dma.done [#allocation3], 32
        $region32: #{dec_forward.7} parent=27 // pred_fallthru
          _
        %s171 = sand.u32 %s63, 1
        %s172 = scalar_lea.sflag [#allocation5], %s171
        %s173 = sand.u32 %s63, 1
        %s174 = smul.addr %s173, 128
        %s175 = scalar_lea.vmem [#allocation4], %s174
        // Predicated region
        $region33: #{dec_forward.7} parent=27 // pred_check
          %p176 = pneg %p76
        $region34: #{dec_forward.7} parent=27 // pred_check_branch
          %178 = sbr.rel (%p176) target = $region36
        $region35: #{dec_forward.7} parent=27 // pred_region
          %180 = dma.done %s172, 2048
        $region36: #{dec_forward.7} parent=27 // pred_fallthru
          _
        %p181 = pneg %p50
        %p182 = pneg %p47
        %s183 = sand.u32 %s63, 1
        %s184 = scalar_lea.sflag [#allocation5], %s183
        %s185 = sand.u32 %s63, 1
        %s186 = smul.addr %s185, 128
        %s187 = scalar_lea.vmem [#allocation4], %s186
        %p188 = pneg %p76
        %p189 = pneg %p73
        %p190 = pneg %p104
        %p191 = pneg %p101
        %s192 = smul.u32 4, %s22
        %p193 = scmp.lt.s32.totalorder %s21, 0
        %s194 = scalar_select %p193, %s21, 0
        %p195 = scmp.lt.s32.totalorder %s192, 63
        %s196 = scalar_select %p195, %s192, 63
        %s197 = smul.addr %s194, 64
        %s198 = sadd.s32 %s196, %s197
        %s199 = smul.addr %s198, 2
        %s200 = scalar_lea.vmem %s2, %s199
        %s201 = smul.u32 4, %s22
        %s202 = smul.u32 4, %s22
        %p203 = scmp.lt.s32.totalorder %s21, 0
        %s204 = scalar_select %p203, %s21, 0
        %p205 = scmp.lt.s32.totalorder %s202, 63
        %s206 = scalar_select %p205, %s202, 63
        %s207 = smul.addr %s204, 64
        %s208 = sadd.s32 %s206, %s207
        %s209 = smul.addr %s208, 2
        %s210 = scalar_lea.vmem %s2, %s209
        %s211 = smul.u32 4, %s22
        %v213 = vld [vmem:[#allocation2] sm:$0x3]
        %v214 = vpack.c.bf16 %v213, %v213
        %v215 = vld [vmem:[%s175] sm:$0xff]
        %v216 = vld [vmem:[%s175 + $0x8] sm:$0xff]
        %v217 = vld [vmem:[%s175 + $0x10] sm:$0xff]
        %v218 = vld [vmem:[%s175 + $0x18] sm:$0xff]
        %v219 = vld [vmem:[%s175 + $0x20] sm:$0xff]
        %v220 = vld [vmem:[%s175 + $0x28] sm:$0xff]
        %v221 = vld [vmem:[%s175 + $0x30] sm:$0xff]
        %v222 = vld [vmem:[%s175 + $0x38] sm:$0xff]
        %v223 = vld [vmem:[%s175 + $0x40] sm:$0xff]
        %v224 = vld [vmem:[%s175 + $0x48] sm:$0xff]
        %v225 = vld [vmem:[%s175 + $0x50] sm:$0xff]
        %v226 = vld [vmem:[%s175 + $0x58] sm:$0xff]
        %v227 = vld [vmem:[%s175 + $0x60] sm:$0xff]
        %v228 = vld [vmem:[%s175 + $0x68] sm:$0xff]
        %v229 = vld [vmem:[%s175 + $0x70] sm:$0xff]
        %v230 = vld [vmem:[%s175 + $0x78] sm:$0xff]
        %v247 = vunpack.c.l.b16 %v215
        %v248 = vunpack.c.h.b16 %v215
        %v249 = vunpack.c.l.b16 %v216
        %v250 = vunpack.c.h.b16 %v216
        %v251 = vunpack.c.l.b16 %v217
        %v252 = vunpack.c.h.b16 %v217
        %v253 = vunpack.c.l.b16 %v218
        %v254 = vunpack.c.h.b16 %v218
        %v255 = vunpack.c.l.b16 %v219
        %v256 = vunpack.c.h.b16 %v219
        %v257 = vunpack.c.l.b16 %v220
        %v258 = vunpack.c.h.b16 %v220
        %v259 = vunpack.c.l.b16 %v221
        %v260 = vunpack.c.h.b16 %v221
        %v261 = vunpack.c.l.b16 %v222
        %v262 = vunpack.c.h.b16 %v222
        %v263 = vunpack.c.l.b16 %v223
        %v264 = vunpack.c.h.b16 %v223
        %v265 = vunpack.c.l.b16 %v224
        %v266 = vunpack.c.h.b16 %v224
        %v267 = vunpack.c.l.b16 %v225
        %v268 = vunpack.c.h.b16 %v225
        %v269 = vunpack.c.l.b16 %v226
        %v270 = vunpack.c.h.b16 %v226
        %v271 = vunpack.c.l.b16 %v227
        %v272 = vunpack.c.h.b16 %v227
        %v273 = vunpack.c.l.b16 %v228
        %v274 = vunpack.c.h.b16 %v228
        %v275 = vunpack.c.l.b16 %v229
        %v276 = vunpack.c.h.b16 %v229
        %v277 = vunpack.c.l.b16 %v230
        %v278 = vunpack.c.h.b16 %v230
        %v279 = vpack.c.b16 %v251, %v247
        %v280 = vpack.c.b16 %v252, %v248
        %v281 = vpack.c.b16 %v253, %v249
        %v282 = vpack.c.b16 %v254, %v250
        %v283 = vpack.c.b16 %v259, %v255
        %v284 = vpack.c.b16 %v260, %v256
        %v285 = vpack.c.b16 %v261, %v257
        %v286 = vpack.c.b16 %v262, %v258
        %v287 = vpack.c.b16 %v267, %v263
        %v288 = vpack.c.b16 %v268, %v264
        %v289 = vpack.c.b16 %v269, %v265
        %v290 = vpack.c.b16 %v270, %v266
        %v291 = vpack.c.b16 %v275, %v271
        %v292 = vpack.c.b16 %v276, %v272
        %v293 = vpack.c.b16 %v277, %v273
        %v294 = vpack.c.b16 %v278, %v274
        %vm311 = vcmask 523264
        %v313 = vsel %vm311, %v214, 0
        %315 = vmatpush.bf16.msra.mxu0 0
        %316 = vmatpush.bf16.msra.mxu0 0
        %317 = vmatpush.bf16.msra.mxu0 0
        %318 = vmatpush.bf16.msra.mxu0 0
        %319 = vmatpush.bf16.msra.mxu0 %v291
        %320 = vmatpush.bf16.msra.mxu0 %v287
        %321 = vmatpush.bf16.msra.mxu0 %v283
        %322 = vmatpush.bf16.msra.mxu0 %v279
        %323 = vmatmul.bf16.gmra.mxu0 %v313
        %v324 = vpop.f32.mrf.mxu0
        %v325 = vadd.f32 0.0, %v324
        %v326 = vpop.f32.mrf.mxu0
        %327 = vdwg.mxu0
        %328 = vmatpush.bf16.msra.mxu0 0
        %329 = vmatpush.bf16.msra.mxu0 0
        %330 = vmatpush.bf16.msra.mxu0 0
        %331 = vmatpush.bf16.msra.mxu0 0
        %332 = vmatpush.bf16.msra.mxu0 %v292
        %333 = vmatpush.bf16.msra.mxu0 %v288
        %334 = vmatpush.bf16.msra.mxu0 %v284
        %335 = vmatpush.bf16.msra.mxu0 %v280
        %336 = vmatmul.bf16.gmra.mxu0 %v313
        %v337 = vpop.f32.mrf.mxu0
        %v338 = vadd.f32 0.0, %v337
        %v339 = vpop.f32.mrf.mxu0
        %340 = vdwg.mxu0
        %341 = vmatpush.bf16.msra.mxu0 0
        %342 = vmatpush.bf16.msra.mxu0 0
        %343 = vmatpush.bf16.msra.mxu0 0
        %344 = vmatpush.bf16.msra.mxu0 0
        %345 = vmatpush.bf16.msra.mxu0 %v293
        %346 = vmatpush.bf16.msra.mxu0 %v289
        %347 = vmatpush.bf16.msra.mxu0 %v285
        %348 = vmatpush.bf16.msra.mxu0 %v281
        %349 = vmatmul.bf16.gmra.mxu0 %v313
        %v350 = vpop.f32.mrf.mxu0
        %v351 = vadd.f32 0.0, %v350
        %v352 = vpop.f32.mrf.mxu0
        %353 = vdwg.mxu0
        %354 = vmatpush.bf16.msra.mxu0 0
        %355 = vmatpush.bf16.msra.mxu0 0
        %356 = vmatpush.bf16.msra.mxu0 0
        %357 = vmatpush.bf16.msra.mxu0 0
        %358 = vmatpush.bf16.msra.mxu0 %v294
        %359 = vmatpush.bf16.msra.mxu0 %v290
        %360 = vmatpush.bf16.msra.mxu0 %v286
        %361 = vmatpush.bf16.msra.mxu0 %v282
        %362 = vmatmul.bf16.gmra.mxu0 %v313
        %v363 = vpop.f32.mrf.mxu0
        %v364 = vadd.f32 0.0, %v363
        %v365 = vpop.f32.mrf.mxu0
        %366 = vdwg.mxu0
        %v371 = vrot.slane %v338, 6
        %v372 = vrot.slane %v351, 4
        %v373 = vrot.slane %v364, 2
        %vm374 = vcmask 1041408
        %v375 = vsel %vm374, %v325, %v371
        %vm376 = vcmask 1045508
        %v377 = vsel %vm376, %v372, %v373
        %vm378 = vcmask 1043456
        %v379 = vsel %vm378, %v375, %v377
        %381 = vst [vmem:[%s210] sm:$0xff] %v379
        %s382 = smul.u32 4, %s22
        %p383 = scmp.lt.s32.totalorder %s21, 0
        %s384 = scalar_select %p383, %s21, 0
        %p385 = scmp.lt.s32.totalorder %s382, 63
        %s386 = scalar_select %p385, %s382, 63
        %s387 = smul.addr %s384, 64
        %s388 = sadd.s32 %s386, %s387
        %s389 = smul.addr %s388, 2
        %s390 = scalar_lea.vmem %s2, %s389
        // Predicated region
        $region37: #{dec_forward.7} parent=27 // pred_check
          %p391 = pneg %p101
        $region38: #{dec_forward.7} parent=27 // pred_check_branch
          %393 = sbr.rel (%p391) target = $region40
        $region39: #{dec_forward.7} parent=27 // pred_region
          %s394 = smul.u32 4, %s22
        $region40: #{dec_forward.7} parent=27 // pred_fallthru
          _
      $region28: #{dec_forward.7} parent=5 // pred_fallthru
        _
      %p395 = scmp.le.s32.totalorder 2, %s12
      // Predicated region
      $region41: #{dec_forward.7} parent=5 // pred_check
        %p396 = pneg %p395
      $region42: #{dec_forward.7} parent=5 // pred_check_branch
        %398 = sbr.rel (%p396) target = $region44
      $region43: #{dec_forward.7} parent=5 // pred_region
        %s399 = ssub.s32 %s12, 2
        // Predicated region
        $region45: #{dec_forward.7} parent=43 // pred_check
          %p400 = pneg %p107
        $region46: #{dec_forward.7} parent=43 // pred_check_branch
          %402 = sbr.rel (%p400) target = $region48
        $region47: #{dec_forward.7} parent=43 // pred_region
          %s403 = smul.u32 4, %s24
          %p404 = scmp.lt.s32.totalorder %s23, 0
          %s405 = scalar_select %p404, %s23, 0
          %p406 = scmp.lt.s32.totalorder %s403, 63
          %s407 = scalar_select %p406, %s403, 63
          %s408 = smul.addr %s405, 64
          %s409 = sadd.s32 %s407, %s408
          %s410 = smul.addr %s409, 2
          %s411 = scalar_lea.vmem %s2, %s410
        $region48: #{dec_forward.7} parent=43 // pred_fallthru
          _
      $region44: #{dec_forward.7} parent=5 // pred_fallthru
        _
    $region6: #{dec_forward.7} parent=1 // loop_footer
      %s16 = sadd.s32 1, %s12
    $region7: #{dec_forward.7} parent=1 // loop_footer_branch
      %11 = sbr.rel target = $region3
    $region8: #{dec_forward.7} parent=1 // loop_exit
      _
    %412 = vsyncpa [#allocation3], 1
    %s413 = scalar_lea.sflag [#allocation3], 1
    %414 = vsyncpa %s413, 1
    %415 = vsyncpa [#allocation5], 1
    %s416 = scalar_lea.sflag [#allocation5], 1
    %417 = vsyncpa %s416, 1

// kernel: dec_forward.8
$region0: #{dec_forward.8}
  #allocation0 [shape = 'u32[]', space=smem, size = 0x4, offset = 0x4, fixed_abs, tag = 'smem constant byte address 0x4 - core index']
  #allocation1 [shape = 'u32[72,128]{1,0:T(1,128)}', space=vmem, size = 0x9000, scoped, tag = 'internal scratch']
  %s0 = inlined_call_operand.vmem [shape: f32[32,512], index: 0, kind: input, shape index: {}]
  %s1 = inlined_call_operand.hbm [shape: f32[1,512], index: 1, kind: input, shape index: {}]
  %s2 = inlined_call_operand.hbm [shape: bf16[512,1024], index: 2, kind: input, shape index: {}]
  %s3 = inlined_call_operand.vmem [shape: f32[32,1024], index: 3, kind: output, shape index: {}]
  %s4 = sld [smem:[#allocation0]]
  $region72: #{dec_forward.8} parent=0
    _
  %s6 = ssub.s32 1, %s4
  %s7 = scalar_select 0, %s6, %s4
  $region1: #{dec_forward.8} parent=0
    #allocation2 [shape = 'u8[2048]{0}', space=vmem, size = 0x800, scoped, tag = 'input window, operand 1, single buffered']
    #allocation3 [shape = 's32[2]{0}', space=sflag, size = 0x8, scoped, tag = 'scoped memory for dec_forward.8']
    #allocation4 [shape = 'u8[1048576]{0}', space=vmem, size = 0x100000, scoped, tag = 'input window, operand 2']
    #allocation5 [shape = 's32[2]{0}', space=sflag, size = 0x8, scoped, tag = 'scoped memory for dec_forward.8']
    #allocation6 [shape = 'u8[131072]{0}', space=vmem, size = 0x20000, scoped, tag = 'output window, operand 0']
    %8 = vsyncpa [#allocation3], 0
    %9 = vsyncpa [#allocation5], 0
    %s10 = scalar_lea.sflag [#allocation5], 1
    %11 = vsyncpa %s10, 0
    loop: start=0, step=1, limit=4
    $region2: #{dec_forward.8} parent=1 // loop_pre_header
      _
    $region3: #{dec_forward.8} parent=1 // loop_header
      %s13 = sphi 0, %s17
      %p14 = scmp.ge.s32.totalorder %s13, 4
      %s20 = sphi 0, %s32
      %s21 = sphi 0, %s28
      %s22 = sphi 0, %s20
      %s23 = sphi 0, %s21
      %s24 = sphi 0, %s22
      %s25 = sphi 0, %s23
      %s35 = sphi 0, %s37
      %s38 = sphi 0, %s35
      %s39 = sphi 0, %s38
      %s55 = sphi 0, %s39
      %s59 = sphi 0, %s59
      %s61 = sphi 0, %s59
      %s62 = sphi 0, %s61
      %s76 = sphi 0, %s62
      %s82 = sphi 0, %s84
      %s85 = sphi 0, %s82
      %s86 = sphi 0, %s85
      %s102 = sphi 0, %s86
      %s110 = sphi 0, %s112
      %s113 = sphi 0, %s110
      %s114 = sphi 0, %s113
      %s130 = sphi 0, %s114
    $region4: #{dec_forward.8} parent=1 // loop_header_branch
      %16 = sbr.rel (%p14) target = $region8
    $region5: #{dec_forward.8} parent=1 // loop_body
      %s18 = ssub.s32 %s13, 1
      %s19 = ssub.s32 %s13, 2
      %s26 = sadd.s32 1, %s21
      %p27 = scmp.ge.s32.totalorder %s26, 2
      %s28 = scalar_select %p27, 0, %s26
      %s29 = sadd.s32 1, %s20
      %s30 = scalar_select %p27, %s29, %s20
      %p31 = scmp.ge.s32.totalorder %s30, 1
      %s32 = scalar_select %p31, 0, %s30
      %s33 = ssub.s32 %s20, %s32
      %p34 = scmp.eq.s32.totalorder %s33, 0
      %s36 = sadd.s32 %s35, 1
      %s37 = scalar_select %p34, %s35, %s36
      %p40 = pneg %p34
      %p41 = scmp.eq.s32.totalorder %s13, 1
      %p42 = por %p40, %p41
      %p43 = scmp.ne.s32.totalorder %s35, %s38
      %p44 = scmp.eq.s32.totalorder %s13, 0
      %p45 = por %p43, %p44
      %p46 = scmp.ne.s32.totalorder %s35, %s38
      %p47 = scmp.eq.s32.totalorder %s18, 1
      %p48 = por %p46, %p47
      %p49 = scmp.ne.s32.totalorder %s38, %s39
      %p50 = scmp.eq.s32.totalorder %s18, 0
      %p51 = por %p49, %p50
      %p52 = scmp.ne.s32.totalorder %s38, %s39
      %p53 = scmp.eq.s32.totalorder %s19, 1
      %p54 = por %p52, %p53
      %p56 = scmp.ne.s32.totalorder %s39, %s55
      %p57 = scmp.eq.s32.totalorder %s19, 0
      %p58 = por %p56, %p57
      %s60 = sadd.s32 %s59, 1
      %p63 = scmp.eq.s32.totalorder %s13, 1
      %p64 = scmp.ne.s32.totalorder %s59, %s61
      %p65 = scmp.eq.s32.totalorder %s13, 0
      %p66 = por %p64, %p65
      %p67 = scmp.ne.s32.totalorder %s59, %s61
      %p68 = scmp.eq.s32.totalorder %s18, 1
      %p69 = por %p67, %p68
      %p70 = scmp.ne.s32.totalorder %s61, %s62
      %p71 = scmp.eq.s32.totalorder %s18, 0
      %p72 = por %p70, %p71
      %p73 = scmp.ne.s32.totalorder %s61, %s62
      %p74 = scmp.eq.s32.totalorder %s19, 1
      %p75 = por %p73, %p74
      %p77 = scmp.ne.s32.totalorder %s62, %s76
      %p78 = scmp.eq.s32.totalorder %s19, 0
      %p79 = por %p77, %p78
      %s80 = ssub.s32 %s21, %s28
      %p81 = scmp.eq.s32.totalorder %s80, 0
      %s83 = sadd.s32 %s82, 1
      %s84 = scalar_select %p81, %s82, %s83
      %p87 = pneg %p81
      %p88 = scmp.eq.s32.totalorder %s13, 1
      %p89 = por %p87, %p88
      %p90 = scmp.ne.s32.totalorder %s82, %s85
      %p91 = scmp.eq.s32.totalorder %s13, 0
      %p92 = por %p90, %p91
      %p93 = scmp.ne.s32.totalorder %s82, %s85
      %p94 = scmp.eq.s32.totalorder %s18, 1
      %p95 = por %p93, %p94
      %p96 = scmp.ne.s32.totalorder %s85, %s86
      %p97 = scmp.eq.s32.totalorder %s18, 0
      %p98 = por %p96, %p97
      %p99 = scmp.ne.s32.totalorder %s85, %s86
      %p100 = scmp.eq.s32.totalorder %s19, 1
      %p101 = por %p99, %p100
      %p103 = scmp.ne.s32.totalorder %s86, %s102
      %p104 = scmp.eq.s32.totalorder %s19, 0
      %p105 = por %p103, %p104
      %s106 = ssub.s32 %s20, %s32
      %s107 = ssub.s32 %s21, %s28
      %s108 = sor.u32 %s106, %s107
      %p109 = scmp.eq.s32.totalorder %s108, 0
      %s111 = sadd.s32 %s110, 1
      %s112 = scalar_select %p109, %s110, %s111
      %p115 = pneg %p109
      %p116 = scmp.eq.s32.totalorder %s13, 1
      %p117 = por %p115, %p116
      %p118 = scmp.ne.s32.totalorder %s110, %s113
      %p119 = scmp.eq.s32.totalorder %s13, 0
      %p120 = por %p118, %p119
      %p121 = scmp.ne.s32.totalorder %s110, %s113
      %p122 = scmp.eq.s32.totalorder %s18, 1
      %p123 = por %p121, %p122
      %p124 = scmp.ne.s32.totalorder %s113, %s114
      %p125 = scmp.eq.s32.totalorder %s18, 0
      %p126 = por %p124, %p125
      %p127 = scmp.ne.s32.totalorder %s113, %s114
      %p128 = scmp.eq.s32.totalorder %s19, 1
      %p129 = por %p127, %p128
      %p131 = scmp.ne.s32.totalorder %s114, %s130
      %p132 = scmp.eq.s32.totalorder %s19, 0
      %p133 = por %p131, %p132
      %p134 = scmp.le.s32.totalorder 1, %s13
      %p135 = scmp.lt.s32.totalorder %s13, 3
      %p136 = pnand %p134, %p135
      %p137 = pneg %p136
      // Predicated region
      $region9: #{dec_forward.8} parent=5 // pred_check
        _
      $region10: #{dec_forward.8} parent=5 // pred_check_branch
        %139 = sbr.rel (%p136) target = $region12
      $region11: #{dec_forward.8} parent=5 // pred_region
        %s140 = ssub.s32 %s13, 1
        // Predicated region
        $region13: #{dec_forward.8} parent=11 // pred_check
          %p141 = pneg %p51
        $region14: #{dec_forward.8} parent=11 // pred_check_branch
          %143 = sbr.rel (%p141) target = $region16
        $region15: #{dec_forward.8} parent=11 // pred_region
          %s144 = smul.u32 4, %s22
          %p145 = scmp.lt.s32.totalorder %s144, 3
          %s146 = scalar_select %p145, %s144, 3
          %s147 = smul.addr %s146, 4
          %s148 = smul.addr %s147, 8
          %s149 = scalar_lea.vmem %s0, %s148
          %s150 = smul.u32 4, %s22
        $region16: #{dec_forward.8} parent=11 // pred_fallthru
          _
        // Predicated region
        $region17: #{dec_forward.8} parent=11 // pred_check
          %p151 = pneg %p72
        $region18: #{dec_forward.8} parent=11 // pred_check_branch
          %153 = sbr.rel (%p151) target = $region20
        $region19: #{dec_forward.8} parent=11 // pred_region
          %155 = vsyncadd [#allocation3], 0
          %s157 = sshll.u32 %s1, 4
          %s158 = int_to_ptr.hbm [resolvable:$true] %s157
          %s159 = sshll.u32 [#allocation2], 4
          %s160 = int_to_ptr.vmem [resolvable:$true] %s159
          %162 = dma.hbm_to_vmem [thread:$0]  %s158, 64, %s160, [#allocation3]
        $region20: #{dec_forward.8} parent=11 // pred_fallthru
          _
      $region12: #{dec_forward.8} parent=5 // pred_fallthru
        _
      %p163 = scmp.lt.s32.totalorder %s13, 2
      // Predicated region
      $region21: #{dec_forward.8} parent=5 // pred_check
        %p164 = pneg %p163
      $region22: #{dec_forward.8} parent=5 // pred_check_branch
        %166 = sbr.rel (%p164) target = $region24
      $region23: #{dec_forward.8} parent=5 // pred_region
        // Predicated region
        $region25: #{dec_forward.8} parent=23 // pred_check
          %p167 = pneg %p92
        $region26: #{dec_forward.8} parent=23 // pred_check_branch
          %169 = sbr.rel (%p167) target = $region28
        $region27: #{dec_forward.8} parent=23 // pred_region
          %s170 = sand.u32 %s82, 1
          %s171 = scalar_lea.sflag [#allocation5], %s170
          %s172 = sand.u32 %s82, 1
          %s173 = smul.addr %s172, 1024
          %s174 = scalar_lea.vmem [#allocation4], %s173
          %s175 = smul.u32 4, %s21
          %177 = vsyncadd %s171, 0
          %s178 = smul.addr %s175, 4
          %s179 = scalar_lea.hbm %s2, %s178
          %s180 = sshll.u32 %s179, 4
          %s181 = int_to_ptr.hbm [resolvable:$true] %s180
          %s182 = sshll.u32 %s174, 4
          %s183 = int_to_ptr.vmem [resolvable:$true] %s182
          %188 = dma.hbm_to_vmem [thread:$0]  %s181, 16384, %s183, %s171, 512, 256, 16
        $region28: #{dec_forward.8} parent=23 // pred_fallthru
          _
      $region24: #{dec_forward.8} parent=5 // pred_fallthru
        _
      %p189 = scmp.le.s32.totalorder 1, %s13
      %p190 = scmp.lt.s32.totalorder %s13, 3
      %p191 = pnand %p189, %p190
      %p192 = pneg %p191
      // Predicated region
      $region29: #{dec_forward.8} parent=5 // pred_check
        _
      $region30: #{dec_forward.8} parent=5 // pred_check_branch
        %194 = sbr.rel (%p191) target = $region32
      $region31: #{dec_forward.8} parent=5 // pred_region
        %s195 = ssub.s32 %s13, 1
        // Predicated region
        $region33: #{dec_forward.8} parent=31 // pred_check
          %p196 = pneg %p72
        $region34: #{dec_forward.8} parent=31 // pred_check_branch
          %198 = sbr.rel (%p196) target = $region36
        $region35: #{dec_forward.8} parent=31 // pred_region
          %200 = dma.done [#allocation3], 64
        $region36: #{dec_forward.8} parent=31 // pred_fallthru
          _
        %s201 = sand.u32 %s85, 1
        %s202 = scalar_lea.sflag [#allocation5], %s201
        %s203 = sand.u32 %s85, 1
        %s204 = smul.addr %s203, 1024
        %s205 = scalar_lea.vmem [#allocation4], %s204
        // Predicated region
        $region37: #{dec_forward.8} parent=31 // pred_check
          %p206 = pneg %p98
        $region38: #{dec_forward.8} parent=31 // pred_check_branch
          %208 = sbr.rel (%p206) target = $region40
        $region39: #{dec_forward.8} parent=31 // pred_region
          %210 = dma.done %s202, 16384
        $region40: #{dec_forward.8} parent=31 // pred_fallthru
          _
        %s211 = smul.u32 4, %s22
        %p212 = scmp.lt.s32.totalorder %s211, 3
        %s213 = scalar_select %p212, %s211, 3
        %s214 = smul.addr %s213, 4
        %s215 = smul.addr %s214, 8
        %s216 = scalar_lea.vmem %s0, %s215
        %p217 = pneg %p51
        %p218 = pneg %p48
        %p219 = pneg %p72
        %p220 = pneg %p69
        %s221 = sand.u32 %s85, 1
        %s222 = scalar_lea.sflag [#allocation5], %s221
        %s223 = sand.u32 %s85, 1
        %s224 = smul.addr %s223, 1024
        %s225 = scalar_lea.vmem [#allocation4], %s224
        %p226 = pneg %p98
        %p227 = pneg %p95
        %p228 = pneg %p126
        %p229 = pneg %p123
        %s230 = sand.u32 %s113, 1
        %s231 = sand.u32 %s113, 1
        %s232 = smul.addr %s231, 128
        %s233 = scalar_lea.vmem [#allocation6], %s232
        %s234 = smul.u32 4, %s22
        %p235 = scmp.lt.s32.totalorder %s234, 3
        %s236 = scalar_select %p235, %s234, 3
        %s237 = smul.addr %s236, 4
        %s238 = smul.addr %s237, 8
        %s239 = scalar_lea.vmem %s0, %s238
        %s240 = smul.u32 4, %s22
        %s241 = smul.u32 4, %s23
        %s242 = smul.u32 4, %s22
        %s243 = smul.u32 4, %s23
        %v244 = vld [vmem:[%s239] sm:$0xff]
        %v245 = vld [vmem:[%s239 + $0x8] sm:$0xff]
        %v246 = vld [vmem:[%s239 + $0x10] sm:$0xff]
        %v247 = vld [vmem:[%s239 + $0x18] sm:$0xff]
        %v248 = vld [vmem:[%s239 + $0x20] sm:$0xff]
        %v249 = vld [vmem:[%s239 + $0x28] sm:$0xff]
        %v250 = vld [vmem:[%s239 + $0x30] sm:$0xff]
        %v251 = vld [vmem:[%s239 + $0x38] sm:$0xff]
        %v252 = vld [vmem:[%s239 + $0x40] sm:$0xff]
        %v253 = vld [vmem:[%s239 + $0x48] sm:$0xff]
        %v254 = vld [vmem:[%s239 + $0x50] sm:$0xff]
        %v255 = vld [vmem:[%s239 + $0x58] sm:$0xff]
        %v256 = vld [vmem:[%s239 + $0x60] sm:$0xff]
        %v257 = vld [vmem:[%s239 + $0x68] sm:$0xff]
        %v258 = vld [vmem:[%s239 + $0x70] sm:$0xff]
        %v259 = vld [vmem:[%s239 + $0x78] sm:$0xff]
        %v260 = vld [vmem:[#allocation2] sm:$0xf]
        %v262 = vperm.slane %v260, 0
        %v263 = vperm.slane %v260, 1
        %v264 = vperm.slane %v260, 2
        %v265 = vperm.slane %v260, 3
        %v270 = vadd.f32 %v244, %v262
        %v271 = vadd.f32 %v245, %v263
        %v272 = vadd.f32 %v246, %v264
        %v273 = vadd.f32 %v247, %v265
        %v274 = vadd.f32 %v248, %v262
        %v275 = vadd.f32 %v249, %v263
        %v276 = vadd.f32 %v250, %v264
        %v277 = vadd.f32 %v251, %v265
        %v278 = vadd.f32 %v252, %v262
        %v279 = vadd.f32 %v253, %v263
        %v280 = vadd.f32 %v254, %v264
        %v281 = vadd.f32 %v255, %v265
        %v282 = vadd.f32 %v256, %v262
        %v283 = vadd.f32 %v257, %v263
        %v284 = vadd.f32 %v258, %v264
        %v285 = vadd.f32 %v259, %v265
        %v286 = vmax.f32 %v270, 0.0
        %v287 = vmax.f32 %v271, 0.0
        %v288 = vmax.f32 %v272, 0.0
        %v289 = vmax.f32 %v273, 0.0
        %v290 = vmax.f32 %v274, 0.0
        %v291 = vmax.f32 %v275, 0.0
        %v292 = vmax.f32 %v276, 0.0
        %v293 = vmax.f32 %v277, 0.0
        %v294 = vmax.f32 %v278, 0.0
        %v295 = vmax.f32 %v279, 0.0
        %v296 = vmax.f32 %v280, 0.0
        %v297 = vmax.f32 %v281, 0.0
        %v298 = vmax.f32 %v282, 0.0
        %v299 = vmax.f32 %v283, 0.0
        %v300 = vmax.f32 %v284, 0.0
        %v301 = vmax.f32 %v285, 0.0
        %v302 = vpack.c.bf16 %v290, %v286
        %v303 = vpack.c.bf16 %v291, %v287
        %v304 = vpack.c.bf16 %v292, %v288
        %v305 = vpack.c.bf16 %v293, %v289
        %v306 = vpack.c.bf16 %v298, %v294
        %v307 = vpack.c.bf16 %v299, %v295
        %v308 = vpack.c.bf16 %v300, %v296
        %v309 = vpack.c.bf16 %v301, %v297
        %v310 = vld [vmem:[%s205] sm:$0xff]
        %v311 = vld [vmem:[%s205 + $0x8] sm:$0xff]
        %v312 = vld [vmem:[%s205 + $0x10] sm:$0xff]
        %v313 = vld [vmem:[%s205 + $0x18] sm:$0xff]
        %v314 = vld [vmem:[%s205 + $0x20] sm:$0xff]
        %v315 = vld [vmem:[%s205 + $0x28] sm:$0xff]
        %v316 = vld [vmem:[%s205 + $0x30] sm:$0xff]
        %v317 = vld [vmem:[%s205 + $0x38] sm:$0xff]
        %v318 = vld [vmem:[%s205 + $0x40] sm:$0xff]
        %v319 = vld [vmem:[%s205 + $0x48] sm:$0xff]
        %v320 = vld [vmem:[%s205 + $0x50] sm:$0xff]
        %v321 = vld [vmem:[%s205 + $0x58] sm:$0xff]
        %v322 = vld [vmem:[%s205 + $0x60] sm:$0xff]
        %v323 = vld [vmem:[%s205 + $0x68] sm:$0xff]
        %v324 = vld [vmem:[%s205 + $0x70] sm:$0xff]
        %v325 = vld [vmem:[%s205 + $0x78] sm:$0xff]
        %v326 = vld [vmem:[%s205 + $0x80] sm:$0xff]
        %v327 = vld [vmem:[%s205 + $0x88] sm:$0xff]
        %v328 = vld [vmem:[%s205 + $0x90] sm:$0xff]
        %v329 = vld [vmem:[%s205 + $0x98] sm:$0xff]
        %v330 = vld [vmem:[%s205 + $0xa0] sm:$0xff]
        %v331 = vld [vmem:[%s205 + $0xa8] sm:$0xff]
        %v332 = vld [vmem:[%s205 + $0xb0] sm:$0xff]
        %v333 = vld [vmem:[%s205 + $0xb8] sm:$0xff]
        %v334 = vld [vmem:[%s205 + $0xc0] sm:$0xff]
        %v335 = vld [vmem:[%s205 + $0xc8] sm:$0xff]
        %v336 = vld [vmem:[%s205 + $0xd0] sm:$0xff]
        %v337 = vld [vmem:[%s205 + $0xd8] sm:$0xff]
        %v338 = vld [vmem:[%s205 + $0xe0] sm:$0xff]
        %v339 = vld [vmem:[%s205 + $0xe8] sm:$0xff]
        %v340 = vld [vmem:[%s205 + $0xf0] sm:$0xff]
        %v341 = vld [vmem:[%s205 + $0xf8] sm:$0xff]
        %v342 = vld [vmem:[%s205 + $0x100] sm:$0xff]
        %v343 = vld [vmem:[%s205 + $0x108] sm:$0xff]
        %v344 = vld [vmem:[%s205 + $0x110] sm:$0xff]
        %v345 = vld [vmem:[%s205 + $0x118] sm:$0xff]
        %v346 = vld [vmem:[%s205 + $0x120] sm:$0xff]
        %v347 = vld [vmem:[%s205 + $0x128] sm:$0xff]
        %v348 = vld [vmem:[%s205 + $0x130] sm:$0xff]
        %v349 = vld [vmem:[%s205 + $0x138] sm:$0xff]
        %v350 = vld [vmem:[%s205 + $0x140] sm:$0xff]
        %v351 = vld [vmem:[%s205 + $0x148] sm:$0xff]
        %v352 = vld [vmem:[%s205 + $0x150] sm:$0xff]
        %v353 = vld [vmem:[%s205 + $0x158] sm:$0xff]
        %v354 = vld [vmem:[%s205 + $0x160] sm:$0xff]
        %v355 = vld [vmem:[%s205 + $0x168] sm:$0xff]
        %v356 = vld [vmem:[%s205 + $0x170] sm:$0xff]
        %v357 = vld [vmem:[%s205 + $0x178] sm:$0xff]
        %v358 = vld [vmem:[%s205 + $0x180] sm:$0xff]
        %v359 = vld [vmem:[%s205 + $0x188] sm:$0xff]
        %v360 = vld [vmem:[%s205 + $0x190] sm:$0xff]
        %v361 = vld [vmem:[%s205 + $0x198] sm:$0xff]
        %v362 = vld [vmem:[%s205 + $0x1a0] sm:$0xff]
        %v363 = vld [vmem:[%s205 + $0x1a8] sm:$0xff]
        %v364 = vld [vmem:[%s205 + $0x1b0] sm:$0xff]
        %v365 = vld [vmem:[%s205 + $0x1b8] sm:$0xff]
        %v366 = vld [vmem:[%s205 + $0x1c0] sm:$0xff]
        %v367 = vld [vmem:[%s205 + $0x1c8] sm:$0xff]
        %v368 = vld [vmem:[%s205 + $0x1d0] sm:$0xff]
        %v369 = vld [vmem:[%s205 + $0x1d8] sm:$0xff]
        %v370 = vld [vmem:[%s205 + $0x1e0] sm:$0xff]
        %v371 = vld [vmem:[%s205 + $0x1e8] sm:$0xff]
        %v372 = vld [vmem:[%s205 + $0x1f0] sm:$0xff]
        %v373 = vld [vmem:[%s205 + $0x1f8] sm:$0xff]
        %v374 = vld [vmem:[%s205 + $0x200] sm:$0xff]
        %v375 = vld [vmem:[%s205 + $0x208] sm:$0xff]
        %v376 = vld [vmem:[%s205 + $0x210] sm:$0xff]
        %v377 = vld [vmem:[%s205 + $0x218] sm:$0xff]
        %v378 = vld [vmem:[%s205 + $0x220] sm:$0xff]
        %v379 = vld [vmem:[%s205 + $0x228] sm:$0xff]
        %v380 = vld [vmem:[%s205 + $0x230] sm:$0xff]
        %v381 = vld [vmem:[%s205 + $0x238] sm:$0xff]
        %v382 = vld [vmem:[%s205 + $0x240] sm:$0xff]
        %v383 = vld [vmem:[%s205 + $0x248] sm:$0xff]
        %v384 = vld [vmem:[%s205 + $0x250] sm:$0xff]
        %v385 = vld [vmem:[%s205 + $0x258] sm:$0xff]
        %v386 = vld [vmem:[%s205 + $0x260] sm:$0xff]
        %v387 = vld [vmem:[%s205 + $0x268] sm:$0xff]
        %v388 = vld [vmem:[%s205 + $0x270] sm:$0xff]
        %v389 = vld [vmem:[%s205 + $0x278] sm:$0xff]
        %v390 = vld [vmem:[%s205 + $0x280] sm:$0xff]
        %v391 = vld [vmem:[%s205 + $0x288] sm:$0xff]
        %v392 = vld [vmem:[%s205 + $0x290] sm:$0xff]
        %v393 = vld [vmem:[%s205 + $0x298] sm:$0xff]
        %v394 = vld [vmem:[%s205 + $0x2a0] sm:$0xff]
        %v395 = vld [vmem:[%s205 + $0x2a8] sm:$0xff]
        %v396 = vld [vmem:[%s205 + $0x2b0] sm:$0xff]
        %v397 = vld [vmem:[%s205 + $0x2b8] sm:$0xff]
        %v398 = vld [vmem:[%s205 + $0x2c0] sm:$0xff]
        %v399 = vld [vmem:[%s205 + $0x2c8] sm:$0xff]
        %v400 = vld [vmem:[%s205 + $0x2d0] sm:$0xff]
        %v401 = vld [vmem:[%s205 + $0x2d8] sm:$0xff]
        %v402 = vld [vmem:[%s205 + $0x2e0] sm:$0xff]
        %v403 = vld [vmem:[%s205 + $0x2e8] sm:$0xff]
        %v404 = vld [vmem:[%s205 + $0x2f0] sm:$0xff]
        %v405 = vld [vmem:[%s205 + $0x2f8] sm:$0xff]
        %v406 = vld [vmem:[%s205 + $0x300] sm:$0xff]
        %v407 = vld [vmem:[%s205 + $0x308] sm:$0xff]
        %v408 = vld [vmem:[%s205 + $0x310] sm:$0xff]
        %v409 = vld [vmem:[%s205 + $0x318] sm:$0xff]
        %v410 = vld [vmem:[%s205 + $0x320] sm:$0xff]
        %v411 = vld [vmem:[%s205 + $0x328] sm:$0xff]
        %v412 = vld [vmem:[%s205 + $0x330] sm:$0xff]
        %v413 = vld [vmem:[%s205 + $0x338] sm:$0xff]
        %v414 = vld [vmem:[%s205 + $0x340] sm:$0xff]
        %v415 = vld [vmem:[%s205 + $0x348] sm:$0xff]
        %v416 = vld [vmem:[%s205 + $0x350] sm:$0xff]
        %v417 = vld [vmem:[%s205 + $0x358] sm:$0xff]
        %v418 = vld [vmem:[%s205 + $0x360] sm:$0xff]
        %v419 = vld [vmem:[%s205 + $0x368] sm:$0xff]
        %v420 = vld [vmem:[%s205 + $0x370] sm:$0xff]
        %v421 = vld [vmem:[%s205 + $0x378] sm:$0xff]
        %v422 = vld [vmem:[%s205 + $0x380] sm:$0xff]
        %v423 = vld [vmem:[%s205 + $0x388] sm:$0xff]
        %v424 = vld [vmem:[%s205 + $0x390] sm:$0xff]
        %v425 = vld [vmem:[%s205 + $0x398] sm:$0xff]
        %v426 = vld [vmem:[%s205 + $0x3a0] sm:$0xff]
        %v427 = vld [vmem:[%s205 + $0x3a8] sm:$0xff]
        %v428 = vld [vmem:[%s205 + $0x3b0] sm:$0xff]
        %v429 = vld [vmem:[%s205 + $0x3b8] sm:$0xff]
        %v430 = vld [vmem:[%s205 + $0x3c0] sm:$0xff]
        %v431 = vld [vmem:[%s205 + $0x3c8] sm:$0xff]
        %v432 = vld [vmem:[%s205 + $0x3d0] sm:$0xff]
        %v433 = vld [vmem:[%s205 + $0x3d8] sm:$0xff]
        %v434 = vld [vmem:[%s205 + $0x3e0] sm:$0xff]
        %v435 = vld [vmem:[%s205 + $0x3e8] sm:$0xff]
        %v436 = vld [vmem:[%s205 + $0x3f0] sm:$0xff]
        %v437 = vld [vmem:[%s205 + $0x3f8] sm:$0xff]
        %v566 = vunpack.c.l.b16 %v310
        %v567 = vunpack.c.h.b16 %v310
        %v568 = vunpack.c.l.b16 %v311
        %v569 = vunpack.c.h.b16 %v311
        %v570 = vunpack.c.l.b16 %v312
        %v571 = vunpack.c.h.b16 %v312
        %v572 = vunpack.c.l.b16 %v313
        %v573 = vunpack.c.h.b16 %v313
        %v574 = vunpack.c.l.b16 %v314
        %v575 = vunpack.c.h.b16 %v314
        %v576 = vunpack.c.l.b16 %v315
        %v577 = vunpack.c.h.b16 %v315
        %v578 = vunpack.c.l.b16 %v316
        %v579 = vunpack.c.h.b16 %v316
        %v580 = vunpack.c.l.b16 %v317
        %v581 = vunpack.c.h.b16 %v317
        %v582 = vunpack.c.l.b16 %v318
        %v583 = vunpack.c.h.b16 %v318
        %v584 = vunpack.c.l.b16 %v319
        %v585 = vunpack.c.h.b16 %v319
        %v586 = vunpack.c.l.b16 %v320
        %v587 = vunpack.c.h.b16 %v320
        %v588 = vunpack.c.l.b16 %v321
        %v589 = vunpack.c.h.b16 %v321
        %v590 = vunpack.c.l.b16 %v322
        %v591 = vunpack.c.h.b16 %v322
        %v592 = vunpack.c.l.b16 %v323
        %v593 = vunpack.c.h.b16 %v323
        %v594 = vunpack.c.l.b16 %v324
        %v595 = vunpack.c.h.b16 %v324
        %v596 = vunpack.c.l.b16 %v325
        %v597 = vunpack.c.h.b16 %v325
        %v598 = vunpack.c.l.b16 %v326
        %v599 = vunpack.c.h.b16 %v326
        %v600 = vunpack.c.l.b16 %v327
        %v601 = vunpack.c.h.b16 %v327
        %v602 = vunpack.c.l.b16 %v328
        %v603 = vunpack.c.h.b16 %v328
        %v604 = vunpack.c.l.b16 %v329
        %v605 = vunpack.c.h.b16 %v329
        %v606 = vunpack.c.l.b16 %v330
        %v607 = vunpack.c.h.b16 %v330
        %v608 = vunpack.c.l.b16 %v331
        %v609 = vunpack.c.h.b16 %v331
        %v610 = vunpack.c.l.b16 %v332
        %v611 = vunpack.c.h.b16 %v332
        %v612 = vunpack.c.l.b16 %v333
        %v613 = vunpack.c.h.b16 %v333
        %v614 = vunpack.c.l.b16 %v334
        %v615 = vunpack.c.h.b16 %v334
        %v616 = vunpack.c.l.b16 %v335
        %v617 = vunpack.c.h.b16 %v335
        %v618 = vunpack.c.l.b16 %v336
        %v619 = vunpack.c.h.b16 %v336
        %v620 = vunpack.c.l.b16 %v337
        %v621 = vunpack.c.h.b16 %v337
        %v622 = vunpack.c.l.b16 %v338
        %v623 = vunpack.c.h.b16 %v338
        %v624 = vunpack.c.l.b16 %v339
        %v625 = vunpack.c.h.b16 %v339
        %v626 = vunpack.c.l.b16 %v340
        %v627 = vunpack.c.h.b16 %v340
        %v628 = vunpack.c.l.b16 %v341
        %v629 = vunpack.c.h.b16 %v341
        %v630 = vunpack.c.l.b16 %v342
        %v631 = vunpack.c.h.b16 %v342
        %v632 = vunpack.c.l.b16 %v343
        %v633 = vunpack.c.h.b16 %v343
        %v634 = vunpack.c.l.b16 %v344
        %v635 = vunpack.c.h.b16 %v344
        %v636 = vunpack.c.l.b16 %v345
        %v637 = vunpack.c.h.b16 %v345
        %v638 = vunpack.c.l.b16 %v346
        %v639 = vunpack.c.h.b16 %v346
        %v640 = vunpack.c.l.b16 %v347
        %v641 = vunpack.c.h.b16 %v347
        %v642 = vunpack.c.l.b16 %v348
        %v643 = vunpack.c.h.b16 %v348
        %v644 = vunpack.c.l.b16 %v349
        %v645 = vunpack.c.h.b16 %v349
        %v646 = vunpack.c.l.b16 %v350
        %v647 = vunpack.c.h.b16 %v350
        %v648 = vunpack.c.l.b16 %v351
        %v649 = vunpack.c.h.b16 %v351
        %v650 = vunpack.c.l.b16 %v352
        %v651 = vunpack.c.h.b16 %v352
        %v652 = vunpack.c.l.b16 %v353
        %v653 = vunpack.c.h.b16 %v353
        %v654 = vunpack.c.l.b16 %v354
        %v655 = vunpack.c.h.b16 %v354
        %v656 = vunpack.c.l.b16 %v355
        %v657 = vunpack.c.h.b16 %v355
        %v658 = vunpack.c.l.b16 %v356
        %v659 = vunpack.c.h.b16 %v356
        %v660 = vunpack.c.l.b16 %v357
        %v661 = vunpack.c.h.b16 %v357
        %v662 = vunpack.c.l.b16 %v358
        %v663 = vunpack.c.h.b16 %v358
        %v664 = vunpack.c.l.b16 %v359
        %v665 = vunpack.c.h.b16 %v359
        %v666 = vunpack.c.l.b16 %v360
        %v667 = vunpack.c.h.b16 %v360
        %v668 = vunpack.c.l.b16 %v361
        %v669 = vunpack.c.h.b16 %v361
        %v670 = vunpack.c.l.b16 %v362
        %v671 = vunpack.c.h.b16 %v362
        %v672 = vunpack.c.l.b16 %v363
        %v673 = vunpack.c.h.b16 %v363
        %v674 = vunpack.c.l.b16 %v364
        %v675 = vunpack.c.h.b16 %v364
        %v676 = vunpack.c.l.b16 %v365
        %v677 = vunpack.c.h.b16 %v365
        %v678 = vunpack.c.l.b16 %v366
        %v679 = vunpack.c.h.b16 %v366
        %v680 = vunpack.c.l.b16 %v367
        %v681 = vunpack.c.h.b16 %v367
        %v682 = vunpack.c.l.b16 %v368
        %v683 = vunpack.c.h.b16 %v368
        %v684 = vunpack.c.l.b16 %v369
        %v685 = vunpack.c.h.b16 %v369
        %v686 = vunpack.c.l.b16 %v370
        %v687 = vunpack.c.h.b16 %v370
        %v688 = vunpack.c.l.b16 %v371
        %v689 = vunpack.c.h.b16 %v371
        %v690 = vunpack.c.l.b16 %v372
        %v691 = vunpack.c.h.b16 %v372
        %v692 = vunpack.c.l.b16 %v373
        %v693 = vunpack.c.h.b16 %v373
        %v694 = vunpack.c.l.b16 %v374
        %v695 = vunpack.c.h.b16 %v374
        %v696 = vunpack.c.l.b16 %v375
        %v697 = vunpack.c.h.b16 %v375
        %v698 = vunpack.c.l.b16 %v376
        %v699 = vunpack.c.h.b16 %v376
        %v700 = vunpack.c.l.b16 %v377
        %v701 = vunpack.c.h.b16 %v377
        %v702 = vunpack.c.l.b16 %v378
        %v703 = vunpack.c.h.b16 %v378
        %v704 = vunpack.c.l.b16 %v379
        %v705 = vunpack.c.h.b16 %v379
        %v706 = vunpack.c.l.b16 %v380
        %v707 = vunpack.c.h.b16 %v380
        %v708 = vunpack.c.l.b16 %v381
        %v709 = vunpack.c.h.b16 %v381
        %v710 = vunpack.c.l.b16 %v382
        %v711 = vunpack.c.h.b16 %v382
        %v712 = vunpack.c.l.b16 %v383
        %v713 = vunpack.c.h.b16 %v383
        %v714 = vunpack.c.l.b16 %v384
        %v715 = vunpack.c.h.b16 %v384
        %v716 = vunpack.c.l.b16 %v385
        %v717 = vunpack.c.h.b16 %v385
        %v718 = vunpack.c.l.b16 %v386
        %v719 = vunpack.c.h.b16 %v386
        %v720 = vunpack.c.l.b16 %v387
        %v721 = vunpack.c.h.b16 %v387
        %v722 = vunpack.c.l.b16 %v388
        %v723 = vunpack.c.h.b16 %v388
        %v724 = vunpack.c.l.b16 %v389
        %v725 = vunpack.c.h.b16 %v389
        %v726 = vunpack.c.l.b16 %v390
        %v727 = vunpack.c.h.b16 %v390
        %v728 = vunpack.c.l.b16 %v391
        %v729 = vunpack.c.h.b16 %v391
        %v730 = vunpack.c.l.b16 %v392
        %v731 = vunpack.c.h.b16 %v392
        %v732 = vunpack.c.l.b16 %v393
        %v733 = vunpack.c.h.b16 %v393
        %v734 = vunpack.c.l.b16 %v394
        %v735 = vunpack.c.h.b16 %v394
        %v736 = vunpack.c.l.b16 %v395
        %v737 = vunpack.c.h.b16 %v395
        %v738 = vunpack.c.l.b16 %v396
        %v739 = vunpack.c.h.b16 %v396
        %v740 = vunpack.c.l.b16 %v397
        %v741 = vunpack.c.h.b16 %v397
        %v742 = vunpack.c.l.b16 %v398
        %v743 = vunpack.c.h.b16 %v398
        %v744 = vunpack.c.l.b16 %v399
        %v745 = vunpack.c.h.b16 %v399
        %v746 = vunpack.c.l.b16 %v400
        %v747 = vunpack.c.h.b16 %v400
        %v748 = vunpack.c.l.b16 %v401
        %v749 = vunpack.c.h.b16 %v401
        %v750 = vunpack.c.l.b16 %v402
        %v751 = vunpack.c.h.b16 %v402
        %v752 = vunpack.c.l.b16 %v403
        %v753 = vunpack.c.h.b16 %v403
        %v754 = vunpack.c.l.b16 %v404
        %v755 = vunpack.c.h.b16 %v404
        %v756 = vunpack.c.l.b16 %v405
        %v757 = vunpack.c.h.b16 %v405
        %v758 = vunpack.c.l.b16 %v406
        %v759 = vunpack.c.h.b16 %v406
        %v760 = vunpack.c.l.b16 %v407
        %v761 = vunpack.c.h.b16 %v407
        %v762 = vunpack.c.l.b16 %v408
        %v763 = vunpack.c.h.b16 %v408
        %v764 = vunpack.c.l.b16 %v409
        %v765 = vunpack.c.h.b16 %v409
        %v766 = vunpack.c.l.b16 %v410
        %v767 = vunpack.c.h.b16 %v410
        %v768 = vunpack.c.l.b16 %v411
        %v769 = vunpack.c.h.b16 %v411
        %v770 = vunpack.c.l.b16 %v412
        %v771 = vunpack.c.h.b16 %v412
        %v772 = vunpack.c.l.b16 %v413
        %v773 = vunpack.c.h.b16 %v413
        %v774 = vunpack.c.l.b16 %v414
        %v775 = vunpack.c.h.b16 %v414
        %v776 = vunpack.c.l.b16 %v415
        %v777 = vunpack.c.h.b16 %v415
        %v778 = vunpack.c.l.b16 %v416
        %v779 = vunpack.c.h.b16 %v416
        %v780 = vunpack.c.l.b16 %v417
        %v781 = vunpack.c.h.b16 %v417
        %v782 = vunpack.c.l.b16 %v418
        %v783 = vunpack.c.h.b16 %v418
        %v784 = vunpack.c.l.b16 %v419
        %v785 = vunpack.c.h.b16 %v419
        %v786 = vunpack.c.l.b16 %v420
        %v787 = vunpack.c.h.b16 %v420
        %v788 = vunpack.c.l.b16 %v421
        %v789 = vunpack.c.h.b16 %v421
        %v790 = vunpack.c.l.b16 %v422
        %v791 = vunpack.c.h.b16 %v422
        %v792 = vunpack.c.l.b16 %v423
        %v793 = vunpack.c.h.b16 %v423
        %v794 = vunpack.c.l.b16 %v424
        %v795 = vunpack.c.h.b16 %v424
        %v796 = vunpack.c.l.b16 %v425
        %v797 = vunpack.c.h.b16 %v425
        %v798 = vunpack.c.l.b16 %v426
        %v799 = vunpack.c.h.b16 %v426
        %v800 = vunpack.c.l.b16 %v427
        %v801 = vunpack.c.h.b16 %v427
        %v802 = vunpack.c.l.b16 %v428
        %v803 = vunpack.c.h.b16 %v428
        %v804 = vunpack.c.l.b16 %v429
        %v805 = vunpack.c.h.b16 %v429
        %v806 = vunpack.c.l.b16 %v430
        %v807 = vunpack.c.h.b16 %v430
        %v808 = vunpack.c.l.b16 %v431
        %v809 = vunpack.c.h.b16 %v431
        %v810 = vunpack.c.l.b16 %v432
        %v811 = vunpack.c.h.b16 %v432
        %v812 = vunpack.c.l.b16 %v433
        %v813 = vunpack.c.h.b16 %v433
        %v814 = vunpack.c.l.b16 %v434
        %v815 = vunpack.c.h.b16 %v434
        %v816 = vunpack.c.l.b16 %v435
        %v817 = vunpack.c.h.b16 %v435
        %v818 = vunpack.c.l.b16 %v436
        %v819 = vunpack.c.h.b16 %v436
        %v820 = vunpack.c.l.b16 %v437
        %v821 = vunpack.c.h.b16 %v437
        %v822 = vpack.c.b16 %v570, %v566
        %v823 = vpack.c.b16 %v571, %v567
        %v824 = vpack.c.b16 %v572, %v568
        %v825 = vpack.c.b16 %v573, %v569
        %v826 = vpack.c.b16 %v578, %v574
        %v827 = vpack.c.b16 %v579, %v575
        %v828 = vpack.c.b16 %v580, %v576
        %v829 = vpack.c.b16 %v581, %v577
        %v830 = vpack.c.b16 %v586, %v582
        %v831 = vpack.c.b16 %v587, %v583
        %v832 = vpack.c.b16 %v588, %v584
        %v833 = vpack.c.b16 %v589, %v585
        %v834 = vpack.c.b16 %v594, %v590
        %v835 = vpack.c.b16 %v595, %v591
        %v836 = vpack.c.b16 %v596, %v592
        %v837 = vpack.c.b16 %v597, %v593
        %v838 = vpack.c.b16 %v602, %v598
        %v839 = vpack.c.b16 %v603, %v599
        %v840 = vpack.c.b16 %v604, %v600
        %v841 = vpack.c.b16 %v605, %v601
        %v842 = vpack.c.b16 %v610, %v606
        %v843 = vpack.c.b16 %v611, %v607
        %v844 = vpack.c.b16 %v612, %v608
        %v845 = vpack.c.b16 %v613, %v609
        %v846 = vpack.c.b16 %v618, %v614
        %v847 = vpack.c.b16 %v619, %v615
        %v848 = vpack.c.b16 %v620, %v616
        %v849 = vpack.c.b16 %v621, %v617
        %v850 = vpack.c.b16 %v626, %v622
        %v851 = vpack.c.b16 %v627, %v623
        %v852 = vpack.c.b16 %v628, %v624
        %v853 = vpack.c.b16 %v629, %v625
        %v854 = vpack.c.b16 %v634, %v630
        %v855 = vpack.c.b16 %v635, %v631
        %v856 = vpack.c.b16 %v636, %v632
        %v857 = vpack.c.b16 %v637, %v633
        %v858 = vpack.c.b16 %v642, %v638
        %v859 = vpack.c.b16 %v643, %v639
        %v860 = vpack.c.b16 %v644, %v640
        %v861 = vpack.c.b16 %v645, %v641
        %v862 = vpack.c.b16 %v650, %v646
        %v863 = vpack.c.b16 %v651, %v647
        %v864 = vpack.c.b16 %v652, %v648
        %v865 = vpack.c.b16 %v653, %v649
        %v866 = vpack.c.b16 %v658, %v654
        %v867 = vpack.c.b16 %v659, %v655
        %v868 = vpack.c.b16 %v660, %v656
        %v869 = vpack.c.b16 %v661, %v657
        %v870 = vpack.c.b16 %v666, %v662
        %v871 = vpack.c.b16 %v667, %v663
        %v872 = vpack.c.b16 %v668, %v664
        %v873 = vpack.c.b16 %v669, %v665
        %v874 = vpack.c.b16 %v674, %v670
        %v875 = vpack.c.b16 %v675, %v671
        %v876 = vpack.c.b16 %v676, %v672
        %v877 = vpack.c.b16 %v677, %v673
        %v878 = vpack.c.b16 %v682, %v678
        %v879 = vpack.c.b16 %v683, %v679
        %v880 = vpack.c.b16 %v684, %v680
        %v881 = vpack.c.b16 %v685, %v681
        %v882 = vpack.c.b16 %v690, %v686
        %v883 = vpack.c.b16 %v691, %v687
        %v884 = vpack.c.b16 %v692, %v688
        %v885 = vpack.c.b16 %v693, %v689
        %v886 = vpack.c.b16 %v698, %v694
        %v887 = vpack.c.b16 %v699, %v695
        %v888 = vpack.c.b16 %v700, %v696
        %v889 = vpack.c.b16 %v701, %v697
        %v890 = vpack.c.b16 %v706, %v702
        %v891 = vpack.c.b16 %v707, %v703
        %v892 = vpack.c.b16 %v708, %v704
        %v893 = vpack.c.b16 %v709, %v705
        %v894 = vpack.c.b16 %v714, %v710
        %v895 = vpack.c.b16 %v715, %v711
        %v896 = vpack.c.b16 %v716, %v712
        %v897 = vpack.c.b16 %v717, %v713
        %v898 = vpack.c.b16 %v722, %v718
        %v899 = vpack.c.b16 %v723, %v719
        %v900 = vpack.c.b16 %v724, %v720
        %v901 = vpack.c.b16 %v725, %v721
        %v902 = vpack.c.b16 %v730, %v726
        %v903 = vpack.c.b16 %v731, %v727
        %v904 = vpack.c.b16 %v732, %v728
        %v905 = vpack.c.b16 %v733, %v729
        %v906 = vpack.c.b16 %v738, %v734
        %v907 = vpack.c.b16 %v739, %v735
        %v908 = vpack.c.b16 %v740, %v736
        %v909 = vpack.c.b16 %v741, %v737
        %v910 = vpack.c.b16 %v746, %v742
        %v911 = vpack.c.b16 %v747, %v743
        %v912 = vpack.c.b16 %v748, %v744
        %v913 = vpack.c.b16 %v749, %v745
        %v914 = vpack.c.b16 %v754, %v750
        %v915 = vpack.c.b16 %v755, %v751
        %v916 = vpack.c.b16 %v756, %v752
        %v917 = vpack.c.b16 %v757, %v753
        %v918 = vpack.c.b16 %v762, %v758
        %v919 = vpack.c.b16 %v763, %v759
        %v920 = vpack.c.b16 %v764, %v760
        %v921 = vpack.c.b16 %v765, %v761
        %v922 = vpack.c.b16 %v770, %v766
        %v923 = vpack.c.b16 %v771, %v767
        %v924 = vpack.c.b16 %v772, %v768
        %v925 = vpack.c.b16 %v773, %v769
        %v926 = vpack.c.b16 %v778, %v774
        %v927 = vpack.c.b16 %v779, %v775
        %v928 = vpack.c.b16 %v780, %v776
        %v929 = vpack.c.b16 %v781, %v777
        %v930 = vpack.c.b16 %v786, %v782
        %v931 = vpack.c.b16 %v787, %v783
        %v932 = vpack.c.b16 %v788, %v784
        %v933 = vpack.c.b16 %v789, %v785
        %v934 = vpack.c.b16 %v794, %v790
        %v935 = vpack.c.b16 %v795, %v791
        %v936 = vpack.c.b16 %v796, %v792
        %v937 = vpack.c.b16 %v797, %v793
        %v938 = vpack.c.b16 %v802, %v798
        %v939 = vpack.c.b16 %v803, %v799
        %v940 = vpack.c.b16 %v804, %v800
        %v941 = vpack.c.b16 %v805, %v801
        %v942 = vpack.c.b16 %v810, %v806
        %v943 = vpack.c.b16 %v811, %v807
        %v944 = vpack.c.b16 %v812, %v808
        %v945 = vpack.c.b16 %v813, %v809
        %v946 = vpack.c.b16 %v818, %v814
        %v947 = vpack.c.b16 %v819, %v815
        %v948 = vpack.c.b16 %v820, %v816
        %v949 = vpack.c.b16 %v821, %v817
        %1078 = vmatpush.bf16.msra.mxu0 %v850
        %1079 = vmatpush.bf16.msra.mxu0 %v846
        %1080 = vmatpush.bf16.msra.mxu0 %v842
        %1081 = vmatpush.bf16.msra.mxu0 %v838
        %1082 = vmatpush.bf16.msra.mxu0 %v834
        %1083 = vmatpush.bf16.msra.mxu0 %v830
        %1084 = vmatpush.bf16.msra.mxu0 %v826
        %1085 = vmatpush.bf16.msra.mxu0 %v822
        %1086 = vmatmul.bf16.gmra.mxu0 %v302
        %v1087 = vpop.f32.mrf.mxu0
        %v1088 = vadd.f32 0.0, %v1087
        %v1089 = vpop.f32.mrf.mxu0
        %v1090 = vadd.f32 0.0, %v1089
        %1091 = vmatmul.bf16.gmra.mxu0 %v306
        %v1092 = vpop.f32.mrf.mxu0
        %v1093 = vadd.f32 0.0, %v1092
        %v1094 = vpop.f32.mrf.mxu0
        %v1095 = vadd.f32 0.0, %v1094
        %1096 = vdwg.mxu0
        %1097 = vmatpush.bf16.msra.mxu0 %v882
        %1098 = vmatpush.bf16.msra.mxu0 %v878
        %1099 = vmatpush.bf16.msra.mxu0 %v874
        %1100 = vmatpush.bf16.msra.mxu0 %v870
        %1101 = vmatpush.bf16.msra.mxu0 %v866
        %1102 = vmatpush.bf16.msra.mxu0 %v862
        %1103 = vmatpush.bf16.msra.mxu0 %v858
        %1104 = vmatpush.bf16.msra.mxu0 %v854
        %1105 = vmatmul.bf16.gmra.mxu0 %v303
        %v1106 = vpop.f32.mrf.mxu0
        %v1107 = vadd.f32 %v1088, %v1106
        %v1108 = vpop.f32.mrf.mxu0
        %v1109 = vadd.f32 %v1090, %v1108
        %1110 = vmatmul.bf16.gmra.mxu0 %v307
        %v1111 = vpop.f32.mrf.mxu0
        %v1112 = vadd.f32 %v1093, %v1111
        %v1113 = vpop.f32.mrf.mxu0
        %v1114 = vadd.f32 %v1095, %v1113
        %1115 = vdwg.mxu0
        %1116 = vmatpush.bf16.msra.mxu0 %v914
        %1117 = vmatpush.bf16.msra.mxu0 %v910
        %1118 = vmatpush.bf16.msra.mxu0 %v906
        %1119 = vmatpush.bf16.msra.mxu0 %v902
        %1120 = vmatpush.bf16.msra.mxu0 %v898
        %1121 = vmatpush.bf16.msra.mxu0 %v894
        %1122 = vmatpush.bf16.msra.mxu0 %v890
        %1123 = vmatpush.bf16.msra.mxu0 %v886
        %1124 = vmatmul.bf16.gmra.mxu0 %v304
        %v1125 = vpop.f32.mrf.mxu0
        %v1126 = vadd.f32 %v1107, %v1125
        %v1127 = vpop.f32.mrf.mxu0
        %v1128 = vadd.f32 %v1109, %v1127
        %1129 = vmatmul.bf16.gmra.mxu0 %v308
        %v1130 = vpop.f32.mrf.mxu0
        %v1131 = vadd.f32 %v1112, %v1130
        %v1132 = vpop.f32.mrf.mxu0
        %v1133 = vadd.f32 %v1114, %v1132
        %1134 = vdwg.mxu0
        %1135 = vmatpush.bf16.msra.mxu0 %v946
        %1136 = vmatpush.bf16.msra.mxu0 %v942
        %1137 = vmatpush.bf16.msra.mxu0 %v938
        %1138 = vmatpush.bf16.msra.mxu0 %v934
        %1139 = vmatpush.bf16.msra.mxu0 %v930
        %1140 = vmatpush.bf16.msra.mxu0 %v926
        %1141 = vmatpush.bf16.msra.mxu0 %v922
        %1142 = vmatpush.bf16.msra.mxu0 %v918
        %1143 = vmatmul.bf16.gmra.mxu0 %v305
        %v1144 = vpop.f32.mrf.mxu0
        %v1145 = vadd.f32 %v1126, %v1144
        %v1146 = vpop.f32.mrf.mxu0
        %v1147 = vadd.f32 %v1128, %v1146
        %1148 = vmatmul.bf16.gmra.mxu0 %v309
        %v1149 = vpop.f32.mrf.mxu0
        %v1150 = vadd.f32 %v1131, %v1149
        %v1151 = vpop.f32.mrf.mxu0
        %v1152 = vadd.f32 %v1133, %v1151
        %1153 = vdwg.mxu0
        %1154 = vmatpush.bf16.msra.mxu0 %v851
        %1155 = vmatpush.bf16.msra.mxu0 %v847
        %1156 = vmatpush.bf16.msra.mxu0 %v843
        %1157 = vmatpush.bf16.msra.mxu0 %v839
        %1158 = vmatpush.bf16.msra.mxu0 %v835
        %1159 = vmatpush.bf16.msra.mxu0 %v831
        %1160 = vmatpush.bf16.msra.mxu0 %v827
        %1161 = vmatpush.bf16.msra.mxu0 %v823
        %1162 = vmatmul.bf16.gmra.mxu0 %v302
        %v1163 = vpop.f32.mrf.mxu0
        %v1164 = vadd.f32 0.0, %v1163
        %v1165 = vpop.f32.mrf.mxu0
        %v1166 = vadd.f32 0.0, %v1165
        %1167 = vmatmul.bf16.gmra.mxu0 %v306
        %v1168 = vpop.f32.mrf.mxu0
        %v1169 = vadd.f32 0.0, %v1168
        %v1170 = vpop.f32.mrf.mxu0
        %v1171 = vadd.f32 0.0, %v1170
        %1172 = vdwg.mxu0
        %1173 = vmatpush.bf16.msra.mxu0 %v883
        %1174 = vmatpush.bf16.msra.mxu0 %v879
        %1175 = vmatpush.bf16.msra.mxu0 %v875
        %1176 = vmatpush.bf16.msra.mxu0 %v871
        %1177 = vmatpush.bf16.msra.mxu0 %v867
        %1178 = vmatpush.bf16.msra.mxu0 %v863
        %1179 = vmatpush.bf16.msra.mxu0 %v859
        %1180 = vmatpush.bf16.msra.mxu0 %v855
        %1181 = vmatmul.bf16.gmra.mxu0 %v303
        %v1182 = vpop.f32.mrf.mxu0
        %v1183 = vadd.f32 %v1164, %v1182
        %v1184 = vpop.f32.mrf.mxu0
        %v1185 = vadd.f32 %v1166, %v1184
        %1186 = vmatmul.bf16.gmra.mxu0 %v307
        %v1187 = vpop.f32.mrf.mxu0
        %v1188 = vadd.f32 %v1169, %v1187
        %v1189 = vpop.f32.mrf.mxu0
        %v1190 = vadd.f32 %v1171, %v1189
        %1191 = vdwg.mxu0
        %1192 = vmatpush.bf16.msra.mxu0 %v915
        %1193 = vmatpush.bf16.msra.mxu0 %v911
        %1194 = vmatpush.bf16.msra.mxu0 %v907
        %1195 = vmatpush.bf16.msra.mxu0 %v903
        %1196 = vmatpush.bf16.msra.mxu0 %v899
        %1197 = vmatpush.bf16.msra.mxu0 %v895
        %1198 = vmatpush.bf16.msra.mxu0 %v891
        %1199 = vmatpush.bf16.msra.mxu0 %v887
        %1200 = vmatmul.bf16.gmra.mxu0 %v304
        %v1201 = vpop.f32.mrf.mxu0
        %v1202 = vadd.f32 %v1183, %v1201
        %v1203 = vpop.f32.mrf.mxu0
        %v1204 = vadd.f32 %v1185, %v1203
        %1205 = vmatmul.bf16.gmra.mxu0 %v308
        %v1206 = vpop.f32.mrf.mxu0
        %v1207 = vadd.f32 %v1188, %v1206
        %v1208 = vpop.f32.mrf.mxu0
        %v1209 = vadd.f32 %v1190, %v1208
        %1210 = vdwg.mxu0
        %1211 = vmatpush.bf16.msra.mxu0 %v947
        %1212 = vmatpush.bf16.msra.mxu0 %v943
        %1213 = vmatpush.bf16.msra.mxu0 %v939
        %1214 = vmatpush.bf16.msra.mxu0 %v935
        %1215 = vmatpush.bf16.msra.mxu0 %v931
        %1216 = vmatpush.bf16.msra.mxu0 %v927
        %1217 = vmatpush.bf16.msra.mxu0 %v923
        %1218 = vmatpush.bf16.msra.mxu0 %v919
        %1219 = vmatmul.bf16.gmra.mxu0 %v305
        %v1220 = vpop.f32.mrf.mxu0
        %v1221 = vadd.f32 %v1202, %v1220
        %v1222 = vpop.f32.mrf.mxu0
        %v1223 = vadd.f32 %v1204, %v1222
        %1224 = vmatmul.bf16.gmra.mxu0 %v309
        %v1225 = vpop.f32.mrf.mxu0
        %v1226 = vadd.f32 %v1207, %v1225
        %v1227 = vpop.f32.mrf.mxu0
        %v1228 = vadd.f32 %v1209, %v1227
        %1229 = vdwg.mxu0
        %1230 = vmatpush.bf16.msra.mxu0 %v852
        %1231 = vmatpush.bf16.msra.mxu0 %v848
        %1232 = vmatpush.bf16.msra.mxu0 %v844
        %1233 = vmatpush.bf16.msra.mxu0 %v840
        %1234 = vmatpush.bf16.msra.mxu0 %v836
        %1235 = vmatpush.bf16.msra.mxu0 %v832
        %1236 = vmatpush.bf16.msra.mxu0 %v828
        %1237 = vmatpush.bf16.msra.mxu0 %v824
        %1238 = vmatmul.bf16.gmra.mxu0 %v302
        %v1239 = vpop.f32.mrf.mxu0
        %v1240 = vadd.f32 0.0, %v1239
        %v1241 = vpop.f32.mrf.mxu0
        %v1242 = vadd.f32 0.0, %v1241
        %1243 = vmatmul.bf16.gmra.mxu0 %v306
        %v1244 = vpop.f32.mrf.mxu0
        %v1245 = vadd.f32 0.0, %v1244
        %v1246 = vpop.f32.mrf.mxu0
        %v1247 = vadd.f32 0.0, %v1246
        %1248 = vdwg.mxu0
        %1249 = vmatpush.bf16.msra.mxu0 %v884
        %1250 = vmatpush.bf16.msra.mxu0 %v880
        %1251 = vmatpush.bf16.msra.mxu0 %v876
        %1252 = vmatpush.bf16.msra.mxu0 %v872
        %1253 = vmatpush.bf16.msra.mxu0 %v868
        %1254 = vmatpush.bf16.msra.mxu0 %v864
        %1255 = vmatpush.bf16.msra.mxu0 %v860
        %1256 = vmatpush.bf16.msra.mxu0 %v856
        %1257 = vmatmul.bf16.gmra.mxu0 %v303
        %v1258 = vpop.f32.mrf.mxu0
        %v1259 = vadd.f32 %v1240, %v1258
        %v1260 = vpop.f32.mrf.mxu0
        %v1261 = vadd.f32 %v1242, %v1260
        %1262 = vmatmul.bf16.gmra.mxu0 %v307
        %v1263 = vpop.f32.mrf.mxu0
        %v1264 = vadd.f32 %v1245, %v1263
        %v1265 = vpop.f32.mrf.mxu0
        %v1266 = vadd.f32 %v1247, %v1265
        %1267 = vdwg.mxu0
        %1268 = vmatpush.bf16.msra.mxu0 %v916
        %1269 = vmatpush.bf16.msra.mxu0 %v912
        %1270 = vmatpush.bf16.msra.mxu0 %v908
        %1271 = vmatpush.bf16.msra.mxu0 %v904
        %1272 = vmatpush.bf16.msra.mxu0 %v900
        %1273 = vmatpush.bf16.msra.mxu0 %v896
        %1274 = vmatpush.bf16.msra.mxu0 %v892
        %1275 = vmatpush.bf16.msra.mxu0 %v888
        %1276 = vmatmul.bf16.gmra.mxu0 %v304
        %v1277 = vpop.f32.mrf.mxu0
        %v1278 = vadd.f32 %v1259, %v1277
        %v1279 = vpop.f32.mrf.mxu0
        %v1280 = vadd.f32 %v1261, %v1279
        %1281 = vmatmul.bf16.gmra.mxu0 %v308
        %v1282 = vpop.f32.mrf.mxu0
        %v1283 = vadd.f32 %v1264, %v1282
        %v1284 = vpop.f32.mrf.mxu0
        %v1285 = vadd.f32 %v1266, %v1284
        %1286 = vdwg.mxu0
        %1287 = vmatpush.bf16.msra.mxu0 %v948
        %1288 = vmatpush.bf16.msra.mxu0 %v944
        %1289 = vmatpush.bf16.msra.mxu0 %v940
        %1290 = vmatpush.bf16.msra.mxu0 %v936
        %1291 = vmatpush.bf16.msra.mxu0 %v932
        %1292 = vmatpush.bf16.msra.mxu0 %v928
        %1293 = vmatpush.bf16.msra.mxu0 %v924
        %1294 = vmatpush.bf16.msra.mxu0 %v920
        %1295 = vmatmul.bf16.gmra.mxu0 %v305
        %v1296 = vpop.f32.mrf.mxu0
        %v1297 = vadd.f32 %v1278, %v1296
        %v1298 = vpop.f32.mrf.mxu0
        %v1299 = vadd.f32 %v1280, %v1298
        %1300 = vmatmul.bf16.gmra.mxu0 %v309
        %v1301 = vpop.f32.mrf.mxu0
        %v1302 = vadd.f32 %v1283, %v1301
        %v1303 = vpop.f32.mrf.mxu0
        %v1304 = vadd.f32 %v1285, %v1303
        %1305 = vdwg.mxu0
        %1306 = vmatpush.bf16.msra.mxu0 %v853
        %1307 = vmatpush.bf16.msra.mxu0 %v849
        %1308 = vmatpush.bf16.msra.mxu0 %v845
        %1309 = vmatpush.bf16.msra.mxu0 %v841
        %1310 = vmatpush.bf16.msra.mxu0 %v837
        %1311 = vmatpush.bf16.msra.mxu0 %v833
        %1312 = vmatpush.bf16.msra.mxu0 %v829
        %1313 = vmatpush.bf16.msra.mxu0 %v825
        %1314 = vmatmul.bf16.gmra.mxu0 %v302
        %v1315 = vpop.f32.mrf.mxu0
        %v1316 = vadd.f32 0.0, %v1315
        %v1317 = vpop.f32.mrf.mxu0
        %v1318 = vadd.f32 0.0, %v1317
        %1319 = vmatmul.bf16.gmra.mxu0 %v306
        %v1320 = vpop.f32.mrf.mxu0
        %v1321 = vadd.f32 0.0, %v1320
        %v1322 = vpop.f32.mrf.mxu0
        %v1323 = vadd.f32 0.0, %v1322
        %1324 = vdwg.mxu0
        %1325 = vmatpush.bf16.msra.mxu0 %v885
        %1326 = vmatpush.bf16.msra.mxu0 %v881
        %1327 = vmatpush.bf16.msra.mxu0 %v877
        %1328 = vmatpush.bf16.msra.mxu0 %v873
        %1329 = vmatpush.bf16.msra.mxu0 %v869
        %1330 = vmatpush.bf16.msra.mxu0 %v865
        %1331 = vmatpush.bf16.msra.mxu0 %v861
        %1332 = vmatpush.bf16.msra.mxu0 %v857
        %1333 = vmatmul.bf16.gmra.mxu0 %v303
        %v1334 = vpop.f32.mrf.mxu0
        %v1335 = vadd.f32 %v1316, %v1334
        %v1336 = vpop.f32.mrf.mxu0
        %v1337 = vadd.f32 %v1318, %v1336
        %1338 = vmatmul.bf16.gmra.mxu0 %v307
        %v1339 = vpop.f32.mrf.mxu0
        %v1340 = vadd.f32 %v1321, %v1339
        %v1341 = vpop.f32.mrf.mxu0
        %v1342 = vadd.f32 %v1323, %v1341
        %1343 = vdwg.mxu0
        %1344 = vmatpush.bf16.msra.mxu0 %v917
        %1345 = vmatpush.bf16.msra.mxu0 %v913
        %1346 = vmatpush.bf16.msra.mxu0 %v909
        %1347 = vmatpush.bf16.msra.mxu0 %v905
        %1348 = vmatpush.bf16.msra.mxu0 %v901
        %1349 = vmatpush.bf16.msra.mxu0 %v897
        %1350 = vmatpush.bf16.msra.mxu0 %v893
        %1351 = vmatpush.bf16.msra.mxu0 %v889
        %1352 = vmatmul.bf16.gmra.mxu0 %v304
        %v1353 = vpop.f32.mrf.mxu0
        %v1354 = vadd.f32 %v1335, %v1353
        %v1355 = vpop.f32.mrf.mxu0
        %v1356 = vadd.f32 %v1337, %v1355
        %1357 = vmatmul.bf16.gmra.mxu0 %v308
        %v1358 = vpop.f32.mrf.mxu0
        %v1359 = vadd.f32 %v1340, %v1358
        %v1360 = vpop.f32.mrf.mxu0
        %v1361 = vadd.f32 %v1342, %v1360
        %1362 = vdwg.mxu0
        %1363 = vmatpush.bf16.msra.mxu0 %v949
        %1364 = vmatpush.bf16.msra.mxu0 %v945
        %1365 = vmatpush.bf16.msra.mxu0 %v941
        %1366 = vmatpush.bf16.msra.mxu0 %v937
        %1367 = vmatpush.bf16.msra.mxu0 %v933
        %1368 = vmatpush.bf16.msra.mxu0 %v929
        %1369 = vmatpush.bf16.msra.mxu0 %v925
        %1370 = vmatpush.bf16.msra.mxu0 %v921
        %1371 = vmatmul.bf16.gmra.mxu0 %v305
        %v1372 = vpop.f32.mrf.mxu0
        %v1373 = vadd.f32 %v1354, %v1372
        %v1374 = vpop.f32.mrf.mxu0
        %v1375 = vadd.f32 %v1356, %v1374
        %1376 = vmatmul.bf16.gmra.mxu0 %v309
        %v1377 = vpop.f32.mrf.mxu0
        %v1378 = vadd.f32 %v1359, %v1377
        %v1379 = vpop.f32.mrf.mxu0
        %v1380 = vadd.f32 %v1361, %v1379
        %1381 = vdwg.mxu0
        %1382 = vst [vmem:[%s233] sm:$0xff] %v1145
        %1383 = vst [vmem:[%s233 + $0x8] sm:$0xff] %v1221
        %1384 = vst [vmem:[%s233 + $0x10] sm:$0xff] %v1297
        %1385 = vst [vmem:[%s233 + $0x18] sm:$0xff] %v1373
        %1386 = vst [vmem:[%s233 + $0x20] sm:$0xff] %v1147
        %1387 = vst [vmem:[%s233 + $0x28] sm:$0xff] %v1223
        %1388 = vst [vmem:[%s233 + $0x30] sm:$0xff] %v1299
        %1389 = vst [vmem:[%s233 + $0x38] sm:$0xff] %v1375
        %1390 = vst [vmem:[%s233 + $0x40] sm:$0xff] %v1150
        %1391 = vst [vmem:[%s233 + $0x48] sm:$0xff] %v1226
        %1392 = vst [vmem:[%s233 + $0x50] sm:$0xff] %v1302
        %1393 = vst [vmem:[%s233 + $0x58] sm:$0xff] %v1378
        %1394 = vst [vmem:[%s233 + $0x60] sm:$0xff] %v1152
        %1395 = vst [vmem:[%s233 + $0x68] sm:$0xff] %v1228
        %1396 = vst [vmem:[%s233 + $0x70] sm:$0xff] %v1304
        %1397 = vst [vmem:[%s233 + $0x78] sm:$0xff] %v1380
        %s1398 = sand.u32 %s113, 1
        %s1399 = sand.u32 %s113, 1
        %s1400 = smul.addr %s1399, 128
        %s1401 = scalar_lea.vmem [#allocation6], %s1400
        // Predicated region
        $region41: #{dec_forward.8} parent=31 // pred_check
          %p1402 = pneg %p123
        $region42: #{dec_forward.8} parent=31 // pred_check_branch
          %1404 = sbr.rel (%p1402) target = $region44
        $region43: #{dec_forward.8} parent=31 // pred_region
          %s1405 = smul.u32 4, %s22
          %s1406 = smul.u32 4, %s23
          %s1407 = smul.addr %s1405, 8
          %s1408 = sadd.s32 %s1406, %s1407
          %s1409 = smul.addr %s1408, 8
          %s1410 = scalar_lea.vmem %s3, %s1409
          // Predicated region
          $region45: #{dec_forward.8} parent=43 // pred_check
            _
          $region46: #{dec_forward.8} parent=43 // pred_check_branch
            %1412 = sbr.rel (0) target = $region48
          $region47: #{dec_forward.8} parent=43 // pred_region
            // Predicated region
            $region49: #{dec_forward.8} parent=47 // pred_check
              _
            $region50: #{dec_forward.8} parent=47 // pred_check_branch
              %1414 = sbr.rel (0) target = $region52
            $region51: #{dec_forward.8} parent=47 // pred_region
              loop: start=0, step=1, limit=1
              $region53: #{dec_forward.8} parent=51 // loop_pre_header
                _
              $region54: #{dec_forward.8} parent=51 // loop_header
                %s1416 = sphi 0, %s1420
                %p1417 = scmp.ge.s32.totalorder %s1416, 1
                %s1421 = sphi %s1401, %s1401
                %s1422 = sphi %s1410, %s1410
              $region55: #{dec_forward.8} parent=51 // loop_header_branch
                %1419 = sbr.rel (%p1417) target = $region59
              $region56: #{dec_forward.8} parent=51 // loop_body
                %v1423 = vld [vmem:[%s1421] sm:$0xff]
                %1424 = vst [vmem:[%s1422] sm:$0xff] %v1423
                %v1425 = vld [vmem:[%s1421 + $0x8] sm:$0xff]
                %1426 = vst [vmem:[%s1422 + $0x8] sm:$0xff] %v1425
                %v1427 = vld [vmem:[%s1421 + $0x10] sm:$0xff]
                %1428 = vst [vmem:[%s1422 + $0x10] sm:$0xff] %v1427
                %v1429 = vld [vmem:[%s1421 + $0x18] sm:$0xff]
                %1430 = vst [vmem:[%s1422 + $0x18] sm:$0xff] %v1429
                %v1431 = vld [vmem:[%s1421 + $0x20] sm:$0xff]
                %1432 = vst [vmem:[%s1422 + $0x40] sm:$0xff] %v1431
                %v1433 = vld [vmem:[%s1421 + $0x28] sm:$0xff]
                %1434 = vst [vmem:[%s1422 + $0x48] sm:$0xff] %v1433
                %v1435 = vld [vmem:[%s1421 + $0x30] sm:$0xff]
                %1436 = vst [vmem:[%s1422 + $0x50] sm:$0xff] %v1435
                %v1437 = vld [vmem:[%s1421 + $0x38] sm:$0xff]
                %1438 = vst [vmem:[%s1422 + $0x58] sm:$0xff] %v1437
                %v1439 = vld [vmem:[%s1421 + $0x40] sm:$0xff]
                %1440 = vst [vmem:[%s1422 + $0x80] sm:$0xff] %v1439
                %v1441 = vld [vmem:[%s1421 + $0x48] sm:$0xff]
                %1442 = vst [vmem:[%s1422 + $0x88] sm:$0xff] %v1441
                %v1443 = vld [vmem:[%s1421 + $0x50] sm:$0xff]
                %1444 = vst [vmem:[%s1422 + $0x90] sm:$0xff] %v1443
                %v1445 = vld [vmem:[%s1421 + $0x58] sm:$0xff]
                %1446 = vst [vmem:[%s1422 + $0x98] sm:$0xff] %v1445
                %v1447 = vld [vmem:[%s1421 + $0x60] sm:$0xff]
                %1448 = vst [vmem:[%s1422 + $0xc0] sm:$0xff] %v1447
                %v1449 = vld [vmem:[%s1421 + $0x68] sm:$0xff]
                %1450 = vst [vmem:[%s1422 + $0xc8] sm:$0xff] %v1449
                %v1451 = vld [vmem:[%s1421 + $0x70] sm:$0xff]
                %1452 = vst [vmem:[%s1422 + $0xd0] sm:$0xff] %v1451
                %v1453 = vld [vmem:[%s1421 + $0x78] sm:$0xff]
                %1454 = vst [vmem:[%s1422 + $0xd8] sm:$0xff] %v1453
              $region57: #{dec_forward.8} parent=51 // loop_footer
                %s1420 = sadd.s32 1, %s1416
              $region58: #{dec_forward.8} parent=51 // loop_footer_branch
                %1415 = sbr.rel target = $region54
              $region59: #{dec_forward.8} parent=51 // loop_exit
                _
            $region52: #{dec_forward.8} parent=47 // pred_fallthru
              _
            // Predicated region
            $region60: #{dec_forward.8} parent=47 // pred_check
              _
            $region61: #{dec_forward.8} parent=47 // pred_check_branch
              %1456 = sbr.rel target = $region63
            $region62: #{dec_forward.8} parent=47 // pred_region
              _
            $region63: #{dec_forward.8} parent=47 // pred_fallthru
              _
          $region48: #{dec_forward.8} parent=43 // pred_fallthru
            _
          %1457 = vnop
        $region44: #{dec_forward.8} parent=31 // pred_fallthru
          _
      $region32: #{dec_forward.8} parent=5 // pred_fallthru
        _
      %p1458 = scmp.le.s32.totalorder 2, %s13
      // Predicated region
      $region64: #{dec_forward.8} parent=5 // pred_check
        %p1459 = pneg %p1458
      $region65: #{dec_forward.8} parent=5 // pred_check_branch
        %1461 = sbr.rel (%p1459) target = $region67
      $region66: #{dec_forward.8} parent=5 // pred_region
        %s1462 = ssub.s32 %s13, 2
        // Predicated region
        $region68: #{dec_forward.8} parent=66 // pred_check
          %p1463 = pneg %p129
        $region69: #{dec_forward.8} parent=66 // pred_check_branch
          %1465 = sbr.rel (%p1463) target = $region71
        $region70: #{dec_forward.8} parent=66 // pred_region
          %s1466 = sand.u32 %s114, 1
          %s1467 = sand.u32 %s114, 1
          %s1468 = smul.addr %s1467, 128
          %s1469 = scalar_lea.vmem [#allocation6], %s1468
        $region71: #{dec_forward.8} parent=66 // pred_fallthru
          _
      $region67: #{dec_forward.8} parent=5 // pred_fallthru
        _
    $region6: #{dec_forward.8} parent=1 // loop_footer
      %s17 = sadd.s32 1, %s13
    $region7: #{dec_forward.8} parent=1 // loop_footer_branch
      %12 = sbr.rel target = $region3
    $region8: #{dec_forward.8} parent=1 // loop_exit
      _
    %1470 = vsyncpa [#allocation3], 1
    %s1471 = scalar_lea.sflag [#allocation3], 1
    %1472 = vsyncpa %s1471, 1
    %1473 = vsyncpa [#allocation5], 1
    %s1474 = scalar_lea.sflag [#allocation5], 1
    %1475 = vsyncpa %s1474, 1

// kernel: dec_forward.9
$region0: #{dec_forward.9}
  #allocation0 [shape = 'u32[]', space=smem, size = 0x4, offset = 0x4, fixed_abs, tag = 'smem constant byte address 0x4 - core index']
  #allocation1 [shape = 'u32[72,128]{1,0:T(1,128)}', space=vmem, size = 0x9000, scoped, tag = 'internal scratch']
  %s0 = inlined_call_operand.vmem [shape: f32[64,256], index: 0, kind: input, shape index: {}]
  %s1 = inlined_call_operand.vmem [shape: f32[1,256], index: 1, kind: input, shape index: {}]
  %s2 = inlined_call_operand.vmem [shape: bf16[256,512], index: 2, kind: input, shape index: {}]
  %s3 = inlined_call_operand.vmem [shape: f32[64,512], index: 3, kind: output, shape index: {}]
  %s4 = sld [smem:[#allocation0]]
  $region102: #{dec_forward.9} parent=0
    _
  %s6 = ssub.s32 1, %s4
  %s7 = scalar_select 0, %s6, %s4
  $region1: #{dec_forward.9} parent=0
    #allocation2 [shape = 'u8[262144]{0}', space=vmem, size = 0x40000, scoped, tag = 'input window, operand 2']
    #allocation3 [shape = 'u8[131072]{0}', space=vmem, size = 0x20000, scoped, tag = 'output window, operand 0']
    loop: start=0, step=1, limit=4
    $region2: #{dec_forward.9} parent=1 // loop_pre_header
      _
    $region3: #{dec_forward.9} parent=1 // loop_header
      %s9 = sphi 0, %s13
      %p10 = scmp.ge.s32.totalorder %s9, 4
      %s16 = sphi 0, %s28
      %s17 = sphi 0, %s24
      %s18 = sphi 0, %s16
      %s19 = sphi 0, %s17
      %s20 = sphi 0, %s18
      %s21 = sphi 0, %s19
      %s31 = sphi 0, %s33
      %s34 = sphi 0, %s31
      %s35 = sphi 0, %s34
      %s51 = sphi 0, %s35
      %s55 = sphi 0, %s55
      %s57 = sphi 0, %s55
      %s58 = sphi 0, %s57
      %s72 = sphi 0, %s58
      %s78 = sphi 0, %s80
      %s81 = sphi 0, %s78
      %s82 = sphi 0, %s81
      %s98 = sphi 0, %s82
      %s106 = sphi 0, %s108
      %s109 = sphi 0, %s106
      %s110 = sphi 0, %s109
      %s126 = sphi 0, %s110
    $region4: #{dec_forward.9} parent=1 // loop_header_branch
      %12 = sbr.rel (%p10) target = $region8
    $region5: #{dec_forward.9} parent=1 // loop_body
      %s14 = ssub.s32 %s9, 1
      %s15 = ssub.s32 %s9, 2
      %s22 = sadd.s32 1, %s17
      %p23 = scmp.ge.s32.totalorder %s22, 2
      %s24 = scalar_select %p23, 0, %s22
      %s25 = sadd.s32 1, %s16
      %s26 = scalar_select %p23, %s25, %s16
      %p27 = scmp.ge.s32.totalorder %s26, 1
      %s28 = scalar_select %p27, 0, %s26
      %s29 = ssub.s32 %s16, %s28
      %p30 = scmp.eq.s32.totalorder %s29, 0
      %s32 = sadd.s32 %s31, 1
      %s33 = scalar_select %p30, %s31, %s32
      %p36 = pneg %p30
      %p37 = scmp.eq.s32.totalorder %s9, 1
      %p38 = por %p36, %p37
      %p39 = scmp.ne.s32.totalorder %s31, %s34
      %p40 = scmp.eq.s32.totalorder %s9, 0
      %p41 = por %p39, %p40
      %p42 = scmp.ne.s32.totalorder %s31, %s34
      %p43 = scmp.eq.s32.totalorder %s14, 1
      %p44 = por %p42, %p43
      %p45 = scmp.ne.s32.totalorder %s34, %s35
      %p46 = scmp.eq.s32.totalorder %s14, 0
      %p47 = por %p45, %p46
      %p48 = scmp.ne.s32.totalorder %s34, %s35
      %p49 = scmp.eq.s32.totalorder %s15, 1
      %p50 = por %p48, %p49
      %p52 = scmp.ne.s32.totalorder %s35, %s51
      %p53 = scmp.eq.s32.totalorder %s15, 0
      %p54 = por %p52, %p53
      %s56 = sadd.s32 %s55, 1
      %p59 = scmp.eq.s32.totalorder %s9, 1
      %p60 = scmp.ne.s32.totalorder %s55, %s57
      %p61 = scmp.eq.s32.totalorder %s9, 0
      %p62 = por %p60, %p61
      %p63 = scmp.ne.s32.totalorder %s55, %s57
      %p64 = scmp.eq.s32.totalorder %s14, 1
      %p65 = por %p63, %p64
      %p66 = scmp.ne.s32.totalorder %s57, %s58
      %p67 = scmp.eq.s32.totalorder %s14, 0
      %p68 = por %p66, %p67
      %p69 = scmp.ne.s32.totalorder %s57, %s58
      %p70 = scmp.eq.s32.totalorder %s15, 1
      %p71 = por %p69, %p70
      %p73 = scmp.ne.s32.totalorder %s58, %s72
      %p74 = scmp.eq.s32.totalorder %s15, 0
      %p75 = por %p73, %p74
      %s76 = ssub.s32 %s17, %s24
      %p77 = scmp.eq.s32.totalorder %s76, 0
      %s79 = sadd.s32 %s78, 1
      %s80 = scalar_select %p77, %s78, %s79
      %p83 = pneg %p77
      %p84 = scmp.eq.s32.totalorder %s9, 1
      %p85 = por %p83, %p84
      %p86 = scmp.ne.s32.totalorder %s78, %s81
      %p87 = scmp.eq.s32.totalorder %s9, 0
      %p88 = por %p86, %p87
      %p89 = scmp.ne.s32.totalorder %s78, %s81
      %p90 = scmp.eq.s32.totalorder %s14, 1
      %p91 = por %p89, %p90
      %p92 = scmp.ne.s32.totalorder %s81, %s82
      %p93 = scmp.eq.s32.totalorder %s14, 0
      %p94 = por %p92, %p93
      %p95 = scmp.ne.s32.totalorder %s81, %s82
      %p96 = scmp.eq.s32.totalorder %s15, 1
      %p97 = por %p95, %p96
      %p99 = scmp.ne.s32.totalorder %s82, %s98
      %p100 = scmp.eq.s32.totalorder %s15, 0
      %p101 = por %p99, %p100
      %s102 = ssub.s32 %s16, %s28
      %s103 = ssub.s32 %s17, %s24
      %s104 = sor.u32 %s102, %s103
      %p105 = scmp.eq.s32.totalorder %s104, 0
      %s107 = sadd.s32 %s106, 1
      %s108 = scalar_select %p105, %s106, %s107
      %p111 = pneg %p105
      %p112 = scmp.eq.s32.totalorder %s9, 1
      %p113 = por %p111, %p112
      %p114 = scmp.ne.s32.totalorder %s106, %s109
      %p115 = scmp.eq.s32.totalorder %s9, 0
      %p116 = por %p114, %p115
      %p117 = scmp.ne.s32.totalorder %s106, %s109
      %p118 = scmp.eq.s32.totalorder %s14, 1
      %p119 = por %p117, %p118
      %p120 = scmp.ne.s32.totalorder %s109, %s110
      %p121 = scmp.eq.s32.totalorder %s14, 0
      %p122 = por %p120, %p121
      %p123 = scmp.ne.s32.totalorder %s109, %s110
      %p124 = scmp.eq.s32.totalorder %s15, 1
      %p125 = por %p123, %p124
      %p127 = scmp.ne.s32.totalorder %s110, %s126
      %p128 = scmp.eq.s32.totalorder %s15, 0
      %p129 = por %p127, %p128
      %p130 = scmp.le.s32.totalorder 1, %s9
      %p131 = scmp.lt.s32.totalorder %s9, 3
      %p132 = pnand %p130, %p131
      %p133 = pneg %p132
      // Predicated region
      $region9: #{dec_forward.9} parent=5 // pred_check
        _
      $region10: #{dec_forward.9} parent=5 // pred_check_branch
        %135 = sbr.rel (%p132) target = $region12
      $region11: #{dec_forward.9} parent=5 // pred_region
        %s136 = ssub.s32 %s9, 1
        // Predicated region
        $region13: #{dec_forward.9} parent=11 // pred_check
          %p137 = pneg %p47
        $region14: #{dec_forward.9} parent=11 // pred_check_branch
          %139 = sbr.rel (%p137) target = $region16
        $region15: #{dec_forward.9} parent=11 // pred_region
          %s140 = smul.u32 8, %s18
          %p141 = scmp.lt.s32.totalorder %s140, 7
          %s142 = scalar_select %p141, %s140, 7
          %s143 = smul.addr %s142, 2
          %s144 = smul.addr %s143, 8
          %s145 = scalar_lea.vmem %s0, %s144
          %s146 = smul.u32 8, %s18
        $region16: #{dec_forward.9} parent=11 // pred_fallthru
          _
        // Predicated region
        $region17: #{dec_forward.9} parent=11 // pred_check
          %p147 = pneg %p68
        $region18: #{dec_forward.9} parent=11 // pred_check_branch
          %149 = sbr.rel (%p147) target = $region20
        $region19: #{dec_forward.9} parent=11 // pred_region
          _
        $region20: #{dec_forward.9} parent=11 // pred_fallthru
          _
      $region12: #{dec_forward.9} parent=5 // pred_fallthru
        _
      %p150 = scmp.lt.s32.totalorder %s9, 2
      // Predicated region
      $region21: #{dec_forward.9} parent=5 // pred_check
        %p151 = pneg %p150
      $region22: #{dec_forward.9} parent=5 // pred_check_branch
        %153 = sbr.rel (%p151) target = $region24
      $region23: #{dec_forward.9} parent=5 // pred_region
        // Predicated region
        $region25: #{dec_forward.9} parent=23 // pred_check
          %p154 = pneg %p88
        $region26: #{dec_forward.9} parent=23 // pred_check_branch
          %156 = sbr.rel (%p154) target = $region28
        $region27: #{dec_forward.9} parent=23 // pred_region
          %s157 = sand.u32 %s78, 1
          %s158 = sand.u32 %s78, 1
          %s159 = smul.addr %s158, 256
          %s160 = scalar_lea.vmem [#allocation2], %s159
          %s161 = smul.u32 2, %s17
          %s162 = smul.addr %s161, 4
          %s163 = scalar_lea.vmem %s2, %s162
          // Predicated region
          $region29: #{dec_forward.9} parent=27 // pred_check
            _
          $region30: #{dec_forward.9} parent=27 // pred_check_branch
            %165 = sbr.rel (0) target = $region32
          $region31: #{dec_forward.9} parent=27 // pred_region
            // Predicated region
            $region33: #{dec_forward.9} parent=31 // pred_check
              _
            $region34: #{dec_forward.9} parent=31 // pred_check_branch
              %167 = sbr.rel (0) target = $region36
            $region35: #{dec_forward.9} parent=31 // pred_region
              // Predicated region
              $region48: #{dec_forward.9} parent=35 // pred_check
                _
              $region49: #{dec_forward.9} parent=35 // pred_check_branch
                %245 = sbr.rel (0) target = $region51
              $region50: #{dec_forward.9} parent=35 // pred_region
                loop: start=0, step=1, limit=1
                $region52: #{dec_forward.9} parent=50 // loop_pre_header
                  _
                $region53: #{dec_forward.9} parent=50 // loop_header
                  %s247 = sphi 0, %s251
                  %p248 = scmp.ge.s32.totalorder %s247, 1
                  %s252 = sphi %s163, %s163
                  %s253 = sphi %s160, %s160
                $region54: #{dec_forward.9} parent=50 // loop_header_branch
                  %250 = sbr.rel (%p248) target = $region58
                $region55: #{dec_forward.9} parent=50 // loop_body
                  %v254 = vld [vmem:[%s252] sm:$0xff]
                  %255 = vst [vmem:[%s253] sm:$0xff] %v254
                  %v256 = vld [vmem:[%s252 + $0x10] sm:$0xff]
                  %257 = vst [vmem:[%s253 + $0x8] sm:$0xff] %v256
                  %v258 = vld [vmem:[%s252 + $0x20] sm:$0xff]
                  %259 = vst [vmem:[%s253 + $0x10] sm:$0xff] %v258
                  %v260 = vld [vmem:[%s252 + $0x30] sm:$0xff]
                  %261 = vst [vmem:[%s253 + $0x18] sm:$0xff] %v260
                  %v262 = vld [vmem:[%s252 + $0x40] sm:$0xff]
                  %263 = vst [vmem:[%s253 + $0x20] sm:$0xff] %v262
                  %v264 = vld [vmem:[%s252 + $0x50] sm:$0xff]
                  %265 = vst [vmem:[%s253 + $0x28] sm:$0xff] %v264
                  %v266 = vld [vmem:[%s252 + $0x60] sm:$0xff]
                  %267 = vst [vmem:[%s253 + $0x30] sm:$0xff] %v266
                  %v268 = vld [vmem:[%s252 + $0x70] sm:$0xff]
                  %269 = vst [vmem:[%s253 + $0x38] sm:$0xff] %v268
                  %v270 = vld [vmem:[%s252 + $0x80] sm:$0xff]
                  %271 = vst [vmem:[%s253 + $0x40] sm:$0xff] %v270
                  %v272 = vld [vmem:[%s252 + $0x90] sm:$0xff]
                  %273 = vst [vmem:[%s253 + $0x48] sm:$0xff] %v272
                  %v274 = vld [vmem:[%s252 + $0xa0] sm:$0xff]
                  %275 = vst [vmem:[%s253 + $0x50] sm:$0xff] %v274
                  %v276 = vld [vmem:[%s252 + $0xb0] sm:$0xff]
                  %277 = vst [vmem:[%s253 + $0x58] sm:$0xff] %v276
                  %v278 = vld [vmem:[%s252 + $0xc0] sm:$0xff]
                  %279 = vst [vmem:[%s253 + $0x60] sm:$0xff] %v278
                  %v280 = vld [vmem:[%s252 + $0xd0] sm:$0xff]
                  %281 = vst [vmem:[%s253 + $0x68] sm:$0xff] %v280
                  %v282 = vld [vmem:[%s252 + $0xe0] sm:$0xff]
                  %283 = vst [vmem:[%s253 + $0x70] sm:$0xff] %v282
                  %v284 = vld [vmem:[%s252 + $0xf0] sm:$0xff]
                  %285 = vst [vmem:[%s253 + $0x78] sm:$0xff] %v284
                  %v286 = vld [vmem:[%s252 + $0x100] sm:$0xff]
                  %287 = vst [vmem:[%s253 + $0x80] sm:$0xff] %v286
                  %v288 = vld [vmem:[%s252 + $0x110] sm:$0xff]
                  %289 = vst [vmem:[%s253 + $0x88] sm:$0xff] %v288
                  %v290 = vld [vmem:[%s252 + $0x120] sm:$0xff]
                  %291 = vst [vmem:[%s253 + $0x90] sm:$0xff] %v290
                  %v292 = vld [vmem:[%s252 + $0x130] sm:$0xff]
                  %293 = vst [vmem:[%s253 + $0x98] sm:$0xff] %v292
                  %v294 = vld [vmem:[%s252 + $0x140] sm:$0xff]
                  %295 = vst [vmem:[%s253 + $0xa0] sm:$0xff] %v294
                  %v296 = vld [vmem:[%s252 + $0x150] sm:$0xff]
                  %297 = vst [vmem:[%s253 + $0xa8] sm:$0xff] %v296
                  %v298 = vld [vmem:[%s252 + $0x160] sm:$0xff]
                  %299 = vst [vmem:[%s253 + $0xb0] sm:$0xff] %v298
                  %v300 = vld [vmem:[%s252 + $0x170] sm:$0xff]
                  %301 = vst [vmem:[%s253 + $0xb8] sm:$0xff] %v300
                  %v302 = vld [vmem:[%s252 + $0x180] sm:$0xff]
                  %303 = vst [vmem:[%s253 + $0xc0] sm:$0xff] %v302
                  %v304 = vld [vmem:[%s252 + $0x190] sm:$0xff]
                  %305 = vst [vmem:[%s253 + $0xc8] sm:$0xff] %v304
                  %v306 = vld [vmem:[%s252 + $0x1a0] sm:$0xff]
                  %307 = vst [vmem:[%s253 + $0xd0] sm:$0xff] %v306
                  %v308 = vld [vmem:[%s252 + $0x1b0] sm:$0xff]
                  %309 = vst [vmem:[%s253 + $0xd8] sm:$0xff] %v308
                  %v310 = vld [vmem:[%s252 + $0x1c0] sm:$0xff]
                  %311 = vst [vmem:[%s253 + $0xe0] sm:$0xff] %v310
                  %v312 = vld [vmem:[%s252 + $0x1d0] sm:$0xff]
                  %313 = vst [vmem:[%s253 + $0xe8] sm:$0xff] %v312
                  %v314 = vld [vmem:[%s252 + $0x1e0] sm:$0xff]
                  %315 = vst [vmem:[%s253 + $0xf0] sm:$0xff] %v314
                  %v316 = vld [vmem:[%s252 + $0x1f0] sm:$0xff]
                  %317 = vst [vmem:[%s253 + $0xf8] sm:$0xff] %v316
                $region56: #{dec_forward.9} parent=50 // loop_footer
                  %s251 = sadd.s32 1, %s247
                $region57: #{dec_forward.9} parent=50 // loop_footer_branch
                  %246 = sbr.rel target = $region53
                $region58: #{dec_forward.9} parent=50 // loop_exit
                  _
              $region51: #{dec_forward.9} parent=35 // pred_fallthru
                _
              // Predicated region
              $region59: #{dec_forward.9} parent=35 // pred_check
                _
              $region60: #{dec_forward.9} parent=35 // pred_check_branch
                %319 = sbr.rel target = $region62
              $region61: #{dec_forward.9} parent=35 // pred_region
                _
              $region62: #{dec_forward.9} parent=35 // pred_fallthru
                _
            $region36: #{dec_forward.9} parent=31 // pred_fallthru
              _
            // Predicated region
            $region37: #{dec_forward.9} parent=31 // pred_check
              _
            $region38: #{dec_forward.9} parent=31 // pred_check_branch
              %169 = sbr.rel target = $region40
            $region39: #{dec_forward.9} parent=31 // pred_region
              %s171 = ssub.s32 256, 1
              loop: start=0, step=1, limit=1
              $region41: #{dec_forward.9} parent=39 // loop_pre_header
                _
              $region42: #{dec_forward.9} parent=39 // loop_header
                %s173 = sphi 0, %s177
                %p174 = scmp.ge.s32.totalorder %s173, 1
                %s178 = sphi %s163, %s163
                %s179 = sphi %s160, %s160
              $region43: #{dec_forward.9} parent=39 // loop_header_branch
                %176 = sbr.rel (%p174) target = $region47
              $region44: #{dec_forward.9} parent=39 // loop_body
                %v180 = vld [vmem:[%s178] sm:%s171]
                %181 = vst [vmem:[%s179] sm:%s171] %v180
                %v182 = vld [vmem:[%s178 + $0x10] sm:%s171]
                %183 = vst [vmem:[%s179 + $0x8] sm:%s171] %v182
                %v184 = vld [vmem:[%s178 + $0x20] sm:%s171]
                %185 = vst [vmem:[%s179 + $0x10] sm:%s171] %v184
                %v186 = vld [vmem:[%s178 + $0x30] sm:%s171]
                %187 = vst [vmem:[%s179 + $0x18] sm:%s171] %v186
                %v188 = vld [vmem:[%s178 + $0x40] sm:%s171]
                %189 = vst [vmem:[%s179 + $0x20] sm:%s171] %v188
                %v190 = vld [vmem:[%s178 + $0x50] sm:%s171]
                %191 = vst [vmem:[%s179 + $0x28] sm:%s171] %v190
                %v192 = vld [vmem:[%s178 + $0x60] sm:%s171]
                %193 = vst [vmem:[%s179 + $0x30] sm:%s171] %v192
                %v194 = vld [vmem:[%s178 + $0x70] sm:%s171]
                %195 = vst [vmem:[%s179 + $0x38] sm:%s171] %v194
                %v196 = vld [vmem:[%s178 + $0x80] sm:%s171]
                %197 = vst [vmem:[%s179 + $0x40] sm:%s171] %v196
                %v198 = vld [vmem:[%s178 + $0x90] sm:%s171]
                %199 = vst [vmem:[%s179 + $0x48] sm:%s171] %v198
                %v200 = vld [vmem:[%s178 + $0xa0] sm:%s171]
                %201 = vst [vmem:[%s179 + $0x50] sm:%s171] %v200
                %v202 = vld [vmem:[%s178 + $0xb0] sm:%s171]
                %203 = vst [vmem:[%s179 + $0x58] sm:%s171] %v202
                %v204 = vld [vmem:[%s178 + $0xc0] sm:%s171]
                %205 = vst [vmem:[%s179 + $0x60] sm:%s171] %v204
                %v206 = vld [vmem:[%s178 + $0xd0] sm:%s171]
                %207 = vst [vmem:[%s179 + $0x68] sm:%s171] %v206
                %v208 = vld [vmem:[%s178 + $0xe0] sm:%s171]
                %209 = vst [vmem:[%s179 + $0x70] sm:%s171] %v208
                %v210 = vld [vmem:[%s178 + $0xf0] sm:%s171]
                %211 = vst [vmem:[%s179 + $0x78] sm:%s171] %v210
                %v212 = vld [vmem:[%s178 + $0x100] sm:%s171]
                %213 = vst [vmem:[%s179 + $0x80] sm:%s171] %v212
                %v214 = vld [vmem:[%s178 + $0x110] sm:%s171]
                %215 = vst [vmem:[%s179 + $0x88] sm:%s171] %v214
                %v216 = vld [vmem:[%s178 + $0x120] sm:%s171]
                %217 = vst [vmem:[%s179 + $0x90] sm:%s171] %v216
                %v218 = vld [vmem:[%s178 + $0x130] sm:%s171]
                %219 = vst [vmem:[%s179 + $0x98] sm:%s171] %v218
                %v220 = vld [vmem:[%s178 + $0x140] sm:%s171]
                %221 = vst [vmem:[%s179 + $0xa0] sm:%s171] %v220
                %v222 = vld [vmem:[%s178 + $0x150] sm:%s171]
                %223 = vst [vmem:[%s179 + $0xa8] sm:%s171] %v222
                %v224 = vld [vmem:[%s178 + $0x160] sm:%s171]
                %225 = vst [vmem:[%s179 + $0xb0] sm:%s171] %v224
                %v226 = vld [vmem:[%s178 + $0x170] sm:%s171]
                %227 = vst [vmem:[%s179 + $0xb8] sm:%s171] %v226
                %v228 = vld [vmem:[%s178 + $0x180] sm:%s171]
                %229 = vst [vmem:[%s179 + $0xc0] sm:%s171] %v228
                %v230 = vld [vmem:[%s178 + $0x190] sm:%s171]
                %231 = vst [vmem:[%s179 + $0xc8] sm:%s171] %v230
                %v232 = vld [vmem:[%s178 + $0x1a0] sm:%s171]
                %233 = vst [vmem:[%s179 + $0xd0] sm:%s171] %v232
                %v234 = vld [vmem:[%s178 + $0x1b0] sm:%s171]
                %235 = vst [vmem:[%s179 + $0xd8] sm:%s171] %v234
                %v236 = vld [vmem:[%s178 + $0x1c0] sm:%s171]
                %237 = vst [vmem:[%s179 + $0xe0] sm:%s171] %v236
                %v238 = vld [vmem:[%s178 + $0x1d0] sm:%s171]
                %239 = vst [vmem:[%s179 + $0xe8] sm:%s171] %v238
                %v240 = vld [vmem:[%s178 + $0x1e0] sm:%s171]
                %241 = vst [vmem:[%s179 + $0xf0] sm:%s171] %v240
                %v242 = vld [vmem:[%s178 + $0x1f0] sm:%s171]
                %243 = vst [vmem:[%s179 + $0xf8] sm:%s171] %v242
              $region45: #{dec_forward.9} parent=39 // loop_footer
                %s177 = sadd.s32 1, %s173
              $region46: #{dec_forward.9} parent=39 // loop_footer_branch
                %172 = sbr.rel target = $region42
              $region47: #{dec_forward.9} parent=39 // loop_exit
                _
            $region40: #{dec_forward.9} parent=31 // pred_fallthru
              _
          $region32: #{dec_forward.9} parent=27 // pred_fallthru
            _
          %320 = vnop
        $region28: #{dec_forward.9} parent=23 // pred_fallthru
          _
      $region24: #{dec_forward.9} parent=5 // pred_fallthru
        _
      %p321 = scmp.le.s32.totalorder 1, %s9
      %p322 = scmp.lt.s32.totalorder %s9, 3
      %p323 = pnand %p321, %p322
      %p324 = pneg %p323
      // Predicated region
      $region63: #{dec_forward.9} parent=5 // pred_check
        _
      $region64: #{dec_forward.9} parent=5 // pred_check_branch
        %326 = sbr.rel (%p323) target = $region66
      $region65: #{dec_forward.9} parent=5 // pred_region
        %s327 = ssub.s32 %s9, 1
        %s328 = sand.u32 %s81, 1
        %s329 = sand.u32 %s81, 1
        %s330 = smul.addr %s329, 256
        %s331 = scalar_lea.vmem [#allocation2], %s330
        // Predicated region
        $region67: #{dec_forward.9} parent=65 // pred_check
          %p332 = pneg %p94
        $region68: #{dec_forward.9} parent=65 // pred_check_branch
          %334 = sbr.rel (%p332) target = $region70
        $region69: #{dec_forward.9} parent=65 // pred_region
          _
        $region70: #{dec_forward.9} parent=65 // pred_fallthru
          _
        %s335 = smul.u32 8, %s18
        %p336 = scmp.lt.s32.totalorder %s335, 7
        %s337 = scalar_select %p336, %s335, 7
        %s338 = smul.addr %s337, 2
        %s339 = smul.addr %s338, 8
        %s340 = scalar_lea.vmem %s0, %s339
        %p341 = pneg %p47
        %p342 = pneg %p44
        %p343 = pneg %p68
        %p344 = pneg %p65
        %s345 = sand.u32 %s81, 1
        %s346 = sand.u32 %s81, 1
        %s347 = smul.addr %s346, 256
        %s348 = scalar_lea.vmem [#allocation2], %s347
        %p349 = pneg %p94
        %p350 = pneg %p91
        %p351 = pneg %p122
        %p352 = pneg %p119
        %s353 = sand.u32 %s109, 1
        %s354 = sand.u32 %s109, 1
        %s355 = smul.addr %s354, 128
        %s356 = scalar_lea.vmem [#allocation3], %s355
        %s357 = smul.u32 8, %s18
        %p358 = scmp.lt.s32.totalorder %s357, 7
        %s359 = scalar_select %p358, %s357, 7
        %s360 = smul.addr %s359, 2
        %s361 = smul.addr %s360, 8
        %s362 = scalar_lea.vmem %s0, %s361
        %s363 = smul.u32 8, %s18
        %s364 = smul.u32 2, %s19
        %s365 = smul.u32 8, %s18
        %s366 = smul.u32 2, %s19
        %v367 = vld [vmem:[%s362] sm:$0xff]
        %v368 = vld [vmem:[%s362 + $0x8] sm:$0xff]
        %v369 = vld [vmem:[%s362 + $0x10] sm:$0xff]
        %v370 = vld [vmem:[%s362 + $0x18] sm:$0xff]
        %v371 = vld [vmem:[%s362 + $0x20] sm:$0xff]
        %v372 = vld [vmem:[%s362 + $0x28] sm:$0xff]
        %v373 = vld [vmem:[%s362 + $0x30] sm:$0xff]
        %v374 = vld [vmem:[%s362 + $0x38] sm:$0xff]
        %v375 = vld [vmem:[%s362 + $0x40] sm:$0xff]
        %v376 = vld [vmem:[%s362 + $0x48] sm:$0xff]
        %v377 = vld [vmem:[%s362 + $0x50] sm:$0xff]
        %v378 = vld [vmem:[%s362 + $0x58] sm:$0xff]
        %v379 = vld [vmem:[%s362 + $0x60] sm:$0xff]
        %v380 = vld [vmem:[%s362 + $0x68] sm:$0xff]
        %v381 = vld [vmem:[%s362 + $0x70] sm:$0xff]
        %v382 = vld [vmem:[%s362 + $0x78] sm:$0xff]
        %v383 = vld [vmem:[%s1] sm:$0x3]
        %v385 = vperm.slane %v383, 0
        %v386 = vperm.slane %v383, 1
        %v389 = vadd.f32 %v367, %v385
        %v390 = vadd.f32 %v368, %v386
        %v391 = vadd.f32 %v369, %v385
        %v392 = vadd.f32 %v370, %v386
        %v393 = vadd.f32 %v371, %v385
        %v394 = vadd.f32 %v372, %v386
        %v395 = vadd.f32 %v373, %v385
        %v396 = vadd.f32 %v374, %v386
        %v397 = vadd.f32 %v375, %v385
        %v398 = vadd.f32 %v376, %v386
        %v399 = vadd.f32 %v377, %v385
        %v400 = vadd.f32 %v378, %v386
        %v401 = vadd.f32 %v379, %v385
        %v402 = vadd.f32 %v380, %v386
        %v403 = vadd.f32 %v381, %v385
        %v404 = vadd.f32 %v382, %v386
        %v405 = vmax.f32 %v389, 0.0
        %v406 = vmax.f32 %v390, 0.0
        %v407 = vmax.f32 %v391, 0.0
        %v408 = vmax.f32 %v392, 0.0
        %v409 = vmax.f32 %v393, 0.0
        %v410 = vmax.f32 %v394, 0.0
        %v411 = vmax.f32 %v395, 0.0
        %v412 = vmax.f32 %v396, 0.0
        %v413 = vmax.f32 %v397, 0.0
        %v414 = vmax.f32 %v398, 0.0
        %v415 = vmax.f32 %v399, 0.0
        %v416 = vmax.f32 %v400, 0.0
        %v417 = vmax.f32 %v401, 0.0
        %v418 = vmax.f32 %v402, 0.0
        %v419 = vmax.f32 %v403, 0.0
        %v420 = vmax.f32 %v404, 0.0
        %v421 = vpack.c.bf16 %v407, %v405
        %v422 = vpack.c.bf16 %v408, %v406
        %v423 = vpack.c.bf16 %v411, %v409
        %v424 = vpack.c.bf16 %v412, %v410
        %v425 = vpack.c.bf16 %v415, %v413
        %v426 = vpack.c.bf16 %v416, %v414
        %v427 = vpack.c.bf16 %v419, %v417
        %v428 = vpack.c.bf16 %v420, %v418
        %v429 = vld [vmem:[%s331] sm:$0xff]
        %v430 = vld [vmem:[%s331 + $0x8] sm:$0xff]
        %v431 = vld [vmem:[%s331 + $0x10] sm:$0xff]
        %v432 = vld [vmem:[%s331 + $0x18] sm:$0xff]
        %v433 = vld [vmem:[%s331 + $0x20] sm:$0xff]
        %v434 = vld [vmem:[%s331 + $0x28] sm:$0xff]
        %v435 = vld [vmem:[%s331 + $0x30] sm:$0xff]
        %v436 = vld [vmem:[%s331 + $0x38] sm:$0xff]
        %v437 = vld [vmem:[%s331 + $0x40] sm:$0xff]
        %v438 = vld [vmem:[%s331 + $0x48] sm:$0xff]
        %v439 = vld [vmem:[%s331 + $0x50] sm:$0xff]
        %v440 = vld [vmem:[%s331 + $0x58] sm:$0xff]
        %v441 = vld [vmem:[%s331 + $0x60] sm:$0xff]
        %v442 = vld [vmem:[%s331 + $0x68] sm:$0xff]
        %v443 = vld [vmem:[%s331 + $0x70] sm:$0xff]
        %v444 = vld [vmem:[%s331 + $0x78] sm:$0xff]
        %v445 = vld [vmem:[%s331 + $0x80] sm:$0xff]
        %v446 = vld [vmem:[%s331 + $0x88] sm:$0xff]
        %v447 = vld [vmem:[%s331 + $0x90] sm:$0xff]
        %v448 = vld [vmem:[%s331 + $0x98] sm:$0xff]
        %v449 = vld [vmem:[%s331 + $0xa0] sm:$0xff]
        %v450 = vld [vmem:[%s331 + $0xa8] sm:$0xff]
        %v451 = vld [vmem:[%s331 + $0xb0] sm:$0xff]
        %v452 = vld [vmem:[%s331 + $0xb8] sm:$0xff]
        %v453 = vld [vmem:[%s331 + $0xc0] sm:$0xff]
        %v454 = vld [vmem:[%s331 + $0xc8] sm:$0xff]
        %v455 = vld [vmem:[%s331 + $0xd0] sm:$0xff]
        %v456 = vld [vmem:[%s331 + $0xd8] sm:$0xff]
        %v457 = vld [vmem:[%s331 + $0xe0] sm:$0xff]
        %v458 = vld [vmem:[%s331 + $0xe8] sm:$0xff]
        %v459 = vld [vmem:[%s331 + $0xf0] sm:$0xff]
        %v460 = vld [vmem:[%s331 + $0xf8] sm:$0xff]
        %v493 = vunpack.c.l.b16 %v429
        %v494 = vunpack.c.h.b16 %v429
        %v495 = vunpack.c.l.b16 %v430
        %v496 = vunpack.c.h.b16 %v430
        %v497 = vunpack.c.l.b16 %v431
        %v498 = vunpack.c.h.b16 %v431
        %v499 = vunpack.c.l.b16 %v432
        %v500 = vunpack.c.h.b16 %v432
        %v501 = vunpack.c.l.b16 %v433
        %v502 = vunpack.c.h.b16 %v433
        %v503 = vunpack.c.l.b16 %v434
        %v504 = vunpack.c.h.b16 %v434
        %v505 = vunpack.c.l.b16 %v435
        %v506 = vunpack.c.h.b16 %v435
        %v507 = vunpack.c.l.b16 %v436
        %v508 = vunpack.c.h.b16 %v436
        %v509 = vunpack.c.l.b16 %v437
        %v510 = vunpack.c.h.b16 %v437
        %v511 = vunpack.c.l.b16 %v438
        %v512 = vunpack.c.h.b16 %v438
        %v513 = vunpack.c.l.b16 %v439
        %v514 = vunpack.c.h.b16 %v439
        %v515 = vunpack.c.l.b16 %v440
        %v516 = vunpack.c.h.b16 %v440
        %v517 = vunpack.c.l.b16 %v441
        %v518 = vunpack.c.h.b16 %v441
        %v519 = vunpack.c.l.b16 %v442
        %v520 = vunpack.c.h.b16 %v442
        %v521 = vunpack.c.l.b16 %v443
        %v522 = vunpack.c.h.b16 %v443
        %v523 = vunpack.c.l.b16 %v444
        %v524 = vunpack.c.h.b16 %v444
        %v525 = vunpack.c.l.b16 %v445
        %v526 = vunpack.c.h.b16 %v445
        %v527 = vunpack.c.l.b16 %v446
        %v528 = vunpack.c.h.b16 %v446
        %v529 = vunpack.c.l.b16 %v447
        %v530 = vunpack.c.h.b16 %v447
        %v531 = vunpack.c.l.b16 %v448
        %v532 = vunpack.c.h.b16 %v448
        %v533 = vunpack.c.l.b16 %v449
        %v534 = vunpack.c.h.b16 %v449
        %v535 = vunpack.c.l.b16 %v450
        %v536 = vunpack.c.h.b16 %v450
        %v537 = vunpack.c.l.b16 %v451
        %v538 = vunpack.c.h.b16 %v451
        %v539 = vunpack.c.l.b16 %v452
        %v540 = vunpack.c.h.b16 %v452
        %v541 = vunpack.c.l.b16 %v453
        %v542 = vunpack.c.h.b16 %v453
        %v543 = vunpack.c.l.b16 %v454
        %v544 = vunpack.c.h.b16 %v454
        %v545 = vunpack.c.l.b16 %v455
        %v546 = vunpack.c.h.b16 %v455
        %v547 = vunpack.c.l.b16 %v456
        %v548 = vunpack.c.h.b16 %v456
        %v549 = vunpack.c.l.b16 %v457
        %v550 = vunpack.c.h.b16 %v457
        %v551 = vunpack.c.l.b16 %v458
        %v552 = vunpack.c.h.b16 %v458
        %v553 = vunpack.c.l.b16 %v459
        %v554 = vunpack.c.h.b16 %v459
        %v555 = vunpack.c.l.b16 %v460
        %v556 = vunpack.c.h.b16 %v460
        %v557 = vpack.c.b16 %v495, %v493
        %v558 = vpack.c.b16 %v496, %v494
        %v559 = vpack.c.b16 %v499, %v497
        %v560 = vpack.c.b16 %v500, %v498
        %v561 = vpack.c.b16 %v503, %v501
        %v562 = vpack.c.b16 %v504, %v502
        %v563 = vpack.c.b16 %v507, %v505
        %v564 = vpack.c.b16 %v508, %v506
        %v565 = vpack.c.b16 %v511, %v509
        %v566 = vpack.c.b16 %v512, %v510
        %v567 = vpack.c.b16 %v515, %v513
        %v568 = vpack.c.b16 %v516, %v514
        %v569 = vpack.c.b16 %v519, %v517
        %v570 = vpack.c.b16 %v520, %v518
        %v571 = vpack.c.b16 %v523, %v521
        %v572 = vpack.c.b16 %v524, %v522
        %v573 = vpack.c.b16 %v527, %v525
        %v574 = vpack.c.b16 %v528, %v526
        %v575 = vpack.c.b16 %v531, %v529
        %v576 = vpack.c.b16 %v532, %v530
        %v577 = vpack.c.b16 %v535, %v533
        %v578 = vpack.c.b16 %v536, %v534
        %v579 = vpack.c.b16 %v539, %v537
        %v580 = vpack.c.b16 %v540, %v538
        %v581 = vpack.c.b16 %v543, %v541
        %v582 = vpack.c.b16 %v544, %v542
        %v583 = vpack.c.b16 %v547, %v545
        %v584 = vpack.c.b16 %v548, %v546
        %v585 = vpack.c.b16 %v551, %v549
        %v586 = vpack.c.b16 %v552, %v550
        %v587 = vpack.c.b16 %v555, %v553
        %v588 = vpack.c.b16 %v556, %v554
        %621 = vmatpush.bf16.msra.mxu0 %v571
        %622 = vmatpush.bf16.msra.mxu0 %v569
        %623 = vmatpush.bf16.msra.mxu0 %v567
        %624 = vmatpush.bf16.msra.mxu0 %v565
        %625 = vmatpush.bf16.msra.mxu0 %v563
        %626 = vmatpush.bf16.msra.mxu0 %v561
        %627 = vmatpush.bf16.msra.mxu0 %v559
        %628 = vmatpush.bf16.msra.mxu0 %v557
        %629 = vmatmul.bf16.gmra.mxu0 %v421
        %v630 = vpop.f32.mrf.mxu0
        %v631 = vadd.f32 0.0, %v630
        %v632 = vpop.f32.mrf.mxu0
        %v633 = vadd.f32 0.0, %v632
        %634 = vmatmul.bf16.gmra.mxu0 %v423
        %v635 = vpop.f32.mrf.mxu0
        %v636 = vadd.f32 0.0, %v635
        %v637 = vpop.f32.mrf.mxu0
        %v638 = vadd.f32 0.0, %v637
        %639 = vmatmul.bf16.gmra.mxu0 %v425
        %v640 = vpop.f32.mrf.mxu0
        %v641 = vadd.f32 0.0, %v640
        %v642 = vpop.f32.mrf.mxu0
        %v643 = vadd.f32 0.0, %v642
        %644 = vmatmul.bf16.gmra.mxu0 %v427
        %v645 = vpop.f32.mrf.mxu0
        %v646 = vadd.f32 0.0, %v645
        %v647 = vpop.f32.mrf.mxu0
        %v648 = vadd.f32 0.0, %v647
        %649 = vdwg.mxu0
        %650 = vmatpush.bf16.msra.mxu0 %v587
        %651 = vmatpush.bf16.msra.mxu0 %v585
        %652 = vmatpush.bf16.msra.mxu0 %v583
        %653 = vmatpush.bf16.msra.mxu0 %v581
        %654 = vmatpush.bf16.msra.mxu0 %v579
        %655 = vmatpush.bf16.msra.mxu0 %v577
        %656 = vmatpush.bf16.msra.mxu0 %v575
        %657 = vmatpush.bf16.msra.mxu0 %v573
        %658 = vmatmul.bf16.gmra.mxu0 %v422
        %v659 = vpop.f32.mrf.mxu0
        %v660 = vadd.f32 %v631, %v659
        %v661 = vpop.f32.mrf.mxu0
        %v662 = vadd.f32 %v633, %v661
        %663 = vmatmul.bf16.gmra.mxu0 %v424
        %v664 = vpop.f32.mrf.mxu0
        %v665 = vadd.f32 %v636, %v664
        %v666 = vpop.f32.mrf.mxu0
        %v667 = vadd.f32 %v638, %v666
        %668 = vmatmul.bf16.gmra.mxu0 %v426
        %v669 = vpop.f32.mrf.mxu0
        %v670 = vadd.f32 %v641, %v669
        %v671 = vpop.f32.mrf.mxu0
        %v672 = vadd.f32 %v643, %v671
        %673 = vmatmul.bf16.gmra.mxu0 %v428
        %v674 = vpop.f32.mrf.mxu0
        %v675 = vadd.f32 %v646, %v674
        %v676 = vpop.f32.mrf.mxu0
        %v677 = vadd.f32 %v648, %v676
        %678 = vdwg.mxu0
        %679 = vmatpush.bf16.msra.mxu0 %v572
        %680 = vmatpush.bf16.msra.mxu0 %v570
        %681 = vmatpush.bf16.msra.mxu0 %v568
        %682 = vmatpush.bf16.msra.mxu0 %v566
        %683 = vmatpush.bf16.msra.mxu0 %v564
        %684 = vmatpush.bf16.msra.mxu0 %v562
        %685 = vmatpush.bf16.msra.mxu0 %v560
        %686 = vmatpush.bf16.msra.mxu0 %v558
        %687 = vmatmul.bf16.gmra.mxu0 %v421
        %v688 = vpop.f32.mrf.mxu0
        %v689 = vadd.f32 0.0, %v688
        %v690 = vpop.f32.mrf.mxu0
        %v691 = vadd.f32 0.0, %v690
        %692 = vmatmul.bf16.gmra.mxu0 %v423
        %v693 = vpop.f32.mrf.mxu0
        %v694 = vadd.f32 0.0, %v693
        %v695 = vpop.f32.mrf.mxu0
        %v696 = vadd.f32 0.0, %v695
        %697 = vmatmul.bf16.gmra.mxu0 %v425
        %v698 = vpop.f32.mrf.mxu0
        %v699 = vadd.f32 0.0, %v698
        %v700 = vpop.f32.mrf.mxu0
        %v701 = vadd.f32 0.0, %v700
        %702 = vmatmul.bf16.gmra.mxu0 %v427
        %v703 = vpop.f32.mrf.mxu0
        %v704 = vadd.f32 0.0, %v703
        %v705 = vpop.f32.mrf.mxu0
        %v706 = vadd.f32 0.0, %v705
        %707 = vdwg.mxu0
        %708 = vmatpush.bf16.msra.mxu0 %v588
        %709 = vmatpush.bf16.msra.mxu0 %v586
        %710 = vmatpush.bf16.msra.mxu0 %v584
        %711 = vmatpush.bf16.msra.mxu0 %v582
        %712 = vmatpush.bf16.msra.mxu0 %v580
        %713 = vmatpush.bf16.msra.mxu0 %v578
        %714 = vmatpush.bf16.msra.mxu0 %v576
        %715 = vmatpush.bf16.msra.mxu0 %v574
        %716 = vmatmul.bf16.gmra.mxu0 %v422
        %v717 = vpop.f32.mrf.mxu0
        %v718 = vadd.f32 %v689, %v717
        %v719 = vpop.f32.mrf.mxu0
        %v720 = vadd.f32 %v691, %v719
        %721 = vmatmul.bf16.gmra.mxu0 %v424
        %v722 = vpop.f32.mrf.mxu0
        %v723 = vadd.f32 %v694, %v722
        %v724 = vpop.f32.mrf.mxu0
        %v725 = vadd.f32 %v696, %v724
        %726 = vmatmul.bf16.gmra.mxu0 %v426
        %v727 = vpop.f32.mrf.mxu0
        %v728 = vadd.f32 %v699, %v727
        %v729 = vpop.f32.mrf.mxu0
        %v730 = vadd.f32 %v701, %v729
        %731 = vmatmul.bf16.gmra.mxu0 %v428
        %v732 = vpop.f32.mrf.mxu0
        %v733 = vadd.f32 %v704, %v732
        %v734 = vpop.f32.mrf.mxu0
        %v735 = vadd.f32 %v706, %v734
        %736 = vdwg.mxu0
        %737 = vst [vmem:[%s356] sm:$0xff] %v660
        %738 = vst [vmem:[%s356 + $0x8] sm:$0xff] %v718
        %739 = vst [vmem:[%s356 + $0x10] sm:$0xff] %v662
        %740 = vst [vmem:[%s356 + $0x18] sm:$0xff] %v720
        %741 = vst [vmem:[%s356 + $0x20] sm:$0xff] %v665
        %742 = vst [vmem:[%s356 + $0x28] sm:$0xff] %v723
        %743 = vst [vmem:[%s356 + $0x30] sm:$0xff] %v667
        %744 = vst [vmem:[%s356 + $0x38] sm:$0xff] %v725
        %745 = vst [vmem:[%s356 + $0x40] sm:$0xff] %v670
        %746 = vst [vmem:[%s356 + $0x48] sm:$0xff] %v728
        %747 = vst [vmem:[%s356 + $0x50] sm:$0xff] %v672
        %748 = vst [vmem:[%s356 + $0x58] sm:$0xff] %v730
        %749 = vst [vmem:[%s356 + $0x60] sm:$0xff] %v675
        %750 = vst [vmem:[%s356 + $0x68] sm:$0xff] %v733
        %751 = vst [vmem:[%s356 + $0x70] sm:$0xff] %v677
        %752 = vst [vmem:[%s356 + $0x78] sm:$0xff] %v735
        %s753 = sand.u32 %s109, 1
        %s754 = sand.u32 %s109, 1
        %s755 = smul.addr %s754, 128
        %s756 = scalar_lea.vmem [#allocation3], %s755
        // Predicated region
        $region71: #{dec_forward.9} parent=65 // pred_check
          %p757 = pneg %p119
        $region72: #{dec_forward.9} parent=65 // pred_check_branch
          %759 = sbr.rel (%p757) target = $region74
        $region73: #{dec_forward.9} parent=65 // pred_region
          %s760 = smul.u32 8, %s18
          %s761 = smul.u32 2, %s19
          %s762 = smul.addr %s760, 4
          %s763 = sadd.s32 %s761, %s762
          %s764 = smul.addr %s763, 8
          %s765 = scalar_lea.vmem %s3, %s764
          // Predicated region
          $region75: #{dec_forward.9} parent=73 // pred_check
            _
          $region76: #{dec_forward.9} parent=73 // pred_check_branch
            %767 = sbr.rel (0) target = $region78
          $region77: #{dec_forward.9} parent=73 // pred_region
            // Predicated region
            $region79: #{dec_forward.9} parent=77 // pred_check
              _
            $region80: #{dec_forward.9} parent=77 // pred_check_branch
              %769 = sbr.rel (0) target = $region82
            $region81: #{dec_forward.9} parent=77 // pred_region
              loop: start=0, step=1, limit=1
              $region83: #{dec_forward.9} parent=81 // loop_pre_header
                _
              $region84: #{dec_forward.9} parent=81 // loop_header
                %s771 = sphi 0, %s775
                %p772 = scmp.ge.s32.totalorder %s771, 1
                %s776 = sphi %s756, %s756
                %s777 = sphi %s765, %s765
              $region85: #{dec_forward.9} parent=81 // loop_header_branch
                %774 = sbr.rel (%p772) target = $region89
              $region86: #{dec_forward.9} parent=81 // loop_body
                %v778 = vld [vmem:[%s776] sm:$0xff]
                %779 = vst [vmem:[%s777] sm:$0xff] %v778
                %v780 = vld [vmem:[%s776 + $0x8] sm:$0xff]
                %781 = vst [vmem:[%s777 + $0x8] sm:$0xff] %v780
                %v782 = vld [vmem:[%s776 + $0x10] sm:$0xff]
                %783 = vst [vmem:[%s777 + $0x20] sm:$0xff] %v782
                %v784 = vld [vmem:[%s776 + $0x18] sm:$0xff]
                %785 = vst [vmem:[%s777 + $0x28] sm:$0xff] %v784
                %v786 = vld [vmem:[%s776 + $0x20] sm:$0xff]
                %787 = vst [vmem:[%s777 + $0x40] sm:$0xff] %v786
                %v788 = vld [vmem:[%s776 + $0x28] sm:$0xff]
                %789 = vst [vmem:[%s777 + $0x48] sm:$0xff] %v788
                %v790 = vld [vmem:[%s776 + $0x30] sm:$0xff]
                %791 = vst [vmem:[%s777 + $0x60] sm:$0xff] %v790
                %v792 = vld [vmem:[%s776 + $0x38] sm:$0xff]
                %793 = vst [vmem:[%s777 + $0x68] sm:$0xff] %v792
                %v794 = vld [vmem:[%s776 + $0x40] sm:$0xff]
                %795 = vst [vmem:[%s777 + $0x80] sm:$0xff] %v794
                %v796 = vld [vmem:[%s776 + $0x48] sm:$0xff]
                %797 = vst [vmem:[%s777 + $0x88] sm:$0xff] %v796
                %v798 = vld [vmem:[%s776 + $0x50] sm:$0xff]
                %799 = vst [vmem:[%s777 + $0xa0] sm:$0xff] %v798
                %v800 = vld [vmem:[%s776 + $0x58] sm:$0xff]
                %801 = vst [vmem:[%s777 + $0xa8] sm:$0xff] %v800
                %v802 = vld [vmem:[%s776 + $0x60] sm:$0xff]
                %803 = vst [vmem:[%s777 + $0xc0] sm:$0xff] %v802
                %v804 = vld [vmem:[%s776 + $0x68] sm:$0xff]
                %805 = vst [vmem:[%s777 + $0xc8] sm:$0xff] %v804
                %v806 = vld [vmem:[%s776 + $0x70] sm:$0xff]
                %807 = vst [vmem:[%s777 + $0xe0] sm:$0xff] %v806
                %v808 = vld [vmem:[%s776 + $0x78] sm:$0xff]
                %809 = vst [vmem:[%s777 + $0xe8] sm:$0xff] %v808
              $region87: #{dec_forward.9} parent=81 // loop_footer
                %s775 = sadd.s32 1, %s771
              $region88: #{dec_forward.9} parent=81 // loop_footer_branch
                %770 = sbr.rel target = $region84
              $region89: #{dec_forward.9} parent=81 // loop_exit
                _
            $region82: #{dec_forward.9} parent=77 // pred_fallthru
              _
            // Predicated region
            $region90: #{dec_forward.9} parent=77 // pred_check
              _
            $region91: #{dec_forward.9} parent=77 // pred_check_branch
              %811 = sbr.rel target = $region93
            $region92: #{dec_forward.9} parent=77 // pred_region
              _
            $region93: #{dec_forward.9} parent=77 // pred_fallthru
              _
          $region78: #{dec_forward.9} parent=73 // pred_fallthru
            _
          %812 = vnop
        $region74: #{dec_forward.9} parent=65 // pred_fallthru
          _
      $region66: #{dec_forward.9} parent=5 // pred_fallthru
        _
      %p813 = scmp.le.s32.totalorder 2, %s9
      // Predicated region
      $region94: #{dec_forward.9} parent=5 // pred_check
        %p814 = pneg %p813
      $region95: #{dec_forward.9} parent=5 // pred_check_branch
        %816 = sbr.rel (%p814) target = $region97
      $region96: #{dec_forward.9} parent=5 // pred_region
        %s817 = ssub.s32 %s9, 2
        // Predicated region
        $region98: #{dec_forward.9} parent=96 // pred_check
          %p818 = pneg %p125
        $region99: #{dec_forward.9} parent=96 // pred_check_branch
          %820 = sbr.rel (%p818) target = $region101
        $region100: #{dec_forward.9} parent=96 // pred_region
          %s821 = sand.u32 %s110, 1
          %s822 = sand.u32 %s110, 1
          %s823 = smul.addr %s822, 128
          %s824 = scalar_lea.vmem [#allocation3], %s823
        $region101: #{dec_forward.9} parent=96 // pred_fallthru
          _
      $region97: #{dec_forward.9} parent=5 // pred_fallthru
        _
    $region6: #{dec_forward.9} parent=1 // loop_footer
      %s13 = sadd.s32 1, %s9
    $region7: #{dec_forward.9} parent=1 // loop_footer_branch
      %8 = sbr.rel target = $region3
    $region8: #{dec_forward.9} parent=1 // loop_exit
      _

// kernel: dec_forward.10
$region0: #{dec_forward.10}
  #allocation0 [shape = 'u32[]', space=smem, size = 0x4, offset = 0x4, fixed_abs, tag = 'smem constant byte address 0x4 - core index']
  #allocation1 [shape = 'u32[72,128]{1,0:T(1,128)}', space=vmem, size = 0x9000, scoped, tag = 'internal scratch']
  %s0 = inlined_call_operand.vmem [shape: f32[128,128], index: 0, kind: input, shape index: {}]
  %s1 = inlined_call_operand.vmem [shape: f32[1,128], index: 1, kind: input, shape index: {}]
  %s2 = inlined_call_operand.vmem [shape: bf16[128,1024], index: 2, kind: input, shape index: {}]
  %s3 = inlined_call_operand.vmem [shape: f32[128,1024], index: 3, kind: output, shape index: {}]
  %s4 = sld [smem:[#allocation0]]
  $region87: #{dec_forward.10} parent=0
    _
  %s6 = ssub.s32 1, %s4
  %s7 = scalar_select 0, %s6, %s4
  $region1: #{dec_forward.10} parent=0
    #allocation2 [shape = 'u8[262144]{0}', space=vmem, size = 0x40000, scoped, tag = 'input window, operand 2']
    #allocation3 [shape = 'u8[524288]{0}', space=vmem, size = 0x80000, scoped, tag = 'output window, operand 0']
    loop: start=0, step=1, limit=4
    $region2: #{dec_forward.10} parent=1 // loop_pre_header
      _
    $region3: #{dec_forward.10} parent=1 // loop_header
      %s9 = sphi 0, %s13
      %p10 = scmp.ge.s32.totalorder %s9, 4
      %s16 = sphi 0, %s28
      %s17 = sphi 0, %s24
      %s18 = sphi 0, %s16
      %s19 = sphi 0, %s17
      %s20 = sphi 0, %s18
      %s21 = sphi 0, %s19
      %s31 = sphi 0, %s33
      %s34 = sphi 0, %s31
      %s35 = sphi 0, %s34
      %s51 = sphi 0, %s35
      %s55 = sphi 0, %s55
      %s57 = sphi 0, %s55
      %s58 = sphi 0, %s57
      %s72 = sphi 0, %s58
      %s78 = sphi 0, %s80
      %s81 = sphi 0, %s78
      %s82 = sphi 0, %s81
      %s98 = sphi 0, %s82
      %s106 = sphi 0, %s108
      %s109 = sphi 0, %s106
      %s110 = sphi 0, %s109
      %s126 = sphi 0, %s110
    $region4: #{dec_forward.10} parent=1 // loop_header_branch
      %12 = sbr.rel (%p10) target = $region8
    $region5: #{dec_forward.10} parent=1 // loop_body
      %s14 = ssub.s32 %s9, 1
      %s15 = ssub.s32 %s9, 2
      %s22 = sadd.s32 1, %s17
      %p23 = scmp.ge.s32.totalorder %s22, 2
      %s24 = scalar_select %p23, 0, %s22
      %s25 = sadd.s32 1, %s16
      %s26 = scalar_select %p23, %s25, %s16
      %p27 = scmp.ge.s32.totalorder %s26, 1
      %s28 = scalar_select %p27, 0, %s26
      %s29 = ssub.s32 %s16, %s28
      %p30 = scmp.eq.s32.totalorder %s29, 0
      %s32 = sadd.s32 %s31, 1
      %s33 = scalar_select %p30, %s31, %s32
      %p36 = pneg %p30
      %p37 = scmp.eq.s32.totalorder %s9, 1
      %p38 = por %p36, %p37
      %p39 = scmp.ne.s32.totalorder %s31, %s34
      %p40 = scmp.eq.s32.totalorder %s9, 0
      %p41 = por %p39, %p40
      %p42 = scmp.ne.s32.totalorder %s31, %s34
      %p43 = scmp.eq.s32.totalorder %s14, 1
      %p44 = por %p42, %p43
      %p45 = scmp.ne.s32.totalorder %s34, %s35
      %p46 = scmp.eq.s32.totalorder %s14, 0
      %p47 = por %p45, %p46
      %p48 = scmp.ne.s32.totalorder %s34, %s35
      %p49 = scmp.eq.s32.totalorder %s15, 1
      %p50 = por %p48, %p49
      %p52 = scmp.ne.s32.totalorder %s35, %s51
      %p53 = scmp.eq.s32.totalorder %s15, 0
      %p54 = por %p52, %p53
      %s56 = sadd.s32 %s55, 1
      %p59 = scmp.eq.s32.totalorder %s9, 1
      %p60 = scmp.ne.s32.totalorder %s55, %s57
      %p61 = scmp.eq.s32.totalorder %s9, 0
      %p62 = por %p60, %p61
      %p63 = scmp.ne.s32.totalorder %s55, %s57
      %p64 = scmp.eq.s32.totalorder %s14, 1
      %p65 = por %p63, %p64
      %p66 = scmp.ne.s32.totalorder %s57, %s58
      %p67 = scmp.eq.s32.totalorder %s14, 0
      %p68 = por %p66, %p67
      %p69 = scmp.ne.s32.totalorder %s57, %s58
      %p70 = scmp.eq.s32.totalorder %s15, 1
      %p71 = por %p69, %p70
      %p73 = scmp.ne.s32.totalorder %s58, %s72
      %p74 = scmp.eq.s32.totalorder %s15, 0
      %p75 = por %p73, %p74
      %s76 = ssub.s32 %s17, %s24
      %p77 = scmp.eq.s32.totalorder %s76, 0
      %s79 = sadd.s32 %s78, 1
      %s80 = scalar_select %p77, %s78, %s79
      %p83 = pneg %p77
      %p84 = scmp.eq.s32.totalorder %s9, 1
      %p85 = por %p83, %p84
      %p86 = scmp.ne.s32.totalorder %s78, %s81
      %p87 = scmp.eq.s32.totalorder %s9, 0
      %p88 = por %p86, %p87
      %p89 = scmp.ne.s32.totalorder %s78, %s81
      %p90 = scmp.eq.s32.totalorder %s14, 1
      %p91 = por %p89, %p90
      %p92 = scmp.ne.s32.totalorder %s81, %s82
      %p93 = scmp.eq.s32.totalorder %s14, 0
      %p94 = por %p92, %p93
      %p95 = scmp.ne.s32.totalorder %s81, %s82
      %p96 = scmp.eq.s32.totalorder %s15, 1
      %p97 = por %p95, %p96
      %p99 = scmp.ne.s32.totalorder %s82, %s98
      %p100 = scmp.eq.s32.totalorder %s15, 0
      %p101 = por %p99, %p100
      %s102 = ssub.s32 %s16, %s28
      %s103 = ssub.s32 %s17, %s24
      %s104 = sor.u32 %s102, %s103
      %p105 = scmp.eq.s32.totalorder %s104, 0
      %s107 = sadd.s32 %s106, 1
      %s108 = scalar_select %p105, %s106, %s107
      %p111 = pneg %p105
      %p112 = scmp.eq.s32.totalorder %s9, 1
      %p113 = por %p111, %p112
      %p114 = scmp.ne.s32.totalorder %s106, %s109
      %p115 = scmp.eq.s32.totalorder %s9, 0
      %p116 = por %p114, %p115
      %p117 = scmp.ne.s32.totalorder %s106, %s109
      %p118 = scmp.eq.s32.totalorder %s14, 1
      %p119 = por %p117, %p118
      %p120 = scmp.ne.s32.totalorder %s109, %s110
      %p121 = scmp.eq.s32.totalorder %s14, 0
      %p122 = por %p120, %p121
      %p123 = scmp.ne.s32.totalorder %s109, %s110
      %p124 = scmp.eq.s32.totalorder %s15, 1
      %p125 = por %p123, %p124
      %p127 = scmp.ne.s32.totalorder %s110, %s126
      %p128 = scmp.eq.s32.totalorder %s15, 0
      %p129 = por %p127, %p128
      %p130 = scmp.le.s32.totalorder 1, %s9
      %p131 = scmp.lt.s32.totalorder %s9, 3
      %p132 = pnand %p130, %p131
      %p133 = pneg %p132
      // Predicated region
      $region9: #{dec_forward.10} parent=5 // pred_check
        _
      $region10: #{dec_forward.10} parent=5 // pred_check_branch
        %135 = sbr.rel (%p132) target = $region12
      $region11: #{dec_forward.10} parent=5 // pred_region
        %s136 = ssub.s32 %s9, 1
        // Predicated region
        $region13: #{dec_forward.10} parent=11 // pred_check
          %p137 = pneg %p47
        $region14: #{dec_forward.10} parent=11 // pred_check_branch
          %139 = sbr.rel (%p137) target = $region16
        $region15: #{dec_forward.10} parent=11 // pred_region
          %s140 = smul.u32 16, %s18
          %p141 = scmp.lt.s32.totalorder %s140, 15
          %s142 = scalar_select %p141, %s140, 15
          %s143 = smul.addr %s142, 8
          %s144 = scalar_lea.vmem %s0, %s143
          %s145 = smul.u32 16, %s18
        $region16: #{dec_forward.10} parent=11 // pred_fallthru
          _
        // Predicated region
        $region17: #{dec_forward.10} parent=11 // pred_check
          %p146 = pneg %p68
        $region18: #{dec_forward.10} parent=11 // pred_check_branch
          %148 = sbr.rel (%p146) target = $region20
        $region19: #{dec_forward.10} parent=11 // pred_region
          _
        $region20: #{dec_forward.10} parent=11 // pred_fallthru
          _
      $region12: #{dec_forward.10} parent=5 // pred_fallthru
        _
      %p149 = scmp.lt.s32.totalorder %s9, 2
      // Predicated region
      $region21: #{dec_forward.10} parent=5 // pred_check
        %p150 = pneg %p149
      $region22: #{dec_forward.10} parent=5 // pred_check_branch
        %152 = sbr.rel (%p150) target = $region24
      $region23: #{dec_forward.10} parent=5 // pred_region
        // Predicated region
        $region25: #{dec_forward.10} parent=23 // pred_check
          %p153 = pneg %p88
        $region26: #{dec_forward.10} parent=23 // pred_check_branch
          %155 = sbr.rel (%p153) target = $region28
        $region27: #{dec_forward.10} parent=23 // pred_region
          %s156 = sand.u32 %s78, 1
          %s157 = sand.u32 %s78, 1
          %s158 = smul.addr %s157, 256
          %s159 = scalar_lea.vmem [#allocation2], %s158
          %s160 = smul.u32 4, %s17
          %s161 = smul.addr %s160, 4
          %s162 = scalar_lea.vmem %s2, %s161
          // Predicated region
          $region29: #{dec_forward.10} parent=27 // pred_check
            _
          $region30: #{dec_forward.10} parent=27 // pred_check_branch
            %164 = sbr.rel (0) target = $region32
          $region31: #{dec_forward.10} parent=27 // pred_region
            // Predicated region
            $region33: #{dec_forward.10} parent=31 // pred_check
              _
            $region34: #{dec_forward.10} parent=31 // pred_check_branch
              %166 = sbr.rel (0) target = $region36
            $region35: #{dec_forward.10} parent=31 // pred_region
              loop: start=0, step=1, limit=1
              $region37: #{dec_forward.10} parent=35 // loop_pre_header
                _
              $region38: #{dec_forward.10} parent=35 // loop_header
                %s168 = sphi 0, %s172
                %p169 = scmp.ge.s32.totalorder %s168, 1
                %s173 = sphi %s162, %s162
                %s174 = sphi %s159, %s159
              $region39: #{dec_forward.10} parent=35 // loop_header_branch
                %171 = sbr.rel (%p169) target = $region43
              $region40: #{dec_forward.10} parent=35 // loop_body
                %v175 = vld [vmem:[%s173] sm:$0xff]
                %176 = vst [vmem:[%s174] sm:$0xff] %v175
                %v177 = vld [vmem:[%s173 + $0x8] sm:$0xff]
                %178 = vst [vmem:[%s174 + $0x8] sm:$0xff] %v177
                %v179 = vld [vmem:[%s173 + $0x20] sm:$0xff]
                %180 = vst [vmem:[%s174 + $0x10] sm:$0xff] %v179
                %v181 = vld [vmem:[%s173 + $0x28] sm:$0xff]
                %182 = vst [vmem:[%s174 + $0x18] sm:$0xff] %v181
                %v183 = vld [vmem:[%s173 + $0x40] sm:$0xff]
                %184 = vst [vmem:[%s174 + $0x20] sm:$0xff] %v183
                %v185 = vld [vmem:[%s173 + $0x48] sm:$0xff]
                %186 = vst [vmem:[%s174 + $0x28] sm:$0xff] %v185
                %v187 = vld [vmem:[%s173 + $0x60] sm:$0xff]
                %188 = vst [vmem:[%s174 + $0x30] sm:$0xff] %v187
                %v189 = vld [vmem:[%s173 + $0x68] sm:$0xff]
                %190 = vst [vmem:[%s174 + $0x38] sm:$0xff] %v189
                %v191 = vld [vmem:[%s173 + $0x80] sm:$0xff]
                %192 = vst [vmem:[%s174 + $0x40] sm:$0xff] %v191
                %v193 = vld [vmem:[%s173 + $0x88] sm:$0xff]
                %194 = vst [vmem:[%s174 + $0x48] sm:$0xff] %v193
                %v195 = vld [vmem:[%s173 + $0xa0] sm:$0xff]
                %196 = vst [vmem:[%s174 + $0x50] sm:$0xff] %v195
                %v197 = vld [vmem:[%s173 + $0xa8] sm:$0xff]
                %198 = vst [vmem:[%s174 + $0x58] sm:$0xff] %v197
                %v199 = vld [vmem:[%s173 + $0xc0] sm:$0xff]
                %200 = vst [vmem:[%s174 + $0x60] sm:$0xff] %v199
                %v201 = vld [vmem:[%s173 + $0xc8] sm:$0xff]
                %202 = vst [vmem:[%s174 + $0x68] sm:$0xff] %v201
                %v203 = vld [vmem:[%s173 + $0xe0] sm:$0xff]
                %204 = vst [vmem:[%s174 + $0x70] sm:$0xff] %v203
                %v205 = vld [vmem:[%s173 + $0xe8] sm:$0xff]
                %206 = vst [vmem:[%s174 + $0x78] sm:$0xff] %v205
                %v207 = vld [vmem:[%s173 + $0x100] sm:$0xff]
                %208 = vst [vmem:[%s174 + $0x80] sm:$0xff] %v207
                %v209 = vld [vmem:[%s173 + $0x108] sm:$0xff]
                %210 = vst [vmem:[%s174 + $0x88] sm:$0xff] %v209
                %v211 = vld [vmem:[%s173 + $0x120] sm:$0xff]
                %212 = vst [vmem:[%s174 + $0x90] sm:$0xff] %v211
                %v213 = vld [vmem:[%s173 + $0x128] sm:$0xff]
                %214 = vst [vmem:[%s174 + $0x98] sm:$0xff] %v213
                %v215 = vld [vmem:[%s173 + $0x140] sm:$0xff]
                %216 = vst [vmem:[%s174 + $0xa0] sm:$0xff] %v215
                %v217 = vld [vmem:[%s173 + $0x148] sm:$0xff]
                %218 = vst [vmem:[%s174 + $0xa8] sm:$0xff] %v217
                %v219 = vld [vmem:[%s173 + $0x160] sm:$0xff]
                %220 = vst [vmem:[%s174 + $0xb0] sm:$0xff] %v219
                %v221 = vld [vmem:[%s173 + $0x168] sm:$0xff]
                %222 = vst [vmem:[%s174 + $0xb8] sm:$0xff] %v221
                %v223 = vld [vmem:[%s173 + $0x180] sm:$0xff]
                %224 = vst [vmem:[%s174 + $0xc0] sm:$0xff] %v223
                %v225 = vld [vmem:[%s173 + $0x188] sm:$0xff]
                %226 = vst [vmem:[%s174 + $0xc8] sm:$0xff] %v225
                %v227 = vld [vmem:[%s173 + $0x1a0] sm:$0xff]
                %228 = vst [vmem:[%s174 + $0xd0] sm:$0xff] %v227
                %v229 = vld [vmem:[%s173 + $0x1a8] sm:$0xff]
                %230 = vst [vmem:[%s174 + $0xd8] sm:$0xff] %v229
                %v231 = vld [vmem:[%s173 + $0x1c0] sm:$0xff]
                %232 = vst [vmem:[%s174 + $0xe0] sm:$0xff] %v231
                %v233 = vld [vmem:[%s173 + $0x1c8] sm:$0xff]
                %234 = vst [vmem:[%s174 + $0xe8] sm:$0xff] %v233
                %v235 = vld [vmem:[%s173 + $0x1e0] sm:$0xff]
                %236 = vst [vmem:[%s174 + $0xf0] sm:$0xff] %v235
                %v237 = vld [vmem:[%s173 + $0x1e8] sm:$0xff]
                %238 = vst [vmem:[%s174 + $0xf8] sm:$0xff] %v237
              $region41: #{dec_forward.10} parent=35 // loop_footer
                %s172 = sadd.s32 1, %s168
              $region42: #{dec_forward.10} parent=35 // loop_footer_branch
                %167 = sbr.rel target = $region38
              $region43: #{dec_forward.10} parent=35 // loop_exit
                _
            $region36: #{dec_forward.10} parent=31 // pred_fallthru
              _
            // Predicated region
            $region44: #{dec_forward.10} parent=31 // pred_check
              _
            $region45: #{dec_forward.10} parent=31 // pred_check_branch
              %240 = sbr.rel target = $region47
            $region46: #{dec_forward.10} parent=31 // pred_region
              _
            $region47: #{dec_forward.10} parent=31 // pred_fallthru
              _
          $region32: #{dec_forward.10} parent=27 // pred_fallthru
            _
          %241 = vnop
        $region28: #{dec_forward.10} parent=23 // pred_fallthru
          _
      $region24: #{dec_forward.10} parent=5 // pred_fallthru
        _
      %p242 = scmp.le.s32.totalorder 1, %s9
      %p243 = scmp.lt.s32.totalorder %s9, 3
      %p244 = pnand %p242, %p243
      %p245 = pneg %p244
      // Predicated region
      $region48: #{dec_forward.10} parent=5 // pred_check
        _
      $region49: #{dec_forward.10} parent=5 // pred_check_branch
        %247 = sbr.rel (%p244) target = $region51
      $region50: #{dec_forward.10} parent=5 // pred_region
        %s248 = ssub.s32 %s9, 1
        %s249 = sand.u32 %s81, 1
        %s250 = sand.u32 %s81, 1
        %s251 = smul.addr %s250, 256
        %s252 = scalar_lea.vmem [#allocation2], %s251
        // Predicated region
        $region52: #{dec_forward.10} parent=50 // pred_check
          %p253 = pneg %p94
        $region53: #{dec_forward.10} parent=50 // pred_check_branch
          %255 = sbr.rel (%p253) target = $region55
        $region54: #{dec_forward.10} parent=50 // pred_region
          _
        $region55: #{dec_forward.10} parent=50 // pred_fallthru
          _
        %s256 = smul.u32 16, %s18
        %p257 = scmp.lt.s32.totalorder %s256, 15
        %s258 = scalar_select %p257, %s256, 15
        %s259 = smul.addr %s258, 8
        %s260 = scalar_lea.vmem %s0, %s259
        %p261 = pneg %p47
        %p262 = pneg %p44
        %p263 = pneg %p68
        %p264 = pneg %p65
        %s265 = sand.u32 %s81, 1
        %s266 = sand.u32 %s81, 1
        %s267 = smul.addr %s266, 256
        %s268 = scalar_lea.vmem [#allocation2], %s267
        %p269 = pneg %p94
        %p270 = pneg %p91
        %p271 = pneg %p122
        %p272 = pneg %p119
        %s273 = sand.u32 %s109, 1
        %s274 = sand.u32 %s109, 1
        %s275 = smul.addr %s274, 512
        %s276 = scalar_lea.vmem [#allocation3], %s275
        %s277 = smul.u32 16, %s18
        %p278 = scmp.lt.s32.totalorder %s277, 15
        %s279 = scalar_select %p278, %s277, 15
        %s280 = smul.addr %s279, 8
        %s281 = scalar_lea.vmem %s0, %s280
        %s282 = smul.u32 16, %s18
        %s283 = smul.u32 4, %s19
        %s284 = smul.u32 16, %s18
        %s285 = smul.u32 4, %s19
        %v286 = vld [vmem:[%s281] sm:$0xff]
        %v287 = vld [vmem:[%s281 + $0x8] sm:$0xff]
        %v288 = vld [vmem:[%s281 + $0x10] sm:$0xff]
        %v289 = vld [vmem:[%s281 + $0x18] sm:$0xff]
        %v290 = vld [vmem:[%s281 + $0x20] sm:$0xff]
        %v291 = vld [vmem:[%s281 + $0x28] sm:$0xff]
        %v292 = vld [vmem:[%s281 + $0x30] sm:$0xff]
        %v293 = vld [vmem:[%s281 + $0x38] sm:$0xff]
        %v294 = vld [vmem:[%s281 + $0x40] sm:$0xff]
        %v295 = vld [vmem:[%s281 + $0x48] sm:$0xff]
        %v296 = vld [vmem:[%s281 + $0x50] sm:$0xff]
        %v297 = vld [vmem:[%s281 + $0x58] sm:$0xff]
        %v298 = vld [vmem:[%s281 + $0x60] sm:$0xff]
        %v299 = vld [vmem:[%s281 + $0x68] sm:$0xff]
        %v300 = vld [vmem:[%s281 + $0x70] sm:$0xff]
        %v301 = vld [vmem:[%s281 + $0x78] sm:$0xff]
        %v302 = vld [vmem:[%s1] sm:$0x1]
        %v304 = vperm.slane %v302, 0
        %v306 = vadd.f32 %v286, %v304
        %v307 = vadd.f32 %v287, %v304
        %v308 = vadd.f32 %v288, %v304
        %v309 = vadd.f32 %v289, %v304
        %v310 = vadd.f32 %v290, %v304
        %v311 = vadd.f32 %v291, %v304
        %v312 = vadd.f32 %v292, %v304
        %v313 = vadd.f32 %v293, %v304
        %v314 = vadd.f32 %v294, %v304
        %v315 = vadd.f32 %v295, %v304
        %v316 = vadd.f32 %v296, %v304
        %v317 = vadd.f32 %v297, %v304
        %v318 = vadd.f32 %v298, %v304
        %v319 = vadd.f32 %v299, %v304
        %v320 = vadd.f32 %v300, %v304
        %v321 = vadd.f32 %v301, %v304
        %v322 = vmax.f32 %v306, 0.0
        %v323 = vmax.f32 %v307, 0.0
        %v324 = vmax.f32 %v308, 0.0
        %v325 = vmax.f32 %v309, 0.0
        %v326 = vmax.f32 %v310, 0.0
        %v327 = vmax.f32 %v311, 0.0
        %v328 = vmax.f32 %v312, 0.0
        %v329 = vmax.f32 %v313, 0.0
        %v330 = vmax.f32 %v314, 0.0
        %v331 = vmax.f32 %v315, 0.0
        %v332 = vmax.f32 %v316, 0.0
        %v333 = vmax.f32 %v317, 0.0
        %v334 = vmax.f32 %v318, 0.0
        %v335 = vmax.f32 %v319, 0.0
        %v336 = vmax.f32 %v320, 0.0
        %v337 = vmax.f32 %v321, 0.0
        %v338 = vpack.c.bf16 %v323, %v322
        %v339 = vpack.c.bf16 %v325, %v324
        %v340 = vpack.c.bf16 %v327, %v326
        %v341 = vpack.c.bf16 %v329, %v328
        %v342 = vpack.c.bf16 %v331, %v330
        %v343 = vpack.c.bf16 %v333, %v332
        %v344 = vpack.c.bf16 %v335, %v334
        %v345 = vpack.c.bf16 %v337, %v336
        %v346 = vld [vmem:[%s252] sm:$0xff]
        %v347 = vld [vmem:[%s252 + $0x8] sm:$0xff]
        %v348 = vld [vmem:[%s252 + $0x10] sm:$0xff]
        %v349 = vld [vmem:[%s252 + $0x18] sm:$0xff]
        %v350 = vld [vmem:[%s252 + $0x20] sm:$0xff]
        %v351 = vld [vmem:[%s252 + $0x28] sm:$0xff]
        %v352 = vld [vmem:[%s252 + $0x30] sm:$0xff]
        %v353 = vld [vmem:[%s252 + $0x38] sm:$0xff]
        %v354 = vld [vmem:[%s252 + $0x40] sm:$0xff]
        %v355 = vld [vmem:[%s252 + $0x48] sm:$0xff]
        %v356 = vld [vmem:[%s252 + $0x50] sm:$0xff]
        %v357 = vld [vmem:[%s252 + $0x58] sm:$0xff]
        %v358 = vld [vmem:[%s252 + $0x60] sm:$0xff]
        %v359 = vld [vmem:[%s252 + $0x68] sm:$0xff]
        %v360 = vld [vmem:[%s252 + $0x70] sm:$0xff]
        %v361 = vld [vmem:[%s252 + $0x78] sm:$0xff]
        %v362 = vld [vmem:[%s252 + $0x80] sm:$0xff]
        %v363 = vld [vmem:[%s252 + $0x88] sm:$0xff]
        %v364 = vld [vmem:[%s252 + $0x90] sm:$0xff]
        %v365 = vld [vmem:[%s252 + $0x98] sm:$0xff]
        %v366 = vld [vmem:[%s252 + $0xa0] sm:$0xff]
        %v367 = vld [vmem:[%s252 + $0xa8] sm:$0xff]
        %v368 = vld [vmem:[%s252 + $0xb0] sm:$0xff]
        %v369 = vld [vmem:[%s252 + $0xb8] sm:$0xff]
        %v370 = vld [vmem:[%s252 + $0xc0] sm:$0xff]
        %v371 = vld [vmem:[%s252 + $0xc8] sm:$0xff]
        %v372 = vld [vmem:[%s252 + $0xd0] sm:$0xff]
        %v373 = vld [vmem:[%s252 + $0xd8] sm:$0xff]
        %v374 = vld [vmem:[%s252 + $0xe0] sm:$0xff]
        %v375 = vld [vmem:[%s252 + $0xe8] sm:$0xff]
        %v376 = vld [vmem:[%s252 + $0xf0] sm:$0xff]
        %v377 = vld [vmem:[%s252 + $0xf8] sm:$0xff]
        %v410 = vunpack.c.l.b16 %v346
        %v411 = vunpack.c.h.b16 %v346
        %v412 = vunpack.c.l.b16 %v347
        %v413 = vunpack.c.h.b16 %v347
        %v414 = vunpack.c.l.b16 %v348
        %v415 = vunpack.c.h.b16 %v348
        %v416 = vunpack.c.l.b16 %v349
        %v417 = vunpack.c.h.b16 %v349
        %v418 = vunpack.c.l.b16 %v350
        %v419 = vunpack.c.h.b16 %v350
        %v420 = vunpack.c.l.b16 %v351
        %v421 = vunpack.c.h.b16 %v351
        %v422 = vunpack.c.l.b16 %v352
        %v423 = vunpack.c.h.b16 %v352
        %v424 = vunpack.c.l.b16 %v353
        %v425 = vunpack.c.h.b16 %v353
        %v426 = vunpack.c.l.b16 %v354
        %v427 = vunpack.c.h.b16 %v354
        %v428 = vunpack.c.l.b16 %v355
        %v429 = vunpack.c.h.b16 %v355
        %v430 = vunpack.c.l.b16 %v356
        %v431 = vunpack.c.h.b16 %v356
        %v432 = vunpack.c.l.b16 %v357
        %v433 = vunpack.c.h.b16 %v357
        %v434 = vunpack.c.l.b16 %v358
        %v435 = vunpack.c.h.b16 %v358
        %v436 = vunpack.c.l.b16 %v359
        %v437 = vunpack.c.h.b16 %v359
        %v438 = vunpack.c.l.b16 %v360
        %v439 = vunpack.c.h.b16 %v360
        %v440 = vunpack.c.l.b16 %v361
        %v441 = vunpack.c.h.b16 %v361
        %v442 = vunpack.c.l.b16 %v362
        %v443 = vunpack.c.h.b16 %v362
        %v444 = vunpack.c.l.b16 %v363
        %v445 = vunpack.c.h.b16 %v363
        %v446 = vunpack.c.l.b16 %v364
        %v447 = vunpack.c.h.b16 %v364
        %v448 = vunpack.c.l.b16 %v365
        %v449 = vunpack.c.h.b16 %v365
        %v450 = vunpack.c.l.b16 %v366
        %v451 = vunpack.c.h.b16 %v366
        %v452 = vunpack.c.l.b16 %v367
        %v453 = vunpack.c.h.b16 %v367
        %v454 = vunpack.c.l.b16 %v368
        %v455 = vunpack.c.h.b16 %v368
        %v456 = vunpack.c.l.b16 %v369
        %v457 = vunpack.c.h.b16 %v369
        %v458 = vunpack.c.l.b16 %v370
        %v459 = vunpack.c.h.b16 %v370
        %v460 = vunpack.c.l.b16 %v371
        %v461 = vunpack.c.h.b16 %v371
        %v462 = vunpack.c.l.b16 %v372
        %v463 = vunpack.c.h.b16 %v372
        %v464 = vunpack.c.l.b16 %v373
        %v465 = vunpack.c.h.b16 %v373
        %v466 = vunpack.c.l.b16 %v374
        %v467 = vunpack.c.h.b16 %v374
        %v468 = vunpack.c.l.b16 %v375
        %v469 = vunpack.c.h.b16 %v375
        %v470 = vunpack.c.l.b16 %v376
        %v471 = vunpack.c.h.b16 %v376
        %v472 = vunpack.c.l.b16 %v377
        %v473 = vunpack.c.h.b16 %v377
        %v474 = vpack.c.b16 %v414, %v410
        %v475 = vpack.c.b16 %v415, %v411
        %v476 = vpack.c.b16 %v416, %v412
        %v477 = vpack.c.b16 %v417, %v413
        %v478 = vpack.c.b16 %v422, %v418
        %v479 = vpack.c.b16 %v423, %v419
        %v480 = vpack.c.b16 %v424, %v420
        %v481 = vpack.c.b16 %v425, %v421
        %v482 = vpack.c.b16 %v430, %v426
        %v483 = vpack.c.b16 %v431, %v427
        %v484 = vpack.c.b16 %v432, %v428
        %v485 = vpack.c.b16 %v433, %v429
        %v486 = vpack.c.b16 %v438, %v434
        %v487 = vpack.c.b16 %v439, %v435
        %v488 = vpack.c.b16 %v440, %v436
        %v489 = vpack.c.b16 %v441, %v437
        %v490 = vpack.c.b16 %v446, %v442
        %v491 = vpack.c.b16 %v447, %v443
        %v492 = vpack.c.b16 %v448, %v444
        %v493 = vpack.c.b16 %v449, %v445
        %v494 = vpack.c.b16 %v454, %v450
        %v495 = vpack.c.b16 %v455, %v451
        %v496 = vpack.c.b16 %v456, %v452
        %v497 = vpack.c.b16 %v457, %v453
        %v498 = vpack.c.b16 %v462, %v458
        %v499 = vpack.c.b16 %v463, %v459
        %v500 = vpack.c.b16 %v464, %v460
        %v501 = vpack.c.b16 %v465, %v461
        %v502 = vpack.c.b16 %v470, %v466
        %v503 = vpack.c.b16 %v471, %v467
        %v504 = vpack.c.b16 %v472, %v468
        %v505 = vpack.c.b16 %v473, %v469
        %538 = vmatpush.bf16.msra.mxu0 %v502
        %539 = vmatpush.bf16.msra.mxu0 %v498
        %540 = vmatpush.bf16.msra.mxu0 %v494
        %541 = vmatpush.bf16.msra.mxu0 %v490
        %542 = vmatpush.bf16.msra.mxu0 %v486
        %543 = vmatpush.bf16.msra.mxu0 %v482
        %544 = vmatpush.bf16.msra.mxu0 %v478
        %545 = vmatpush.bf16.msra.mxu0 %v474
        %546 = vmatmul.bf16.gmra.mxu0 %v338
        %v547 = vpop.f32.mrf.mxu0
        %v548 = vadd.f32 0.0, %v547
        %v549 = vpop.f32.mrf.mxu0
        %v550 = vadd.f32 0.0, %v549
        %551 = vmatmul.bf16.gmra.mxu0 %v339
        %v552 = vpop.f32.mrf.mxu0
        %v553 = vadd.f32 0.0, %v552
        %v554 = vpop.f32.mrf.mxu0
        %v555 = vadd.f32 0.0, %v554
        %556 = vmatmul.bf16.gmra.mxu0 %v340
        %v557 = vpop.f32.mrf.mxu0
        %v558 = vadd.f32 0.0, %v557
        %v559 = vpop.f32.mrf.mxu0
        %v560 = vadd.f32 0.0, %v559
        %561 = vmatmul.bf16.gmra.mxu0 %v341
        %v562 = vpop.f32.mrf.mxu0
        %v563 = vadd.f32 0.0, %v562
        %v564 = vpop.f32.mrf.mxu0
        %v565 = vadd.f32 0.0, %v564
        %566 = vmatmul.bf16.gmra.mxu0 %v342
        %v567 = vpop.f32.mrf.mxu0
        %v568 = vadd.f32 0.0, %v567
        %v569 = vpop.f32.mrf.mxu0
        %v570 = vadd.f32 0.0, %v569
        %571 = vmatmul.bf16.gmra.mxu0 %v343
        %v572 = vpop.f32.mrf.mxu0
        %v573 = vadd.f32 0.0, %v572
        %v574 = vpop.f32.mrf.mxu0
        %v575 = vadd.f32 0.0, %v574
        %576 = vmatmul.bf16.gmra.mxu0 %v344
        %v577 = vpop.f32.mrf.mxu0
        %v578 = vadd.f32 0.0, %v577
        %v579 = vpop.f32.mrf.mxu0
        %v580 = vadd.f32 0.0, %v579
        %581 = vmatmul.bf16.gmra.mxu0 %v345
        %v582 = vpop.f32.mrf.mxu0
        %v583 = vadd.f32 0.0, %v582
        %v584 = vpop.f32.mrf.mxu0
        %v585 = vadd.f32 0.0, %v584
        %586 = vdwg.mxu0
        %587 = vmatpush.bf16.msra.mxu0 %v503
        %588 = vmatpush.bf16.msra.mxu0 %v499
        %589 = vmatpush.bf16.msra.mxu0 %v495
        %590 = vmatpush.bf16.msra.mxu0 %v491
        %591 = vmatpush.bf16.msra.mxu0 %v487
        %592 = vmatpush.bf16.msra.mxu0 %v483
        %593 = vmatpush.bf16.msra.mxu0 %v479
        %594 = vmatpush.bf16.msra.mxu0 %v475
        %595 = vmatmul.bf16.gmra.mxu0 %v338
        %v596 = vpop.f32.mrf.mxu0
        %v597 = vadd.f32 0.0, %v596
        %v598 = vpop.f32.mrf.mxu0
        %v599 = vadd.f32 0.0, %v598
        %600 = vmatmul.bf16.gmra.mxu0 %v339
        %v601 = vpop.f32.mrf.mxu0
        %v602 = vadd.f32 0.0, %v601
        %v603 = vpop.f32.mrf.mxu0
        %v604 = vadd.f32 0.0, %v603
        %605 = vmatmul.bf16.gmra.mxu0 %v340
        %v606 = vpop.f32.mrf.mxu0
        %v607 = vadd.f32 0.0, %v606
        %v608 = vpop.f32.mrf.mxu0
        %v609 = vadd.f32 0.0, %v608
        %610 = vmatmul.bf16.gmra.mxu0 %v341
        %v611 = vpop.f32.mrf.mxu0
        %v612 = vadd.f32 0.0, %v611
        %v613 = vpop.f32.mrf.mxu0
        %v614 = vadd.f32 0.0, %v613
        %615 = vmatmul.bf16.gmra.mxu0 %v342
        %v616 = vpop.f32.mrf.mxu0
        %v617 = vadd.f32 0.0, %v616
        %v618 = vpop.f32.mrf.mxu0
        %v619 = vadd.f32 0.0, %v618
        %620 = vmatmul.bf16.gmra.mxu0 %v343
        %v621 = vpop.f32.mrf.mxu0
        %v622 = vadd.f32 0.0, %v621
        %v623 = vpop.f32.mrf.mxu0
        %v624 = vadd.f32 0.0, %v623
        %625 = vmatmul.bf16.gmra.mxu0 %v344
        %v626 = vpop.f32.mrf.mxu0
        %v627 = vadd.f32 0.0, %v626
        %v628 = vpop.f32.mrf.mxu0
        %v629 = vadd.f32 0.0, %v628
        %630 = vmatmul.bf16.gmra.mxu0 %v345
        %v631 = vpop.f32.mrf.mxu0
        %v632 = vadd.f32 0.0, %v631
        %v633 = vpop.f32.mrf.mxu0
        %v634 = vadd.f32 0.0, %v633
        %635 = vdwg.mxu0
        %636 = vmatpush.bf16.msra.mxu0 %v504
        %637 = vmatpush.bf16.msra.mxu0 %v500
        %638 = vmatpush.bf16.msra.mxu0 %v496
        %639 = vmatpush.bf16.msra.mxu0 %v492
        %640 = vmatpush.bf16.msra.mxu0 %v488
        %641 = vmatpush.bf16.msra.mxu0 %v484
        %642 = vmatpush.bf16.msra.mxu0 %v480
        %643 = vmatpush.bf16.msra.mxu0 %v476
        %644 = vmatmul.bf16.gmra.mxu0 %v338
        %v645 = vpop.f32.mrf.mxu0
        %v646 = vadd.f32 0.0, %v645
        %v647 = vpop.f32.mrf.mxu0
        %v648 = vadd.f32 0.0, %v647
        %649 = vmatmul.bf16.gmra.mxu0 %v339
        %v650 = vpop.f32.mrf.mxu0
        %v651 = vadd.f32 0.0, %v650
        %v652 = vpop.f32.mrf.mxu0
        %v653 = vadd.f32 0.0, %v652
        %654 = vmatmul.bf16.gmra.mxu0 %v340
        %v655 = vpop.f32.mrf.mxu0
        %v656 = vadd.f32 0.0, %v655
        %v657 = vpop.f32.mrf.mxu0
        %v658 = vadd.f32 0.0, %v657
        %659 = vmatmul.bf16.gmra.mxu0 %v341
        %v660 = vpop.f32.mrf.mxu0
        %v661 = vadd.f32 0.0, %v660
        %v662 = vpop.f32.mrf.mxu0
        %v663 = vadd.f32 0.0, %v662
        %664 = vmatmul.bf16.gmra.mxu0 %v342
        %v665 = vpop.f32.mrf.mxu0
        %v666 = vadd.f32 0.0, %v665
        %v667 = vpop.f32.mrf.mxu0
        %v668 = vadd.f32 0.0, %v667
        %669 = vmatmul.bf16.gmra.mxu0 %v343
        %v670 = vpop.f32.mrf.mxu0
        %v671 = vadd.f32 0.0, %v670
        %v672 = vpop.f32.mrf.mxu0
        %v673 = vadd.f32 0.0, %v672
        %674 = vmatmul.bf16.gmra.mxu0 %v344
        %v675 = vpop.f32.mrf.mxu0
        %v676 = vadd.f32 0.0, %v675
        %v677 = vpop.f32.mrf.mxu0
        %v678 = vadd.f32 0.0, %v677
        %679 = vmatmul.bf16.gmra.mxu0 %v345
        %v680 = vpop.f32.mrf.mxu0
        %v681 = vadd.f32 0.0, %v680
        %v682 = vpop.f32.mrf.mxu0
        %v683 = vadd.f32 0.0, %v682
        %684 = vdwg.mxu0
        %685 = vmatpush.bf16.msra.mxu0 %v505
        %686 = vmatpush.bf16.msra.mxu0 %v501
        %687 = vmatpush.bf16.msra.mxu0 %v497
        %688 = vmatpush.bf16.msra.mxu0 %v493
        %689 = vmatpush.bf16.msra.mxu0 %v489
        %690 = vmatpush.bf16.msra.mxu0 %v485
        %691 = vmatpush.bf16.msra.mxu0 %v481
        %692 = vmatpush.bf16.msra.mxu0 %v477
        %693 = vmatmul.bf16.gmra.mxu0 %v338
        %v694 = vpop.f32.mrf.mxu0
        %v695 = vadd.f32 0.0, %v694
        %v696 = vpop.f32.mrf.mxu0
        %v697 = vadd.f32 0.0, %v696
        %698 = vmatmul.bf16.gmra.mxu0 %v339
        %v699 = vpop.f32.mrf.mxu0
        %v700 = vadd.f32 0.0, %v699
        %v701 = vpop.f32.mrf.mxu0
        %v702 = vadd.f32 0.0, %v701
        %703 = vmatmul.bf16.gmra.mxu0 %v340
        %v704 = vpop.f32.mrf.mxu0
        %v705 = vadd.f32 0.0, %v704
        %v706 = vpop.f32.mrf.mxu0
        %v707 = vadd.f32 0.0, %v706
        %708 = vmatmul.bf16.gmra.mxu0 %v341
        %v709 = vpop.f32.mrf.mxu0
        %v710 = vadd.f32 0.0, %v709
        %v711 = vpop.f32.mrf.mxu0
        %v712 = vadd.f32 0.0, %v711
        %713 = vmatmul.bf16.gmra.mxu0 %v342
        %v714 = vpop.f32.mrf.mxu0
        %v715 = vadd.f32 0.0, %v714
        %v716 = vpop.f32.mrf.mxu0
        %v717 = vadd.f32 0.0, %v716
        %718 = vmatmul.bf16.gmra.mxu0 %v343
        %v719 = vpop.f32.mrf.mxu0
        %v720 = vadd.f32 0.0, %v719
        %v721 = vpop.f32.mrf.mxu0
        %v722 = vadd.f32 0.0, %v721
        %723 = vmatmul.bf16.gmra.mxu0 %v344
        %v724 = vpop.f32.mrf.mxu0
        %v725 = vadd.f32 0.0, %v724
        %v726 = vpop.f32.mrf.mxu0
        %v727 = vadd.f32 0.0, %v726
        %728 = vmatmul.bf16.gmra.mxu0 %v345
        %v729 = vpop.f32.mrf.mxu0
        %v730 = vadd.f32 0.0, %v729
        %v731 = vpop.f32.mrf.mxu0
        %v732 = vadd.f32 0.0, %v731
        %733 = vdwg.mxu0
        %734 = vst [vmem:[%s276] sm:$0xff] %v548
        %735 = vst [vmem:[%s276 + $0x8] sm:$0xff] %v597
        %736 = vst [vmem:[%s276 + $0x10] sm:$0xff] %v646
        %737 = vst [vmem:[%s276 + $0x18] sm:$0xff] %v695
        %738 = vst [vmem:[%s276 + $0x20] sm:$0xff] %v550
        %739 = vst [vmem:[%s276 + $0x28] sm:$0xff] %v599
        %740 = vst [vmem:[%s276 + $0x30] sm:$0xff] %v648
        %741 = vst [vmem:[%s276 + $0x38] sm:$0xff] %v697
        %742 = vst [vmem:[%s276 + $0x40] sm:$0xff] %v553
        %743 = vst [vmem:[%s276 + $0x48] sm:$0xff] %v602
        %744 = vst [vmem:[%s276 + $0x50] sm:$0xff] %v651
        %745 = vst [vmem:[%s276 + $0x58] sm:$0xff] %v700
        %746 = vst [vmem:[%s276 + $0x60] sm:$0xff] %v555
        %747 = vst [vmem:[%s276 + $0x68] sm:$0xff] %v604
        %748 = vst [vmem:[%s276 + $0x70] sm:$0xff] %v653
        %749 = vst [vmem:[%s276 + $0x78] sm:$0xff] %v702
        %750 = vst [vmem:[%s276 + $0x80] sm:$0xff] %v558
        %751 = vst [vmem:[%s276 + $0x88] sm:$0xff] %v607
        %752 = vst [vmem:[%s276 + $0x90] sm:$0xff] %v656
        %753 = vst [vmem:[%s276 + $0x98] sm:$0xff] %v705
        %754 = vst [vmem:[%s276 + $0xa0] sm:$0xff] %v560
        %755 = vst [vmem:[%s276 + $0xa8] sm:$0xff] %v609
        %756 = vst [vmem:[%s276 + $0xb0] sm:$0xff] %v658
        %757 = vst [vmem:[%s276 + $0xb8] sm:$0xff] %v707
        %758 = vst [vmem:[%s276 + $0xc0] sm:$0xff] %v563
        %759 = vst [vmem:[%s276 + $0xc8] sm:$0xff] %v612
        %760 = vst [vmem:[%s276 + $0xd0] sm:$0xff] %v661
        %761 = vst [vmem:[%s276 + $0xd8] sm:$0xff] %v710
        %762 = vst [vmem:[%s276 + $0xe0] sm:$0xff] %v565
        %763 = vst [vmem:[%s276 + $0xe8] sm:$0xff] %v614
        %764 = vst [vmem:[%s276 + $0xf0] sm:$0xff] %v663
        %765 = vst [vmem:[%s276 + $0xf8] sm:$0xff] %v712
        %766 = vst [vmem:[%s276 + $0x100] sm:$0xff] %v568
        %767 = vst [vmem:[%s276 + $0x108] sm:$0xff] %v617
        %768 = vst [vmem:[%s276 + $0x110] sm:$0xff] %v666
        %769 = vst [vmem:[%s276 + $0x118] sm:$0xff] %v715
        %770 = vst [vmem:[%s276 + $0x120] sm:$0xff] %v570
        %771 = vst [vmem:[%s276 + $0x128] sm:$0xff] %v619
        %772 = vst [vmem:[%s276 + $0x130] sm:$0xff] %v668
        %773 = vst [vmem:[%s276 + $0x138] sm:$0xff] %v717
        %774 = vst [vmem:[%s276 + $0x140] sm:$0xff] %v573
        %775 = vst [vmem:[%s276 + $0x148] sm:$0xff] %v622
        %776 = vst [vmem:[%s276 + $0x150] sm:$0xff] %v671
        %777 = vst [vmem:[%s276 + $0x158] sm:$0xff] %v720
        %778 = vst [vmem:[%s276 + $0x160] sm:$0xff] %v575
        %779 = vst [vmem:[%s276 + $0x168] sm:$0xff] %v624
        %780 = vst [vmem:[%s276 + $0x170] sm:$0xff] %v673
        %781 = vst [vmem:[%s276 + $0x178] sm:$0xff] %v722
        %782 = vst [vmem:[%s276 + $0x180] sm:$0xff] %v578
        %783 = vst [vmem:[%s276 + $0x188] sm:$0xff] %v627
        %784 = vst [vmem:[%s276 + $0x190] sm:$0xff] %v676
        %785 = vst [vmem:[%s276 + $0x198] sm:$0xff] %v725
        %786 = vst [vmem:[%s276 + $0x1a0] sm:$0xff] %v580
        %787 = vst [vmem:[%s276 + $0x1a8] sm:$0xff] %v629
        %788 = vst [vmem:[%s276 + $0x1b0] sm:$0xff] %v678
        %789 = vst [vmem:[%s276 + $0x1b8] sm:$0xff] %v727
        %790 = vst [vmem:[%s276 + $0x1c0] sm:$0xff] %v583
        %791 = vst [vmem:[%s276 + $0x1c8] sm:$0xff] %v632
        %792 = vst [vmem:[%s276 + $0x1d0] sm:$0xff] %v681
        %793 = vst [vmem:[%s276 + $0x1d8] sm:$0xff] %v730
        %794 = vst [vmem:[%s276 + $0x1e0] sm:$0xff] %v585
        %795 = vst [vmem:[%s276 + $0x1e8] sm:$0xff] %v634
        %796 = vst [vmem:[%s276 + $0x1f0] sm:$0xff] %v683
        %797 = vst [vmem:[%s276 + $0x1f8] sm:$0xff] %v732
        %s798 = sand.u32 %s109, 1
        %s799 = sand.u32 %s109, 1
        %s800 = smul.addr %s799, 512
        %s801 = scalar_lea.vmem [#allocation3], %s800
        // Predicated region
        $region56: #{dec_forward.10} parent=50 // pred_check
          %p802 = pneg %p119
        $region57: #{dec_forward.10} parent=50 // pred_check_branch
          %804 = sbr.rel (%p802) target = $region59
        $region58: #{dec_forward.10} parent=50 // pred_region
          %s805 = smul.u32 16, %s18
          %s806 = smul.u32 4, %s19
          %s807 = smul.addr %s805, 8
          %s808 = sadd.s32 %s806, %s807
          %s809 = smul.addr %s808, 8
          %s810 = scalar_lea.vmem %s3, %s809
          // Predicated region
          $region60: #{dec_forward.10} parent=58 // pred_check
            _
          $region61: #{dec_forward.10} parent=58 // pred_check_branch
            %812 = sbr.rel (0) target = $region63
          $region62: #{dec_forward.10} parent=58 // pred_region
            // Predicated region
            $region64: #{dec_forward.10} parent=62 // pred_check
              _
            $region65: #{dec_forward.10} parent=62 // pred_check_branch
              %814 = sbr.rel (0) target = $region67
            $region66: #{dec_forward.10} parent=62 // pred_region
              loop: start=0, step=1, limit=1
              $region68: #{dec_forward.10} parent=66 // loop_pre_header
                _
              $region69: #{dec_forward.10} parent=66 // loop_header
                %s816 = sphi 0, %s820
                %p817 = scmp.ge.s32.totalorder %s816, 1
                %s821 = sphi %s801, %s801
                %s822 = sphi %s810, %s810
              $region70: #{dec_forward.10} parent=66 // loop_header_branch
                %819 = sbr.rel (%p817) target = $region74
              $region71: #{dec_forward.10} parent=66 // loop_body
                %v823 = vld [vmem:[%s821] sm:$0xff]
                %824 = vst [vmem:[%s822] sm:$0xff] %v823
                %v825 = vld [vmem:[%s821 + $0x8] sm:$0xff]
                %826 = vst [vmem:[%s822 + $0x8] sm:$0xff] %v825
                %v827 = vld [vmem:[%s821 + $0x10] sm:$0xff]
                %828 = vst [vmem:[%s822 + $0x10] sm:$0xff] %v827
                %v829 = vld [vmem:[%s821 + $0x18] sm:$0xff]
                %830 = vst [vmem:[%s822 + $0x18] sm:$0xff] %v829
                %v831 = vld [vmem:[%s821 + $0x20] sm:$0xff]
                %832 = vst [vmem:[%s822 + $0x40] sm:$0xff] %v831
                %v833 = vld [vmem:[%s821 + $0x28] sm:$0xff]
                %834 = vst [vmem:[%s822 + $0x48] sm:$0xff] %v833
                %v835 = vld [vmem:[%s821 + $0x30] sm:$0xff]
                %836 = vst [vmem:[%s822 + $0x50] sm:$0xff] %v835
                %v837 = vld [vmem:[%s821 + $0x38] sm:$0xff]
                %838 = vst [vmem:[%s822 + $0x58] sm:$0xff] %v837
                %v839 = vld [vmem:[%s821 + $0x40] sm:$0xff]
                %840 = vst [vmem:[%s822 + $0x80] sm:$0xff] %v839
                %v841 = vld [vmem:[%s821 + $0x48] sm:$0xff]
                %842 = vst [vmem:[%s822 + $0x88] sm:$0xff] %v841
                %v843 = vld [vmem:[%s821 + $0x50] sm:$0xff]
                %844 = vst [vmem:[%s822 + $0x90] sm:$0xff] %v843
                %v845 = vld [vmem:[%s821 + $0x58] sm:$0xff]
                %846 = vst [vmem:[%s822 + $0x98] sm:$0xff] %v845
                %v847 = vld [vmem:[%s821 + $0x60] sm:$0xff]
                %848 = vst [vmem:[%s822 + $0xc0] sm:$0xff] %v847
                %v849 = vld [vmem:[%s821 + $0x68] sm:$0xff]
                %850 = vst [vmem:[%s822 + $0xc8] sm:$0xff] %v849
                %v851 = vld [vmem:[%s821 + $0x70] sm:$0xff]
                %852 = vst [vmem:[%s822 + $0xd0] sm:$0xff] %v851
                %v853 = vld [vmem:[%s821 + $0x78] sm:$0xff]
                %854 = vst [vmem:[%s822 + $0xd8] sm:$0xff] %v853
                %v855 = vld [vmem:[%s821 + $0x80] sm:$0xff]
                %856 = vst [vmem:[%s822 + $0x100] sm:$0xff] %v855
                %v857 = vld [vmem:[%s821 + $0x88] sm:$0xff]
                %858 = vst [vmem:[%s822 + $0x108] sm:$0xff] %v857
                %v859 = vld [vmem:[%s821 + $0x90] sm:$0xff]
                %860 = vst [vmem:[%s822 + $0x110] sm:$0xff] %v859
                %v861 = vld [vmem:[%s821 + $0x98] sm:$0xff]
                %862 = vst [vmem:[%s822 + $0x118] sm:$0xff] %v861
                %v863 = vld [vmem:[%s821 + $0xa0] sm:$0xff]
                %864 = vst [vmem:[%s822 + $0x140] sm:$0xff] %v863
                %v865 = vld [vmem:[%s821 + $0xa8] sm:$0xff]
                %866 = vst [vmem:[%s822 + $0x148] sm:$0xff] %v865
                %v867 = vld [vmem:[%s821 + $0xb0] sm:$0xff]
                %868 = vst [vmem:[%s822 + $0x150] sm:$0xff] %v867
                %v869 = vld [vmem:[%s821 + $0xb8] sm:$0xff]
                %870 = vst [vmem:[%s822 + $0x158] sm:$0xff] %v869
                %v871 = vld [vmem:[%s821 + $0xc0] sm:$0xff]
                %872 = vst [vmem:[%s822 + $0x180] sm:$0xff] %v871
                %v873 = vld [vmem:[%s821 + $0xc8] sm:$0xff]
                %874 = vst [vmem:[%s822 + $0x188] sm:$0xff] %v873
                %v875 = vld [vmem:[%s821 + $0xd0] sm:$0xff]
                %876 = vst [vmem:[%s822 + $0x190] sm:$0xff] %v875
                %v877 = vld [vmem:[%s821 + $0xd8] sm:$0xff]
                %878 = vst [vmem:[%s822 + $0x198] sm:$0xff] %v877
                %v879 = vld [vmem:[%s821 + $0xe0] sm:$0xff]
                %880 = vst [vmem:[%s822 + $0x1c0] sm:$0xff] %v879
                %v881 = vld [vmem:[%s821 + $0xe8] sm:$0xff]
                %882 = vst [vmem:[%s822 + $0x1c8] sm:$0xff] %v881
                %v883 = vld [vmem:[%s821 + $0xf0] sm:$0xff]
                %884 = vst [vmem:[%s822 + $0x1d0] sm:$0xff] %v883
                %v885 = vld [vmem:[%s821 + $0xf8] sm:$0xff]
                %886 = vst [vmem:[%s822 + $0x1d8] sm:$0xff] %v885
                %v887 = vld [vmem:[%s821 + $0x100] sm:$0xff]
                %888 = vst [vmem:[%s822 + $0x200] sm:$0xff] %v887
                %v889 = vld [vmem:[%s821 + $0x108] sm:$0xff]
                %890 = vst [vmem:[%s822 + $0x208] sm:$0xff] %v889
                %v891 = vld [vmem:[%s821 + $0x110] sm:$0xff]
                %892 = vst [vmem:[%s822 + $0x210] sm:$0xff] %v891
                %v893 = vld [vmem:[%s821 + $0x118] sm:$0xff]
                %894 = vst [vmem:[%s822 + $0x218] sm:$0xff] %v893
                %v895 = vld [vmem:[%s821 + $0x120] sm:$0xff]
                %896 = vst [vmem:[%s822 + $0x240] sm:$0xff] %v895
                %v897 = vld [vmem:[%s821 + $0x128] sm:$0xff]
                %898 = vst [vmem:[%s822 + $0x248] sm:$0xff] %v897
                %v899 = vld [vmem:[%s821 + $0x130] sm:$0xff]
                %900 = vst [vmem:[%s822 + $0x250] sm:$0xff] %v899
                %v901 = vld [vmem:[%s821 + $0x138] sm:$0xff]
                %902 = vst [vmem:[%s822 + $0x258] sm:$0xff] %v901
                %v903 = vld [vmem:[%s821 + $0x140] sm:$0xff]
                %904 = vst [vmem:[%s822 + $0x280] sm:$0xff] %v903
                %v905 = vld [vmem:[%s821 + $0x148] sm:$0xff]
                %906 = vst [vmem:[%s822 + $0x288] sm:$0xff] %v905
                %v907 = vld [vmem:[%s821 + $0x150] sm:$0xff]
                %908 = vst [vmem:[%s822 + $0x290] sm:$0xff] %v907
                %v909 = vld [vmem:[%s821 + $0x158] sm:$0xff]
                %910 = vst [vmem:[%s822 + $0x298] sm:$0xff] %v909
                %v911 = vld [vmem:[%s821 + $0x160] sm:$0xff]
                %912 = vst [vmem:[%s822 + $0x2c0] sm:$0xff] %v911
                %v913 = vld [vmem:[%s821 + $0x168] sm:$0xff]
                %914 = vst [vmem:[%s822 + $0x2c8] sm:$0xff] %v913
                %v915 = vld [vmem:[%s821 + $0x170] sm:$0xff]
                %916 = vst [vmem:[%s822 + $0x2d0] sm:$0xff] %v915
                %v917 = vld [vmem:[%s821 + $0x178] sm:$0xff]
                %918 = vst [vmem:[%s822 + $0x2d8] sm:$0xff] %v917
                %v919 = vld [vmem:[%s821 + $0x180] sm:$0xff]
                %920 = vst [vmem:[%s822 + $0x300] sm:$0xff] %v919
                %v921 = vld [vmem:[%s821 + $0x188] sm:$0xff]
                %922 = vst [vmem:[%s822 + $0x308] sm:$0xff] %v921
                %v923 = vld [vmem:[%s821 + $0x190] sm:$0xff]
                %924 = vst [vmem:[%s822 + $0x310] sm:$0xff] %v923
                %v925 = vld [vmem:[%s821 + $0x198] sm:$0xff]
                %926 = vst [vmem:[%s822 + $0x318] sm:$0xff] %v925
                %v927 = vld [vmem:[%s821 + $0x1a0] sm:$0xff]
                %928 = vst [vmem:[%s822 + $0x340] sm:$0xff] %v927
                %v929 = vld [vmem:[%s821 + $0x1a8] sm:$0xff]
                %930 = vst [vmem:[%s822 + $0x348] sm:$0xff] %v929
                %v931 = vld [vmem:[%s821 + $0x1b0] sm:$0xff]
                %932 = vst [vmem:[%s822 + $0x350] sm:$0xff] %v931
                %v933 = vld [vmem:[%s821 + $0x1b8] sm:$0xff]
                %934 = vst [vmem:[%s822 + $0x358] sm:$0xff] %v933
                %v935 = vld [vmem:[%s821 + $0x1c0] sm:$0xff]
                %936 = vst [vmem:[%s822 + $0x380] sm:$0xff] %v935
                %v937 = vld [vmem:[%s821 + $0x1c8] sm:$0xff]
                %938 = vst [vmem:[%s822 + $0x388] sm:$0xff] %v937
                %v939 = vld [vmem:[%s821 + $0x1d0] sm:$0xff]
                %940 = vst [vmem:[%s822 + $0x390] sm:$0xff] %v939
                %v941 = vld [vmem:[%s821 + $0x1d8] sm:$0xff]
                %942 = vst [vmem:[%s822 + $0x398] sm:$0xff] %v941
                %v943 = vld [vmem:[%s821 + $0x1e0] sm:$0xff]
                %944 = vst [vmem:[%s822 + $0x3c0] sm:$0xff] %v943
                %v945 = vld [vmem:[%s821 + $0x1e8] sm:$0xff]
                %946 = vst [vmem:[%s822 + $0x3c8] sm:$0xff] %v945
                %v947 = vld [vmem:[%s821 + $0x1f0] sm:$0xff]
                %948 = vst [vmem:[%s822 + $0x3d0] sm:$0xff] %v947
                %v949 = vld [vmem:[%s821 + $0x1f8] sm:$0xff]
                %950 = vst [vmem:[%s822 + $0x3d8] sm:$0xff] %v949
              $region72: #{dec_forward.10} parent=66 // loop_footer
                %s820 = sadd.s32 1, %s816
              $region73: #{dec_forward.10} parent=66 // loop_footer_branch
                %815 = sbr.rel target = $region69
              $region74: #{dec_forward.10} parent=66 // loop_exit
                _
            $region67: #{dec_forward.10} parent=62 // pred_fallthru
              _
            // Predicated region
            $region75: #{dec_forward.10} parent=62 // pred_check
              _
            $region76: #{dec_forward.10} parent=62 // pred_check_branch
              %952 = sbr.rel target = $region78
            $region77: #{dec_forward.10} parent=62 // pred_region
              _
            $region78: #{dec_forward.10} parent=62 // pred_fallthru
              _
          $region63: #{dec_forward.10} parent=58 // pred_fallthru
            _
          %953 = vnop
        $region59: #{dec_forward.10} parent=50 // pred_fallthru
          _
      $region51: #{dec_forward.10} parent=5 // pred_fallthru
        _
      %p954 = scmp.le.s32.totalorder 2, %s9
      // Predicated region
      $region79: #{dec_forward.10} parent=5 // pred_check
        %p955 = pneg %p954
      $region80: #{dec_forward.10} parent=5 // pred_check_branch
        %957 = sbr.rel (%p955) target = $region82
      $region81: #{dec_forward.10} parent=5 // pred_region
        %s958 = ssub.s32 %s9, 2
        // Predicated region
        $region83: #{dec_forward.10} parent=81 // pred_check
          %p959 = pneg %p125
        $region84: #{dec_forward.10} parent=81 // pred_check_branch
          %961 = sbr.rel (%p959) target = $region86
        $region85: #{dec_forward.10} parent=81 // pred_region
          %s962 = sand.u32 %s110, 1
          %s963 = sand.u32 %s110, 1
          %s964 = smul.addr %s963, 512
          %s965 = scalar_lea.vmem [#allocation3], %s964
        $region86: #{dec_forward.10} parent=81 // pred_fallthru
          _
      $region82: #{dec_forward.10} parent=5 // pred_fallthru
        _
    $region6: #{dec_forward.10} parent=1 // loop_footer
      %s13 = sadd.s32 1, %s9
    $region7: #{dec_forward.10} parent=1 // loop_footer_branch
      %8 = sbr.rel target = $region3
    $region8: #{dec_forward.10} parent=1 // loop_exit
      _

// kernel: dec_forward.11
$region0: #{dec_forward.11}
  #allocation0 [shape = 'u32[]', space=smem, size = 0x4, offset = 0x4, fixed_abs, tag = 'smem constant byte address 0x4 - core index']
  #allocation1 [shape = 'u32[72,128]{1,0:T(1,128)}', space=vmem, size = 0x9000, scoped, tag = 'internal scratch']
  %s0 = inlined_call_operand.vmem [shape: f32[512,64], index: 0, kind: input, shape index: {}]
  %s1 = inlined_call_operand.vmem [shape: f32[1,64], index: 1, kind: input, shape index: {}]
  %s2 = inlined_call_operand.vmem [shape: bf16[64,512], index: 2, kind: input, shape index: {}]
  %s3 = inlined_call_operand.vmem [shape: f32[512,512], index: 3, kind: output, shape index: {}]
  %s4 = sld [smem:[#allocation0]]
  $region45: #{dec_forward.11} parent=0
    _
  %s6 = ssub.s32 1, %s4
  %s7 = scalar_select 0, %s6, %s4
  loop: start=0, step=1, limit=4
  $region2: #{dec_forward.11} parent=0 // loop_pre_header
    _
  $region3: #{dec_forward.11} parent=0 // loop_header
    %s9 = sphi 0, %s13
    %p10 = scmp.ge.s32.totalorder %s9, 4
    %s16 = sphi 0, %s28
    %s17 = sphi 0, %s24
    %s18 = sphi 0, %s16
    %s19 = sphi 0, %s17
    %s20 = sphi 0, %s18
    %s21 = sphi 0, %s19
    %s31 = sphi 0, %s33
    %s34 = sphi 0, %s31
    %s35 = sphi 0, %s34
    %s51 = sphi 0, %s35
    %s55 = sphi 0, %s55
    %s57 = sphi 0, %s55
    %s58 = sphi 0, %s57
    %s72 = sphi 0, %s58
    %s78 = sphi 0, %s80
    %s81 = sphi 0, %s78
    %s82 = sphi 0, %s81
    %s98 = sphi 0, %s82
    %s106 = sphi 0, %s108
    %s109 = sphi 0, %s106
    %s110 = sphi 0, %s109
    %s126 = sphi 0, %s110
  $region4: #{dec_forward.11} parent=0 // loop_header_branch
    %12 = sbr.rel (%p10) target = $region8
  $region5: #{dec_forward.11} parent=0 // loop_body
    %s14 = ssub.s32 %s9, 1
    %s15 = ssub.s32 %s9, 2
    %s22 = sadd.s32 1, %s17
    %p23 = scmp.ge.s32.totalorder %s22, 1
    %s24 = scalar_select %p23, 0, %s22
    %s25 = sadd.s32 1, %s16
    %s26 = scalar_select %p23, %s25, %s16
    %p27 = scmp.ge.s32.totalorder %s26, 2
    %s28 = scalar_select %p27, 0, %s26
    %s29 = ssub.s32 %s16, %s28
    %p30 = scmp.eq.s32.totalorder %s29, 0
    %s32 = sadd.s32 %s31, 1
    %s33 = scalar_select %p30, %s31, %s32
    %p36 = pneg %p30
    %p37 = scmp.eq.s32.totalorder %s9, 1
    %p38 = por %p36, %p37
    %p39 = scmp.ne.s32.totalorder %s31, %s34
    %p40 = scmp.eq.s32.totalorder %s9, 0
    %p41 = por %p39, %p40
    %p42 = scmp.ne.s32.totalorder %s31, %s34
    %p43 = scmp.eq.s32.totalorder %s14, 1
    %p44 = por %p42, %p43
    %p45 = scmp.ne.s32.totalorder %s34, %s35
    %p46 = scmp.eq.s32.totalorder %s14, 0
    %p47 = por %p45, %p46
    %p48 = scmp.ne.s32.totalorder %s34, %s35
    %p49 = scmp.eq.s32.totalorder %s15, 1
    %p50 = por %p48, %p49
    %p52 = scmp.ne.s32.totalorder %s35, %s51
    %p53 = scmp.eq.s32.totalorder %s15, 0
    %p54 = por %p52, %p53
    %s56 = sadd.s32 %s55, 1
    %p59 = scmp.eq.s32.totalorder %s9, 1
    %p60 = scmp.ne.s32.totalorder %s55, %s57
    %p61 = scmp.eq.s32.totalorder %s9, 0
    %p62 = por %p60, %p61
    %p63 = scmp.ne.s32.totalorder %s55, %s57
    %p64 = scmp.eq.s32.totalorder %s14, 1
    %p65 = por %p63, %p64
    %p66 = scmp.ne.s32.totalorder %s57, %s58
    %p67 = scmp.eq.s32.totalorder %s14, 0
    %p68 = por %p66, %p67
    %p69 = scmp.ne.s32.totalorder %s57, %s58
    %p70 = scmp.eq.s32.totalorder %s15, 1
    %p71 = por %p69, %p70
    %p73 = scmp.ne.s32.totalorder %s58, %s72
    %p74 = scmp.eq.s32.totalorder %s15, 0
    %p75 = por %p73, %p74
    %s76 = ssub.s32 %s17, %s24
    %p77 = scmp.eq.s32.totalorder %s76, 0
    %s79 = sadd.s32 %s78, 1
    %s80 = scalar_select %p77, %s78, %s79
    %p83 = pneg %p77
    %p84 = scmp.eq.s32.totalorder %s9, 1
    %p85 = por %p83, %p84
    %p86 = scmp.ne.s32.totalorder %s78, %s81
    %p87 = scmp.eq.s32.totalorder %s9, 0
    %p88 = por %p86, %p87
    %p89 = scmp.ne.s32.totalorder %s78, %s81
    %p90 = scmp.eq.s32.totalorder %s14, 1
    %p91 = por %p89, %p90
    %p92 = scmp.ne.s32.totalorder %s81, %s82
    %p93 = scmp.eq.s32.totalorder %s14, 0
    %p94 = por %p92, %p93
    %p95 = scmp.ne.s32.totalorder %s81, %s82
    %p96 = scmp.eq.s32.totalorder %s15, 1
    %p97 = por %p95, %p96
    %p99 = scmp.ne.s32.totalorder %s82, %s98
    %p100 = scmp.eq.s32.totalorder %s15, 0
    %p101 = por %p99, %p100
    %s102 = ssub.s32 %s16, %s28
    %s103 = ssub.s32 %s17, %s24
    %s104 = sor.u32 %s102, %s103
    %p105 = scmp.eq.s32.totalorder %s104, 0
    %s107 = sadd.s32 %s106, 1
    %s108 = scalar_select %p105, %s106, %s107
    %p111 = pneg %p105
    %p112 = scmp.eq.s32.totalorder %s9, 1
    %p113 = por %p111, %p112
    %p114 = scmp.ne.s32.totalorder %s106, %s109
    %p115 = scmp.eq.s32.totalorder %s9, 0
    %p116 = por %p114, %p115
    %p117 = scmp.ne.s32.totalorder %s106, %s109
    %p118 = scmp.eq.s32.totalorder %s14, 1
    %p119 = por %p117, %p118
    %p120 = scmp.ne.s32.totalorder %s109, %s110
    %p121 = scmp.eq.s32.totalorder %s14, 0
    %p122 = por %p120, %p121
    %p123 = scmp.ne.s32.totalorder %s109, %s110
    %p124 = scmp.eq.s32.totalorder %s15, 1
    %p125 = por %p123, %p124
    %p127 = scmp.ne.s32.totalorder %s110, %s126
    %p128 = scmp.eq.s32.totalorder %s15, 0
    %p129 = por %p127, %p128
    %p130 = scmp.le.s32.totalorder 1, %s9
    %p131 = scmp.lt.s32.totalorder %s9, 3
    %p132 = pnand %p130, %p131
    %p133 = pneg %p132
    // Predicated region
    $region9: #{dec_forward.11} parent=5 // pred_check
      _
    $region10: #{dec_forward.11} parent=5 // pred_check_branch
      %135 = sbr.rel (%p132) target = $region12
    $region11: #{dec_forward.11} parent=5 // pred_region
      %s136 = ssub.s32 %s9, 1
      // Predicated region
      $region13: #{dec_forward.11} parent=11 // pred_check
        %p137 = pneg %p68
      $region14: #{dec_forward.11} parent=11 // pred_check_branch
        %139 = sbr.rel (%p137) target = $region16
      $region15: #{dec_forward.11} parent=11 // pred_region
        _
      $region16: #{dec_forward.11} parent=11 // pred_fallthru
        _
      // Predicated region
      $region17: #{dec_forward.11} parent=11 // pred_check
        %p140 = pneg %p94
      $region18: #{dec_forward.11} parent=11 // pred_check_branch
        %142 = sbr.rel (%p140) target = $region20
      $region19: #{dec_forward.11} parent=11 // pred_region
        %s143 = smul.u32 4, %s19
        %p144 = scmp.lt.s32.totalorder %s143, 3
        %s145 = scalar_select %p144, %s143, 3
        %s146 = smul.addr %s145, 4
        %s147 = scalar_lea.vmem %s2, %s146
        %s148 = smul.u32 4, %s19
      $region20: #{dec_forward.11} parent=11 // pred_fallthru
        _
    $region12: #{dec_forward.11} parent=5 // pred_fallthru
      _
    %p149 = scmp.lt.s32.totalorder %s9, 2
    // Predicated region
    $region21: #{dec_forward.11} parent=5 // pred_check
      %p150 = pneg %p149
    $region22: #{dec_forward.11} parent=5 // pred_check_branch
      %152 = sbr.rel (%p150) target = $region24
    $region23: #{dec_forward.11} parent=5 // pred_region
      // Predicated region
      $region25: #{dec_forward.11} parent=23 // pred_check
        %p153 = pneg %p41
      $region26: #{dec_forward.11} parent=23 // pred_check_branch
        %155 = sbr.rel (%p153) target = $region28
      $region27: #{dec_forward.11} parent=23 // pred_region
        %s156 = smul.u32 32, %s16
        %p157 = scmp.lt.s32.totalorder %s156, 63
        %s158 = scalar_select %p157, %s156, 63
        %s159 = smul.addr %s158, 8
        %s160 = scalar_lea.vmem %s0, %s159
        %s161 = smul.u32 32, %s16
      $region28: #{dec_forward.11} parent=23 // pred_fallthru
        _
    $region24: #{dec_forward.11} parent=5 // pred_fallthru
      _
    %p162 = scmp.le.s32.totalorder 1, %s9
    %p163 = scmp.lt.s32.totalorder %s9, 3
    %p164 = pnand %p162, %p163
    %p165 = pneg %p164
    // Predicated region
    $region29: #{dec_forward.11} parent=5 // pred_check
      _
    $region30: #{dec_forward.11} parent=5 // pred_check_branch
      %167 = sbr.rel (%p164) target = $region32
    $region31: #{dec_forward.11} parent=5 // pred_region
      %s168 = ssub.s32 %s9, 1
      %s169 = smul.u32 32, %s18
      %p170 = scmp.lt.s32.totalorder %s169, 63
      %s171 = scalar_select %p170, %s169, 63
      %s172 = smul.addr %s171, 8
      %s173 = scalar_lea.vmem %s0, %s172
      %p174 = pneg %p47
      %p175 = pneg %p44
      %p176 = pneg %p68
      %p177 = pneg %p65
      %s178 = smul.u32 4, %s19
      %p179 = scmp.lt.s32.totalorder %s178, 3
      %s180 = scalar_select %p179, %s178, 3
      %s181 = smul.addr %s180, 4
      %s182 = scalar_lea.vmem %s2, %s181
      %p183 = pneg %p94
      %p184 = pneg %p91
      %p185 = pneg %p122
      %p186 = pneg %p119
      %s187 = smul.u32 32, %s18
      %s188 = smul.u32 4, %s19
      %p189 = scmp.lt.s32.totalorder %s187, 63
      %s190 = scalar_select %p189, %s187, 63
      %p191 = scmp.lt.s32.totalorder %s188, 3
      %s192 = scalar_select %p191, %s188, 3
      %s193 = smul.addr %s190, 4
      %s194 = sadd.s32 %s192, %s193
      %s195 = smul.addr %s194, 8
      %s196 = scalar_lea.vmem %s3, %s195
      %s197 = smul.u32 32, %s18
      %p198 = scmp.lt.s32.totalorder %s197, 63
      %s199 = scalar_select %p198, %s197, 63
      %s200 = smul.addr %s199, 8
      %s201 = scalar_lea.vmem %s0, %s200
      %s202 = smul.u32 32, %s18
      %s203 = smul.u32 4, %s19
      %p204 = scmp.lt.s32.totalorder %s203, 3
      %s205 = scalar_select %p204, %s203, 3
      %s206 = smul.addr %s205, 4
      %s207 = scalar_lea.vmem %s2, %s206
      %s208 = smul.u32 4, %s19
      %s209 = smul.u32 32, %s18
      %s210 = smul.u32 4, %s19
      %p211 = scmp.lt.s32.totalorder %s209, 63
      %s212 = scalar_select %p211, %s209, 63
      %p213 = scmp.lt.s32.totalorder %s210, 3
      %s214 = scalar_select %p213, %s210, 3
      %s215 = smul.addr %s212, 4
      %s216 = sadd.s32 %s214, %s215
      %s217 = smul.addr %s216, 8
      %s218 = scalar_lea.vmem %s3, %s217
      %s219 = smul.u32 32, %s18
      %s220 = smul.u32 4, %s19
      %v222 = vld [vmem:[%s201] sm:$0xff]
      %v223 = vld [vmem:[%s201 + $0x8] sm:$0xff]
      %v224 = vld [vmem:[%s201 + $0x10] sm:$0xff]
      %v225 = vld [vmem:[%s201 + $0x18] sm:$0xff]
      %v226 = vld [vmem:[%s201 + $0x20] sm:$0xff]
      %v227 = vld [vmem:[%s201 + $0x28] sm:$0xff]
      %v228 = vld [vmem:[%s201 + $0x30] sm:$0xff]
      %v229 = vld [vmem:[%s201 + $0x38] sm:$0xff]
      %v230 = vld [vmem:[%s201 + $0x40] sm:$0xff]
      %v231 = vld [vmem:[%s201 + $0x48] sm:$0xff]
      %v232 = vld [vmem:[%s201 + $0x50] sm:$0xff]
      %v233 = vld [vmem:[%s201 + $0x58] sm:$0xff]
      %v234 = vld [vmem:[%s201 + $0x60] sm:$0xff]
      %v235 = vld [vmem:[%s201 + $0x68] sm:$0xff]
      %v236 = vld [vmem:[%s201 + $0x70] sm:$0xff]
      %v237 = vld [vmem:[%s201 + $0x78] sm:$0xff]
      %v238 = vld [vmem:[%s201 + $0x80] sm:$0xff]
      %v239 = vld [vmem:[%s201 + $0x88] sm:$0xff]
      %v240 = vld [vmem:[%s201 + $0x90] sm:$0xff]
      %v241 = vld [vmem:[%s201 + $0x98] sm:$0xff]
      %v242 = vld [vmem:[%s201 + $0xa0] sm:$0xff]
      %v243 = vld [vmem:[%s201 + $0xa8] sm:$0xff]
      %v244 = vld [vmem:[%s201 + $0xb0] sm:$0xff]
      %v245 = vld [vmem:[%s201 + $0xb8] sm:$0xff]
      %v246 = vld [vmem:[%s201 + $0xc0] sm:$0xff]
      %v247 = vld [vmem:[%s201 + $0xc8] sm:$0xff]
      %v248 = vld [vmem:[%s201 + $0xd0] sm:$0xff]
      %v249 = vld [vmem:[%s201 + $0xd8] sm:$0xff]
      %v250 = vld [vmem:[%s201 + $0xe0] sm:$0xff]
      %v251 = vld [vmem:[%s201 + $0xe8] sm:$0xff]
      %v252 = vld [vmem:[%s201 + $0xf0] sm:$0xff]
      %v253 = vld [vmem:[%s201 + $0xf8] sm:$0xff]
      %v254 = vld [vmem:[%s1] sm:$0x1]
      %v256 = vperm.slane %v254, 0
      %v258 = vadd.f32 %v222, %v256
      %v259 = vadd.f32 %v223, %v256
      %v260 = vadd.f32 %v224, %v256
      %v261 = vadd.f32 %v225, %v256
      %v262 = vadd.f32 %v226, %v256
      %v263 = vadd.f32 %v227, %v256
      %v264 = vadd.f32 %v228, %v256
      %v265 = vadd.f32 %v229, %v256
      %v266 = vadd.f32 %v230, %v256
      %v267 = vadd.f32 %v231, %v256
      %v268 = vadd.f32 %v232, %v256
      %v269 = vadd.f32 %v233, %v256
      %v270 = vadd.f32 %v234, %v256
      %v271 = vadd.f32 %v235, %v256
      %v272 = vadd.f32 %v236, %v256
      %v273 = vadd.f32 %v237, %v256
      %v274 = vadd.f32 %v238, %v256
      %v275 = vadd.f32 %v239, %v256
      %v276 = vadd.f32 %v240, %v256
      %v277 = vadd.f32 %v241, %v256
      %v278 = vadd.f32 %v242, %v256
      %v279 = vadd.f32 %v243, %v256
      %v280 = vadd.f32 %v244, %v256
      %v281 = vadd.f32 %v245, %v256
      %v282 = vadd.f32 %v246, %v256
      %v283 = vadd.f32 %v247, %v256
      %v284 = vadd.f32 %v248, %v256
      %v285 = vadd.f32 %v249, %v256
      %v286 = vadd.f32 %v250, %v256
      %v287 = vadd.f32 %v251, %v256
      %v288 = vadd.f32 %v252, %v256
      %v289 = vadd.f32 %v253, %v256
      %v290 = vmax.f32 %v258, 0.0
      %v291 = vmax.f32 %v259, 0.0
      %v292 = vmax.f32 %v260, 0.0
      %v293 = vmax.f32 %v261, 0.0
      %v294 = vmax.f32 %v262, 0.0
      %v295 = vmax.f32 %v263, 0.0
      %v296 = vmax.f32 %v264, 0.0
      %v297 = vmax.f32 %v265, 0.0
      %v298 = vmax.f32 %v266, 0.0
      %v299 = vmax.f32 %v267, 0.0
      %v300 = vmax.f32 %v268, 0.0
      %v301 = vmax.f32 %v269, 0.0
      %v302 = vmax.f32 %v270, 0.0
      %v303 = vmax.f32 %v271, 0.0
      %v304 = vmax.f32 %v272, 0.0
      %v305 = vmax.f32 %v273, 0.0
      %v306 = vmax.f32 %v274, 0.0
      %v307 = vmax.f32 %v275, 0.0
      %v308 = vmax.f32 %v276, 0.0
      %v309 = vmax.f32 %v277, 0.0
      %v310 = vmax.f32 %v278, 0.0
      %v311 = vmax.f32 %v279, 0.0
      %v312 = vmax.f32 %v280, 0.0
      %v313 = vmax.f32 %v281, 0.0
      %v314 = vmax.f32 %v282, 0.0
      %v315 = vmax.f32 %v283, 0.0
      %v316 = vmax.f32 %v284, 0.0
      %v317 = vmax.f32 %v285, 0.0
      %v318 = vmax.f32 %v286, 0.0
      %v319 = vmax.f32 %v287, 0.0
      %v320 = vmax.f32 %v288, 0.0
      %v321 = vmax.f32 %v289, 0.0
      %v322 = vpack.c.bf16 %v291, %v290
      %v323 = vpack.c.bf16 %v293, %v292
      %v324 = vpack.c.bf16 %v295, %v294
      %v325 = vpack.c.bf16 %v297, %v296
      %v326 = vpack.c.bf16 %v299, %v298
      %v327 = vpack.c.bf16 %v301, %v300
      %v328 = vpack.c.bf16 %v303, %v302
      %v329 = vpack.c.bf16 %v305, %v304
      %v330 = vpack.c.bf16 %v307, %v306
      %v331 = vpack.c.bf16 %v309, %v308
      %v332 = vpack.c.bf16 %v311, %v310
      %v333 = vpack.c.bf16 %v313, %v312
      %v334 = vpack.c.bf16 %v315, %v314
      %v335 = vpack.c.bf16 %v317, %v316
      %v336 = vpack.c.bf16 %v319, %v318
      %v337 = vpack.c.bf16 %v321, %v320
      %v338 = vld [vmem:[%s207] sm:$0xff]
      %v339 = vld [vmem:[%s207 + $0x8] sm:$0xff]
      %v340 = vld [vmem:[%s207 + $0x10] sm:$0xff]
      %v341 = vld [vmem:[%s207 + $0x18] sm:$0xff]
      %v342 = vld [vmem:[%s207 + $0x20] sm:$0xff]
      %v343 = vld [vmem:[%s207 + $0x28] sm:$0xff]
      %v344 = vld [vmem:[%s207 + $0x30] sm:$0xff]
      %v345 = vld [vmem:[%s207 + $0x38] sm:$0xff]
      %v346 = vld [vmem:[%s207 + $0x40] sm:$0xff]
      %v347 = vld [vmem:[%s207 + $0x48] sm:$0xff]
      %v348 = vld [vmem:[%s207 + $0x50] sm:$0xff]
      %v349 = vld [vmem:[%s207 + $0x58] sm:$0xff]
      %v350 = vld [vmem:[%s207 + $0x60] sm:$0xff]
      %v351 = vld [vmem:[%s207 + $0x68] sm:$0xff]
      %v352 = vld [vmem:[%s207 + $0x70] sm:$0xff]
      %v353 = vld [vmem:[%s207 + $0x78] sm:$0xff]
      %v370 = vunpack.c.l.b16 %v338
      %v371 = vunpack.c.h.b16 %v338
      %v372 = vunpack.c.l.b16 %v339
      %v373 = vunpack.c.h.b16 %v339
      %v374 = vunpack.c.l.b16 %v340
      %v375 = vunpack.c.h.b16 %v340
      %v376 = vunpack.c.l.b16 %v341
      %v377 = vunpack.c.h.b16 %v341
      %v378 = vunpack.c.l.b16 %v342
      %v379 = vunpack.c.h.b16 %v342
      %v380 = vunpack.c.l.b16 %v343
      %v381 = vunpack.c.h.b16 %v343
      %v382 = vunpack.c.l.b16 %v344
      %v383 = vunpack.c.h.b16 %v344
      %v384 = vunpack.c.l.b16 %v345
      %v385 = vunpack.c.h.b16 %v345
      %v386 = vunpack.c.l.b16 %v346
      %v387 = vunpack.c.h.b16 %v346
      %v388 = vunpack.c.l.b16 %v347
      %v389 = vunpack.c.h.b16 %v347
      %v390 = vunpack.c.l.b16 %v348
      %v391 = vunpack.c.h.b16 %v348
      %v392 = vunpack.c.l.b16 %v349
      %v393 = vunpack.c.h.b16 %v349
      %v394 = vunpack.c.l.b16 %v350
      %v395 = vunpack.c.h.b16 %v350
      %v396 = vunpack.c.l.b16 %v351
      %v397 = vunpack.c.h.b16 %v351
      %v398 = vunpack.c.l.b16 %v352
      %v399 = vunpack.c.h.b16 %v352
      %v400 = vunpack.c.l.b16 %v353
      %v401 = vunpack.c.h.b16 %v353
      %v402 = vpack.c.b16 %v374, %v370
      %v403 = vpack.c.b16 %v375, %v371
      %v404 = vpack.c.b16 %v376, %v372
      %v405 = vpack.c.b16 %v377, %v373
      %v406 = vpack.c.b16 %v382, %v378
      %v407 = vpack.c.b16 %v383, %v379
      %v408 = vpack.c.b16 %v384, %v380
      %v409 = vpack.c.b16 %v385, %v381
      %v410 = vpack.c.b16 %v390, %v386
      %v411 = vpack.c.b16 %v391, %v387
      %v412 = vpack.c.b16 %v392, %v388
      %v413 = vpack.c.b16 %v393, %v389
      %v414 = vpack.c.b16 %v398, %v394
      %v415 = vpack.c.b16 %v399, %v395
      %v416 = vpack.c.b16 %v400, %v396
      %v417 = vpack.c.b16 %v401, %v397
      %vm434 = vcmask 523264
      %v436 = vsel %vm434, %v322, 0
      %v439 = vsel %vm434, %v323, 0
      %v442 = vsel %vm434, %v324, 0
      %v445 = vsel %vm434, %v325, 0
      %v448 = vsel %vm434, %v326, 0
      %v451 = vsel %vm434, %v327, 0
      %v454 = vsel %vm434, %v328, 0
      %v457 = vsel %vm434, %v329, 0
      %v460 = vsel %vm434, %v330, 0
      %v463 = vsel %vm434, %v331, 0
      %v466 = vsel %vm434, %v332, 0
      %v469 = vsel %vm434, %v333, 0
      %v472 = vsel %vm434, %v334, 0
      %v475 = vsel %vm434, %v335, 0
      %v478 = vsel %vm434, %v336, 0
      %v481 = vsel %vm434, %v337, 0
      %483 = vmatpush.bf16.msra.mxu0 0
      %484 = vmatpush.bf16.msra.mxu0 0
      %485 = vmatpush.bf16.msra.mxu0 0
      %486 = vmatpush.bf16.msra.mxu0 0
      %487 = vmatpush.bf16.msra.mxu0 %v414
      %488 = vmatpush.bf16.msra.mxu0 %v410
      %489 = vmatpush.bf16.msra.mxu0 %v406
      %490 = vmatpush.bf16.msra.mxu0 %v402
      %491 = vmatmul.bf16.gmra.mxu0 %v436
      %v492 = vpop.f32.mrf.mxu0
      %v493 = vadd.f32 0.0, %v492
      %v494 = vpop.f32.mrf.mxu0
      %v495 = vadd.f32 0.0, %v494
      %496 = vmatmul.bf16.gmra.mxu0 %v439
      %v497 = vpop.f32.mrf.mxu0
      %v498 = vadd.f32 0.0, %v497
      %v499 = vpop.f32.mrf.mxu0
      %v500 = vadd.f32 0.0, %v499
      %501 = vmatmul.bf16.gmra.mxu0 %v442
      %v502 = vpop.f32.mrf.mxu0
      %v503 = vadd.f32 0.0, %v502
      %v504 = vpop.f32.mrf.mxu0
      %v505 = vadd.f32 0.0, %v504
      %506 = vmatmul.bf16.gmra.mxu0 %v445
      %v507 = vpop.f32.mrf.mxu0
      %v508 = vadd.f32 0.0, %v507
      %v509 = vpop.f32.mrf.mxu0
      %v510 = vadd.f32 0.0, %v509
      %511 = vmatmul.bf16.gmra.mxu0 %v448
      %v512 = vpop.f32.mrf.mxu0
      %v513 = vadd.f32 0.0, %v512
      %v514 = vpop.f32.mrf.mxu0
      %v515 = vadd.f32 0.0, %v514
      %516 = vmatmul.bf16.gmra.mxu0 %v451
      %v517 = vpop.f32.mrf.mxu0
      %v518 = vadd.f32 0.0, %v517
      %v519 = vpop.f32.mrf.mxu0
      %v520 = vadd.f32 0.0, %v519
      %521 = vmatmul.bf16.gmra.mxu0 %v454
      %v522 = vpop.f32.mrf.mxu0
      %v523 = vadd.f32 0.0, %v522
      %v524 = vpop.f32.mrf.mxu0
      %v525 = vadd.f32 0.0, %v524
      %526 = vmatmul.bf16.gmra.mxu0 %v457
      %v527 = vpop.f32.mrf.mxu0
      %v528 = vadd.f32 0.0, %v527
      %v529 = vpop.f32.mrf.mxu0
      %v530 = vadd.f32 0.0, %v529
      %531 = vmatmul.bf16.gmra.mxu0 %v460
      %v532 = vpop.f32.mrf.mxu0
      %v533 = vadd.f32 0.0, %v532
      %v534 = vpop.f32.mrf.mxu0
      %v535 = vadd.f32 0.0, %v534
      %536 = vmatmul.bf16.gmra.mxu0 %v463
      %v537 = vpop.f32.mrf.mxu0
      %v538 = vadd.f32 0.0, %v537
      %v539 = vpop.f32.mrf.mxu0
      %v540 = vadd.f32 0.0, %v539
      %541 = vmatmul.bf16.gmra.mxu0 %v466
      %v542 = vpop.f32.mrf.mxu0
      %v543 = vadd.f32 0.0, %v542
      %v544 = vpop.f32.mrf.mxu0
      %v545 = vadd.f32 0.0, %v544
      %546 = vmatmul.bf16.gmra.mxu0 %v469
      %v547 = vpop.f32.mrf.mxu0
      %v548 = vadd.f32 0.0, %v547
      %v549 = vpop.f32.mrf.mxu0
      %v550 = vadd.f32 0.0, %v549
      %551 = vmatmul.bf16.gmra.mxu0 %v472
      %v552 = vpop.f32.mrf.mxu0
      %v553 = vadd.f32 0.0, %v552
      %v554 = vpop.f32.mrf.mxu0
      %v555 = vadd.f32 0.0, %v554
      %556 = vmatmul.bf16.gmra.mxu0 %v475
      %v557 = vpop.f32.mrf.mxu0
      %v558 = vadd.f32 0.0, %v557
      %v559 = vpop.f32.mrf.mxu0
      %v560 = vadd.f32 0.0, %v559
      %561 = vmatmul.bf16.gmra.mxu0 %v478
      %v562 = vpop.f32.mrf.mxu0
      %v563 = vadd.f32 0.0, %v562
      %v564 = vpop.f32.mrf.mxu0
      %v565 = vadd.f32 0.0, %v564
      %566 = vmatmul.bf16.gmra.mxu0 %v481
      %v567 = vpop.f32.mrf.mxu0
      %v568 = vadd.f32 0.0, %v567
      %v569 = vpop.f32.mrf.mxu0
      %v570 = vadd.f32 0.0, %v569
      %571 = vdwg.mxu0
      %572 = vmatpush.bf16.msra.mxu0 0
      %573 = vmatpush.bf16.msra.mxu0 0
      %574 = vmatpush.bf16.msra.mxu0 0
      %575 = vmatpush.bf16.msra.mxu0 0
      %576 = vmatpush.bf16.msra.mxu0 %v415
      %577 = vmatpush.bf16.msra.mxu0 %v411
      %578 = vmatpush.bf16.msra.mxu0 %v407
      %579 = vmatpush.bf16.msra.mxu0 %v403
      %580 = vmatmul.bf16.gmra.mxu0 %v436
      %v581 = vpop.f32.mrf.mxu0
      %v582 = vadd.f32 0.0, %v581
      %v583 = vpop.f32.mrf.mxu0
      %v584 = vadd.f32 0.0, %v583
      %585 = vmatmul.bf16.gmra.mxu0 %v439
      %v586 = vpop.f32.mrf.mxu0
      %v587 = vadd.f32 0.0, %v586
      %v588 = vpop.f32.mrf.mxu0
      %v589 = vadd.f32 0.0, %v588
      %590 = vmatmul.bf16.gmra.mxu0 %v442
      %v591 = vpop.f32.mrf.mxu0
      %v592 = vadd.f32 0.0, %v591
      %v593 = vpop.f32.mrf.mxu0
      %v594 = vadd.f32 0.0, %v593
      %595 = vmatmul.bf16.gmra.mxu0 %v445
      %v596 = vpop.f32.mrf.mxu0
      %v597 = vadd.f32 0.0, %v596
      %v598 = vpop.f32.mrf.mxu0
      %v599 = vadd.f32 0.0, %v598
      %600 = vmatmul.bf16.gmra.mxu0 %v448
      %v601 = vpop.f32.mrf.mxu0
      %v602 = vadd.f32 0.0, %v601
      %v603 = vpop.f32.mrf.mxu0
      %v604 = vadd.f32 0.0, %v603
      %605 = vmatmul.bf16.gmra.mxu0 %v451
      %v606 = vpop.f32.mrf.mxu0
      %v607 = vadd.f32 0.0, %v606
      %v608 = vpop.f32.mrf.mxu0
      %v609 = vadd.f32 0.0, %v608
      %610 = vmatmul.bf16.gmra.mxu0 %v454
      %v611 = vpop.f32.mrf.mxu0
      %v612 = vadd.f32 0.0, %v611
      %v613 = vpop.f32.mrf.mxu0
      %v614 = vadd.f32 0.0, %v613
      %615 = vmatmul.bf16.gmra.mxu0 %v457
      %v616 = vpop.f32.mrf.mxu0
      %v617 = vadd.f32 0.0, %v616
      %v618 = vpop.f32.mrf.mxu0
      %v619 = vadd.f32 0.0, %v618
      %620 = vmatmul.bf16.gmra.mxu0 %v460
      %v621 = vpop.f32.mrf.mxu0
      %v622 = vadd.f32 0.0, %v621
      %v623 = vpop.f32.mrf.mxu0
      %v624 = vadd.f32 0.0, %v623
      %625 = vmatmul.bf16.gmra.mxu0 %v463
      %v626 = vpop.f32.mrf.mxu0
      %v627 = vadd.f32 0.0, %v626
      %v628 = vpop.f32.mrf.mxu0
      %v629 = vadd.f32 0.0, %v628
      %630 = vmatmul.bf16.gmra.mxu0 %v466
      %v631 = vpop.f32.mrf.mxu0
      %v632 = vadd.f32 0.0, %v631
      %v633 = vpop.f32.mrf.mxu0
      %v634 = vadd.f32 0.0, %v633
      %635 = vmatmul.bf16.gmra.mxu0 %v469
      %v636 = vpop.f32.mrf.mxu0
      %v637 = vadd.f32 0.0, %v636
      %v638 = vpop.f32.mrf.mxu0
      %v639 = vadd.f32 0.0, %v638
      %640 = vmatmul.bf16.gmra.mxu0 %v472
      %v641 = vpop.f32.mrf.mxu0
      %v642 = vadd.f32 0.0, %v641
      %v643 = vpop.f32.mrf.mxu0
      %v644 = vadd.f32 0.0, %v643
      %645 = vmatmul.bf16.gmra.mxu0 %v475
      %v646 = vpop.f32.mrf.mxu0
      %v647 = vadd.f32 0.0, %v646
      %v648 = vpop.f32.mrf.mxu0
      %v649 = vadd.f32 0.0, %v648
      %650 = vmatmul.bf16.gmra.mxu0 %v478
      %v651 = vpop.f32.mrf.mxu0
      %v652 = vadd.f32 0.0, %v651
      %v653 = vpop.f32.mrf.mxu0
      %v654 = vadd.f32 0.0, %v653
      %655 = vmatmul.bf16.gmra.mxu0 %v481
      %v656 = vpop.f32.mrf.mxu0
      %v657 = vadd.f32 0.0, %v656
      %v658 = vpop.f32.mrf.mxu0
      %v659 = vadd.f32 0.0, %v658
      %660 = vdwg.mxu0
      %661 = vmatpush.bf16.msra.mxu0 0
      %662 = vmatpush.bf16.msra.mxu0 0
      %663 = vmatpush.bf16.msra.mxu0 0
      %664 = vmatpush.bf16.msra.mxu0 0
      %665 = vmatpush.bf16.msra.mxu0 %v416
      %666 = vmatpush.bf16.msra.mxu0 %v412
      %667 = vmatpush.bf16.msra.mxu0 %v408
      %668 = vmatpush.bf16.msra.mxu0 %v404
      %669 = vmatmul.bf16.gmra.mxu0 %v436
      %v670 = vpop.f32.mrf.mxu0
      %v671 = vadd.f32 0.0, %v670
      %v672 = vpop.f32.mrf.mxu0
      %v673 = vadd.f32 0.0, %v672
      %674 = vmatmul.bf16.gmra.mxu0 %v439
      %v675 = vpop.f32.mrf.mxu0
      %v676 = vadd.f32 0.0, %v675
      %v677 = vpop.f32.mrf.mxu0
      %v678 = vadd.f32 0.0, %v677
      %679 = vmatmul.bf16.gmra.mxu0 %v442
      %v680 = vpop.f32.mrf.mxu0
      %v681 = vadd.f32 0.0, %v680
      %v682 = vpop.f32.mrf.mxu0
      %v683 = vadd.f32 0.0, %v682
      %684 = vmatmul.bf16.gmra.mxu0 %v445
      %v685 = vpop.f32.mrf.mxu0
      %v686 = vadd.f32 0.0, %v685
      %v687 = vpop.f32.mrf.mxu0
      %v688 = vadd.f32 0.0, %v687
      %689 = vmatmul.bf16.gmra.mxu0 %v448
      %v690 = vpop.f32.mrf.mxu0
      %v691 = vadd.f32 0.0, %v690
      %v692 = vpop.f32.mrf.mxu0
      %v693 = vadd.f32 0.0, %v692
      %694 = vmatmul.bf16.gmra.mxu0 %v451
      %v695 = vpop.f32.mrf.mxu0
      %v696 = vadd.f32 0.0, %v695
      %v697 = vpop.f32.mrf.mxu0
      %v698 = vadd.f32 0.0, %v697
      %699 = vmatmul.bf16.gmra.mxu0 %v454
      %v700 = vpop.f32.mrf.mxu0
      %v701 = vadd.f32 0.0, %v700
      %v702 = vpop.f32.mrf.mxu0
      %v703 = vadd.f32 0.0, %v702
      %704 = vmatmul.bf16.gmra.mxu0 %v457
      %v705 = vpop.f32.mrf.mxu0
      %v706 = vadd.f32 0.0, %v705
      %v707 = vpop.f32.mrf.mxu0
      %v708 = vadd.f32 0.0, %v707
      %709 = vmatmul.bf16.gmra.mxu0 %v460
      %v710 = vpop.f32.mrf.mxu0
      %v711 = vadd.f32 0.0, %v710
      %v712 = vpop.f32.mrf.mxu0
      %v713 = vadd.f32 0.0, %v712
      %714 = vmatmul.bf16.gmra.mxu0 %v463
      %v715 = vpop.f32.mrf.mxu0
      %v716 = vadd.f32 0.0, %v715
      %v717 = vpop.f32.mrf.mxu0
      %v718 = vadd.f32 0.0, %v717
      %719 = vmatmul.bf16.gmra.mxu0 %v466
      %v720 = vpop.f32.mrf.mxu0
      %v721 = vadd.f32 0.0, %v720
      %v722 = vpop.f32.mrf.mxu0
      %v723 = vadd.f32 0.0, %v722
      %724 = vmatmul.bf16.gmra.mxu0 %v469
      %v725 = vpop.f32.mrf.mxu0
      %v726 = vadd.f32 0.0, %v725
      %v727 = vpop.f32.mrf.mxu0
      %v728 = vadd.f32 0.0, %v727
      %729 = vmatmul.bf16.gmra.mxu0 %v472
      %v730 = vpop.f32.mrf.mxu0
      %v731 = vadd.f32 0.0, %v730
      %v732 = vpop.f32.mrf.mxu0
      %v733 = vadd.f32 0.0, %v732
      %734 = vmatmul.bf16.gmra.mxu0 %v475
      %v735 = vpop.f32.mrf.mxu0
      %v736 = vadd.f32 0.0, %v735
      %v737 = vpop.f32.mrf.mxu0
      %v738 = vadd.f32 0.0, %v737
      %739 = vmatmul.bf16.gmra.mxu0 %v478
      %v740 = vpop.f32.mrf.mxu0
      %v741 = vadd.f32 0.0, %v740
      %v742 = vpop.f32.mrf.mxu0
      %v743 = vadd.f32 0.0, %v742
      %744 = vmatmul.bf16.gmra.mxu0 %v481
      %v745 = vpop.f32.mrf.mxu0
      %v746 = vadd.f32 0.0, %v745
      %v747 = vpop.f32.mrf.mxu0
      %v748 = vadd.f32 0.0, %v747
      %749 = vdwg.mxu0
      %750 = vmatpush.bf16.msra.mxu0 0
      %751 = vmatpush.bf16.msra.mxu0 0
      %752 = vmatpush.bf16.msra.mxu0 0
      %753 = vmatpush.bf16.msra.mxu0 0
      %754 = vmatpush.bf16.msra.mxu0 %v417
      %755 = vmatpush.bf16.msra.mxu0 %v413
      %756 = vmatpush.bf16.msra.mxu0 %v409
      %757 = vmatpush.bf16.msra.mxu0 %v405
      %758 = vmatmul.bf16.gmra.mxu0 %v436
      %v759 = vpop.f32.mrf.mxu0
      %v760 = vadd.f32 0.0, %v759
      %v761 = vpop.f32.mrf.mxu0
      %v762 = vadd.f32 0.0, %v761
      %763 = vmatmul.bf16.gmra.mxu0 %v439
      %v764 = vpop.f32.mrf.mxu0
      %v765 = vadd.f32 0.0, %v764
      %v766 = vpop.f32.mrf.mxu0
      %v767 = vadd.f32 0.0, %v766
      %768 = vmatmul.bf16.gmra.mxu0 %v442
      %v769 = vpop.f32.mrf.mxu0
      %v770 = vadd.f32 0.0, %v769
      %v771 = vpop.f32.mrf.mxu0
      %v772 = vadd.f32 0.0, %v771
      %773 = vmatmul.bf16.gmra.mxu0 %v445
      %v774 = vpop.f32.mrf.mxu0
      %v775 = vadd.f32 0.0, %v774
      %v776 = vpop.f32.mrf.mxu0
      %v777 = vadd.f32 0.0, %v776
      %778 = vmatmul.bf16.gmra.mxu0 %v448
      %v779 = vpop.f32.mrf.mxu0
      %v780 = vadd.f32 0.0, %v779
      %v781 = vpop.f32.mrf.mxu0
      %v782 = vadd.f32 0.0, %v781
      %783 = vmatmul.bf16.gmra.mxu0 %v451
      %v784 = vpop.f32.mrf.mxu0
      %v785 = vadd.f32 0.0, %v784
      %v786 = vpop.f32.mrf.mxu0
      %v787 = vadd.f32 0.0, %v786
      %788 = vmatmul.bf16.gmra.mxu0 %v454
      %v789 = vpop.f32.mrf.mxu0
      %v790 = vadd.f32 0.0, %v789
      %v791 = vpop.f32.mrf.mxu0
      %v792 = vadd.f32 0.0, %v791
      %793 = vmatmul.bf16.gmra.mxu0 %v457
      %v794 = vpop.f32.mrf.mxu0
      %v795 = vadd.f32 0.0, %v794
      %v796 = vpop.f32.mrf.mxu0
      %v797 = vadd.f32 0.0, %v796
      %798 = vmatmul.bf16.gmra.mxu0 %v460
      %v799 = vpop.f32.mrf.mxu0
      %v800 = vadd.f32 0.0, %v799
      %v801 = vpop.f32.mrf.mxu0
      %v802 = vadd.f32 0.0, %v801
      %803 = vmatmul.bf16.gmra.mxu0 %v463
      %v804 = vpop.f32.mrf.mxu0
      %v805 = vadd.f32 0.0, %v804
      %v806 = vpop.f32.mrf.mxu0
      %v807 = vadd.f32 0.0, %v806
      %808 = vmatmul.bf16.gmra.mxu0 %v466
      %v809 = vpop.f32.mrf.mxu0
      %v810 = vadd.f32 0.0, %v809
      %v811 = vpop.f32.mrf.mxu0
      %v812 = vadd.f32 0.0, %v811
      %813 = vmatmul.bf16.gmra.mxu0 %v469
      %v814 = vpop.f32.mrf.mxu0
      %v815 = vadd.f32 0.0, %v814
      %v816 = vpop.f32.mrf.mxu0
      %v817 = vadd.f32 0.0, %v816
      %818 = vmatmul.bf16.gmra.mxu0 %v472
      %v819 = vpop.f32.mrf.mxu0
      %v820 = vadd.f32 0.0, %v819
      %v821 = vpop.f32.mrf.mxu0
      %v822 = vadd.f32 0.0, %v821
      %823 = vmatmul.bf16.gmra.mxu0 %v475
      %v824 = vpop.f32.mrf.mxu0
      %v825 = vadd.f32 0.0, %v824
      %v826 = vpop.f32.mrf.mxu0
      %v827 = vadd.f32 0.0, %v826
      %828 = vmatmul.bf16.gmra.mxu0 %v478
      %v829 = vpop.f32.mrf.mxu0
      %v830 = vadd.f32 0.0, %v829
      %v831 = vpop.f32.mrf.mxu0
      %v832 = vadd.f32 0.0, %v831
      %833 = vmatmul.bf16.gmra.mxu0 %v481
      %v834 = vpop.f32.mrf.mxu0
      %v835 = vadd.f32 0.0, %v834
      %v836 = vpop.f32.mrf.mxu0
      %v837 = vadd.f32 0.0, %v836
      %838 = vdwg.mxu0
      %839 = vst [vmem:[%s218] sm:$0xff] %v493
      %840 = vst [vmem:[%s218 + $0x8] sm:$0xff] %v582
      %841 = vst [vmem:[%s218 + $0x10] sm:$0xff] %v671
      %842 = vst [vmem:[%s218 + $0x18] sm:$0xff] %v760
      %843 = vst [vmem:[%s218 + $0x20] sm:$0xff] %v495
      %844 = vst [vmem:[%s218 + $0x28] sm:$0xff] %v584
      %845 = vst [vmem:[%s218 + $0x30] sm:$0xff] %v673
      %846 = vst [vmem:[%s218 + $0x38] sm:$0xff] %v762
      %847 = vst [vmem:[%s218 + $0x40] sm:$0xff] %v498
      %848 = vst [vmem:[%s218 + $0x48] sm:$0xff] %v587
      %849 = vst [vmem:[%s218 + $0x50] sm:$0xff] %v676
      %850 = vst [vmem:[%s218 + $0x58] sm:$0xff] %v765
      %851 = vst [vmem:[%s218 + $0x60] sm:$0xff] %v500
      %852 = vst [vmem:[%s218 + $0x68] sm:$0xff] %v589
      %853 = vst [vmem:[%s218 + $0x70] sm:$0xff] %v678
      %854 = vst [vmem:[%s218 + $0x78] sm:$0xff] %v767
      %855 = vst [vmem:[%s218 + $0x80] sm:$0xff] %v503
      %856 = vst [vmem:[%s218 + $0x88] sm:$0xff] %v592
      %857 = vst [vmem:[%s218 + $0x90] sm:$0xff] %v681
      %858 = vst [vmem:[%s218 + $0x98] sm:$0xff] %v770
      %859 = vst [vmem:[%s218 + $0xa0] sm:$0xff] %v505
      %860 = vst [vmem:[%s218 + $0xa8] sm:$0xff] %v594
      %861 = vst [vmem:[%s218 + $0xb0] sm:$0xff] %v683
      %862 = vst [vmem:[%s218 + $0xb8] sm:$0xff] %v772
      %863 = vst [vmem:[%s218 + $0xc0] sm:$0xff] %v508
      %864 = vst [vmem:[%s218 + $0xc8] sm:$0xff] %v597
      %865 = vst [vmem:[%s218 + $0xd0] sm:$0xff] %v686
      %866 = vst [vmem:[%s218 + $0xd8] sm:$0xff] %v775
      %867 = vst [vmem:[%s218 + $0xe0] sm:$0xff] %v510
      %868 = vst [vmem:[%s218 + $0xe8] sm:$0xff] %v599
      %869 = vst [vmem:[%s218 + $0xf0] sm:$0xff] %v688
      %870 = vst [vmem:[%s218 + $0xf8] sm:$0xff] %v777
      %871 = vst [vmem:[%s218 + $0x100] sm:$0xff] %v513
      %872 = vst [vmem:[%s218 + $0x108] sm:$0xff] %v602
      %873 = vst [vmem:[%s218 + $0x110] sm:$0xff] %v691
      %874 = vst [vmem:[%s218 + $0x118] sm:$0xff] %v780
      %875 = vst [vmem:[%s218 + $0x120] sm:$0xff] %v515
      %876 = vst [vmem:[%s218 + $0x128] sm:$0xff] %v604
      %877 = vst [vmem:[%s218 + $0x130] sm:$0xff] %v693
      %878 = vst [vmem:[%s218 + $0x138] sm:$0xff] %v782
      %879 = vst [vmem:[%s218 + $0x140] sm:$0xff] %v518
      %880 = vst [vmem:[%s218 + $0x148] sm:$0xff] %v607
      %881 = vst [vmem:[%s218 + $0x150] sm:$0xff] %v696
      %882 = vst [vmem:[%s218 + $0x158] sm:$0xff] %v785
      %883 = vst [vmem:[%s218 + $0x160] sm:$0xff] %v520
      %884 = vst [vmem:[%s218 + $0x168] sm:$0xff] %v609
      %885 = vst [vmem:[%s218 + $0x170] sm:$0xff] %v698
      %886 = vst [vmem:[%s218 + $0x178] sm:$0xff] %v787
      %887 = vst [vmem:[%s218 + $0x180] sm:$0xff] %v523
      %888 = vst [vmem:[%s218 + $0x188] sm:$0xff] %v612
      %889 = vst [vmem:[%s218 + $0x190] sm:$0xff] %v701
      %890 = vst [vmem:[%s218 + $0x198] sm:$0xff] %v790
      %891 = vst [vmem:[%s218 + $0x1a0] sm:$0xff] %v525
      %892 = vst [vmem:[%s218 + $0x1a8] sm:$0xff] %v614
      %893 = vst [vmem:[%s218 + $0x1b0] sm:$0xff] %v703
      %894 = vst [vmem:[%s218 + $0x1b8] sm:$0xff] %v792
      %895 = vst [vmem:[%s218 + $0x1c0] sm:$0xff] %v528
      %896 = vst [vmem:[%s218 + $0x1c8] sm:$0xff] %v617
      %897 = vst [vmem:[%s218 + $0x1d0] sm:$0xff] %v706
      %898 = vst [vmem:[%s218 + $0x1d8] sm:$0xff] %v795
      %899 = vst [vmem:[%s218 + $0x1e0] sm:$0xff] %v530
      %900 = vst [vmem:[%s218 + $0x1e8] sm:$0xff] %v619
      %901 = vst [vmem:[%s218 + $0x1f0] sm:$0xff] %v708
      %902 = vst [vmem:[%s218 + $0x1f8] sm:$0xff] %v797
      %903 = vst [vmem:[%s218 + $0x200] sm:$0xff] %v533
      %904 = vst [vmem:[%s218 + $0x208] sm:$0xff] %v622
      %905 = vst [vmem:[%s218 + $0x210] sm:$0xff] %v711
      %906 = vst [vmem:[%s218 + $0x218] sm:$0xff] %v800
      %907 = vst [vmem:[%s218 + $0x220] sm:$0xff] %v535
      %908 = vst [vmem:[%s218 + $0x228] sm:$0xff] %v624
      %909 = vst [vmem:[%s218 + $0x230] sm:$0xff] %v713
      %910 = vst [vmem:[%s218 + $0x238] sm:$0xff] %v802
      %911 = vst [vmem:[%s218 + $0x240] sm:$0xff] %v538
      %912 = vst [vmem:[%s218 + $0x248] sm:$0xff] %v627
      %913 = vst [vmem:[%s218 + $0x250] sm:$0xff] %v716
      %914 = vst [vmem:[%s218 + $0x258] sm:$0xff] %v805
      %915 = vst [vmem:[%s218 + $0x260] sm:$0xff] %v540
      %916 = vst [vmem:[%s218 + $0x268] sm:$0xff] %v629
      %917 = vst [vmem:[%s218 + $0x270] sm:$0xff] %v718
      %918 = vst [vmem:[%s218 + $0x278] sm:$0xff] %v807
      %919 = vst [vmem:[%s218 + $0x280] sm:$0xff] %v543
      %920 = vst [vmem:[%s218 + $0x288] sm:$0xff] %v632
      %921 = vst [vmem:[%s218 + $0x290] sm:$0xff] %v721
      %922 = vst [vmem:[%s218 + $0x298] sm:$0xff] %v810
      %923 = vst [vmem:[%s218 + $0x2a0] sm:$0xff] %v545
      %924 = vst [vmem:[%s218 + $0x2a8] sm:$0xff] %v634
      %925 = vst [vmem:[%s218 + $0x2b0] sm:$0xff] %v723
      %926 = vst [vmem:[%s218 + $0x2b8] sm:$0xff] %v812
      %927 = vst [vmem:[%s218 + $0x2c0] sm:$0xff] %v548
      %928 = vst [vmem:[%s218 + $0x2c8] sm:$0xff] %v637
      %929 = vst [vmem:[%s218 + $0x2d0] sm:$0xff] %v726
      %930 = vst [vmem:[%s218 + $0x2d8] sm:$0xff] %v815
      %931 = vst [vmem:[%s218 + $0x2e0] sm:$0xff] %v550
      %932 = vst [vmem:[%s218 + $0x2e8] sm:$0xff] %v639
      %933 = vst [vmem:[%s218 + $0x2f0] sm:$0xff] %v728
      %934 = vst [vmem:[%s218 + $0x2f8] sm:$0xff] %v817
      %935 = vst [vmem:[%s218 + $0x300] sm:$0xff] %v553
      %936 = vst [vmem:[%s218 + $0x308] sm:$0xff] %v642
      %937 = vst [vmem:[%s218 + $0x310] sm:$0xff] %v731
      %938 = vst [vmem:[%s218 + $0x318] sm:$0xff] %v820
      %939 = vst [vmem:[%s218 + $0x320] sm:$0xff] %v555
      %940 = vst [vmem:[%s218 + $0x328] sm:$0xff] %v644
      %941 = vst [vmem:[%s218 + $0x330] sm:$0xff] %v733
      %942 = vst [vmem:[%s218 + $0x338] sm:$0xff] %v822
      %943 = vst [vmem:[%s218 + $0x340] sm:$0xff] %v558
      %944 = vst [vmem:[%s218 + $0x348] sm:$0xff] %v647
      %945 = vst [vmem:[%s218 + $0x350] sm:$0xff] %v736
      %946 = vst [vmem:[%s218 + $0x358] sm:$0xff] %v825
      %947 = vst [vmem:[%s218 + $0x360] sm:$0xff] %v560
      %948 = vst [vmem:[%s218 + $0x368] sm:$0xff] %v649
      %949 = vst [vmem:[%s218 + $0x370] sm:$0xff] %v738
      %950 = vst [vmem:[%s218 + $0x378] sm:$0xff] %v827
      %951 = vst [vmem:[%s218 + $0x380] sm:$0xff] %v563
      %952 = vst [vmem:[%s218 + $0x388] sm:$0xff] %v652
      %953 = vst [vmem:[%s218 + $0x390] sm:$0xff] %v741
      %954 = vst [vmem:[%s218 + $0x398] sm:$0xff] %v830
      %955 = vst [vmem:[%s218 + $0x3a0] sm:$0xff] %v565
      %956 = vst [vmem:[%s218 + $0x3a8] sm:$0xff] %v654
      %957 = vst [vmem:[%s218 + $0x3b0] sm:$0xff] %v743
      %958 = vst [vmem:[%s218 + $0x3b8] sm:$0xff] %v832
      %959 = vst [vmem:[%s218 + $0x3c0] sm:$0xff] %v568
      %960 = vst [vmem:[%s218 + $0x3c8] sm:$0xff] %v657
      %961 = vst [vmem:[%s218 + $0x3d0] sm:$0xff] %v746
      %962 = vst [vmem:[%s218 + $0x3d8] sm:$0xff] %v835
      %963 = vst [vmem:[%s218 + $0x3e0] sm:$0xff] %v570
      %964 = vst [vmem:[%s218 + $0x3e8] sm:$0xff] %v659
      %965 = vst [vmem:[%s218 + $0x3f0] sm:$0xff] %v748
      %966 = vst [vmem:[%s218 + $0x3f8] sm:$0xff] %v837
      %s967 = smul.u32 32, %s18
      %s968 = smul.u32 4, %s19
      %p969 = scmp.lt.s32.totalorder %s967, 63
      %s970 = scalar_select %p969, %s967, 63
      %p971 = scmp.lt.s32.totalorder %s968, 3
      %s972 = scalar_select %p971, %s968, 3
      %s973 = smul.addr %s970, 4
      %s974 = sadd.s32 %s972, %s973
      %s975 = smul.addr %s974, 8
      %s976 = scalar_lea.vmem %s3, %s975
      // Predicated region
      $region33: #{dec_forward.11} parent=31 // pred_check
        %p977 = pneg %p119
      $region34: #{dec_forward.11} parent=31 // pred_check_branch
        %979 = sbr.rel (%p977) target = $region36
      $region35: #{dec_forward.11} parent=31 // pred_region
        %s980 = smul.u32 32, %s18
        %s981 = smul.u32 4, %s19
      $region36: #{dec_forward.11} parent=31 // pred_fallthru
        _
    $region32: #{dec_forward.11} parent=5 // pred_fallthru
      _
    %p982 = scmp.le.s32.totalorder 2, %s9
    // Predicated region
    $region37: #{dec_forward.11} parent=5 // pred_check
      %p983 = pneg %p982
    $region38: #{dec_forward.11} parent=5 // pred_check_branch
      %985 = sbr.rel (%p983) target = $region40
    $region39: #{dec_forward.11} parent=5 // pred_region
      %s986 = ssub.s32 %s9, 2
      // Predicated region
      $region41: #{dec_forward.11} parent=39 // pred_check
        %p987 = pneg %p125
      $region42: #{dec_forward.11} parent=39 // pred_check_branch
        %989 = sbr.rel (%p987) target = $region44
      $region43: #{dec_forward.11} parent=39 // pred_region
        %s990 = smul.u32 32, %s20
        %s991 = smul.u32 4, %s21
        %p992 = scmp.lt.s32.totalorder %s990, 63
        %s993 = scalar_select %p992, %s990, 63
        %p994 = scmp.lt.s32.totalorder %s991, 3
        %s995 = scalar_select %p994, %s991, 3
        %s996 = smul.addr %s993, 4
        %s997 = sadd.s32 %s995, %s996
        %s998 = smul.addr %s997, 8
        %s999 = scalar_lea.vmem %s3, %s998
      $region44: #{dec_forward.11} parent=39 // pred_fallthru
        _
    $region40: #{dec_forward.11} parent=5 // pred_fallthru
      _
  $region6: #{dec_forward.11} parent=0 // loop_footer
    %s13 = sadd.s32 1, %s9
  $region7: #{dec_forward.11} parent=0 // loop_footer_branch
    %8 = sbr.rel target = $region3
  $region8: #{dec_forward.11} parent=0 // loop_exit
    _

// kernel: dec_forward.12
$region0: #{dec_forward.12}
  #allocation0 [shape = 'u32[]', space=smem, size = 0x4, offset = 0x4, fixed_abs, tag = 'smem constant byte address 0x4 - core index']
  #allocation1 [shape = 'u32[72,128]{1,0:T(1,128)}', space=vmem, size = 0x9000, scoped, tag = 'internal scratch']
  %s0 = inlined_call_operand.vmem [shape: f32[2048,32], index: 0, kind: input, shape index: {}]
  %s1 = inlined_call_operand.vmem [shape: f32[1,32], index: 1, kind: input, shape index: {}]
  %s2 = inlined_call_operand.vmem [shape: bf16[32,16], index: 2, kind: input, shape index: {}]
  %s3 = inlined_call_operand.vmem [shape: f32[2048,16], index: 3, kind: output, shape index: {}]
  %s4 = sld [smem:[#allocation0]]
  $region45: #{dec_forward.12} parent=0
    _
  %s6 = ssub.s32 1, %s4
  %s7 = scalar_select 0, %s6, %s4
  loop: start=0, step=1, limit=10
  $region2: #{dec_forward.12} parent=0 // loop_pre_header
    _
  $region3: #{dec_forward.12} parent=0 // loop_header
    %s9 = sphi 0, %s13
    %p10 = scmp.ge.s32.totalorder %s9, 10
    %s16 = sphi 0, %s28
    %s17 = sphi 0, %s24
    %s18 = sphi 0, %s16
    %s19 = sphi 0, %s17
    %s20 = sphi 0, %s18
    %s21 = sphi 0, %s19
    %s31 = sphi 0, %s33
    %s34 = sphi 0, %s31
    %s35 = sphi 0, %s34
    %s51 = sphi 0, %s35
    %s55 = sphi 0, %s55
    %s57 = sphi 0, %s55
    %s58 = sphi 0, %s57
    %s72 = sphi 0, %s58
    %s78 = sphi 0, %s80
    %s81 = sphi 0, %s78
    %s82 = sphi 0, %s81
    %s98 = sphi 0, %s82
    %s106 = sphi 0, %s108
    %s109 = sphi 0, %s106
    %s110 = sphi 0, %s109
    %s126 = sphi 0, %s110
  $region4: #{dec_forward.12} parent=0 // loop_header_branch
    %12 = sbr.rel (%p10) target = $region8
  $region5: #{dec_forward.12} parent=0 // loop_body
    %s14 = ssub.s32 %s9, 1
    %s15 = ssub.s32 %s9, 2
    %s22 = sadd.s32 1, %s17
    %p23 = scmp.ge.s32.totalorder %s22, 1
    %s24 = scalar_select %p23, 0, %s22
    %s25 = sadd.s32 1, %s16
    %s26 = scalar_select %p23, %s25, %s16
    %p27 = scmp.ge.s32.totalorder %s26, 8
    %s28 = scalar_select %p27, 0, %s26
    %s29 = ssub.s32 %s16, %s28
    %p30 = scmp.eq.s32.totalorder %s29, 0
    %s32 = sadd.s32 %s31, 1
    %s33 = scalar_select %p30, %s31, %s32
    %p36 = pneg %p30
    %p37 = scmp.eq.s32.totalorder %s9, 7
    %p38 = por %p36, %p37
    %p39 = scmp.ne.s32.totalorder %s31, %s34
    %p40 = scmp.eq.s32.totalorder %s9, 0
    %p41 = por %p39, %p40
    %p42 = scmp.ne.s32.totalorder %s31, %s34
    %p43 = scmp.eq.s32.totalorder %s14, 7
    %p44 = por %p42, %p43
    %p45 = scmp.ne.s32.totalorder %s34, %s35
    %p46 = scmp.eq.s32.totalorder %s14, 0
    %p47 = por %p45, %p46
    %p48 = scmp.ne.s32.totalorder %s34, %s35
    %p49 = scmp.eq.s32.totalorder %s15, 7
    %p50 = por %p48, %p49
    %p52 = scmp.ne.s32.totalorder %s35, %s51
    %p53 = scmp.eq.s32.totalorder %s15, 0
    %p54 = por %p52, %p53
    %s56 = sadd.s32 %s55, 1
    %p59 = scmp.eq.s32.totalorder %s9, 7
    %p60 = scmp.ne.s32.totalorder %s55, %s57
    %p61 = scmp.eq.s32.totalorder %s9, 0
    %p62 = por %p60, %p61
    %p63 = scmp.ne.s32.totalorder %s55, %s57
    %p64 = scmp.eq.s32.totalorder %s14, 7
    %p65 = por %p63, %p64
    %p66 = scmp.ne.s32.totalorder %s57, %s58
    %p67 = scmp.eq.s32.totalorder %s14, 0
    %p68 = por %p66, %p67
    %p69 = scmp.ne.s32.totalorder %s57, %s58
    %p70 = scmp.eq.s32.totalorder %s15, 7
    %p71 = por %p69, %p70
    %p73 = scmp.ne.s32.totalorder %s58, %s72
    %p74 = scmp.eq.s32.totalorder %s15, 0
    %p75 = por %p73, %p74
    %s76 = ssub.s32 %s17, %s24
    %p77 = scmp.eq.s32.totalorder %s76, 0
    %s79 = sadd.s32 %s78, 1
    %s80 = scalar_select %p77, %s78, %s79
    %p83 = pneg %p77
    %p84 = scmp.eq.s32.totalorder %s9, 7
    %p85 = por %p83, %p84
    %p86 = scmp.ne.s32.totalorder %s78, %s81
    %p87 = scmp.eq.s32.totalorder %s9, 0
    %p88 = por %p86, %p87
    %p89 = scmp.ne.s32.totalorder %s78, %s81
    %p90 = scmp.eq.s32.totalorder %s14, 7
    %p91 = por %p89, %p90
    %p92 = scmp.ne.s32.totalorder %s81, %s82
    %p93 = scmp.eq.s32.totalorder %s14, 0
    %p94 = por %p92, %p93
    %p95 = scmp.ne.s32.totalorder %s81, %s82
    %p96 = scmp.eq.s32.totalorder %s15, 7
    %p97 = por %p95, %p96
    %p99 = scmp.ne.s32.totalorder %s82, %s98
    %p100 = scmp.eq.s32.totalorder %s15, 0
    %p101 = por %p99, %p100
    %s102 = ssub.s32 %s16, %s28
    %s103 = ssub.s32 %s17, %s24
    %s104 = sor.u32 %s102, %s103
    %p105 = scmp.eq.s32.totalorder %s104, 0
    %s107 = sadd.s32 %s106, 1
    %s108 = scalar_select %p105, %s106, %s107
    %p111 = pneg %p105
    %p112 = scmp.eq.s32.totalorder %s9, 7
    %p113 = por %p111, %p112
    %p114 = scmp.ne.s32.totalorder %s106, %s109
    %p115 = scmp.eq.s32.totalorder %s9, 0
    %p116 = por %p114, %p115
    %p117 = scmp.ne.s32.totalorder %s106, %s109
    %p118 = scmp.eq.s32.totalorder %s14, 7
    %p119 = por %p117, %p118
    %p120 = scmp.ne.s32.totalorder %s109, %s110
    %p121 = scmp.eq.s32.totalorder %s14, 0
    %p122 = por %p120, %p121
    %p123 = scmp.ne.s32.totalorder %s109, %s110
    %p124 = scmp.eq.s32.totalorder %s15, 7
    %p125 = por %p123, %p124
    %p127 = scmp.ne.s32.totalorder %s110, %s126
    %p128 = scmp.eq.s32.totalorder %s15, 0
    %p129 = por %p127, %p128
    %p130 = scmp.le.s32.totalorder 1, %s9
    %p131 = scmp.lt.s32.totalorder %s9, 9
    %p132 = pnand %p130, %p131
    %p133 = pneg %p132
    // Predicated region
    $region9: #{dec_forward.12} parent=5 // pred_check
      _
    $region10: #{dec_forward.12} parent=5 // pred_check_branch
      %135 = sbr.rel (%p132) target = $region12
    $region11: #{dec_forward.12} parent=5 // pred_region
      %s136 = ssub.s32 %s9, 1
      // Predicated region
      $region13: #{dec_forward.12} parent=11 // pred_check
        %p137 = pneg %p68
      $region14: #{dec_forward.12} parent=11 // pred_check_branch
        %139 = sbr.rel (%p137) target = $region16
      $region15: #{dec_forward.12} parent=11 // pred_region
        _
      $region16: #{dec_forward.12} parent=11 // pred_fallthru
        _
      // Predicated region
      $region17: #{dec_forward.12} parent=11 // pred_check
        %p140 = pneg %p94
      $region18: #{dec_forward.12} parent=11 // pred_check_branch
        %142 = sbr.rel (%p140) target = $region20
      $region19: #{dec_forward.12} parent=11 // pred_region
        %p143 = scmp.lt.s32.totalorder %s19, 0
        %s144 = scalar_select %p143, %s19, 0
        %s145 = smul.addr %s144, 4
        %s146 = scalar_lea.vmem %s2, %s145
      $region20: #{dec_forward.12} parent=11 // pred_fallthru
        _
    $region12: #{dec_forward.12} parent=5 // pred_fallthru
      _
    %p147 = scmp.lt.s32.totalorder %s9, 8
    // Predicated region
    $region21: #{dec_forward.12} parent=5 // pred_check
      %p148 = pneg %p147
    $region22: #{dec_forward.12} parent=5 // pred_check_branch
      %150 = sbr.rel (%p148) target = $region24
    $region23: #{dec_forward.12} parent=5 // pred_region
      // Predicated region
      $region25: #{dec_forward.12} parent=23 // pred_check
        %p151 = pneg %p41
      $region26: #{dec_forward.12} parent=23 // pred_check_branch
        %153 = sbr.rel (%p151) target = $region28
      $region27: #{dec_forward.12} parent=23 // pred_region
        %s154 = smul.u32 32, %s16
        %p155 = scmp.lt.s32.totalorder %s154, 255
        %s156 = scalar_select %p155, %s154, 255
        %s157 = smul.addr %s156, 8
        %s158 = scalar_lea.vmem %s0, %s157
        %s159 = smul.u32 32, %s16
      $region28: #{dec_forward.12} parent=23 // pred_fallthru
        _
    $region24: #{dec_forward.12} parent=5 // pred_fallthru
      _
    %p160 = scmp.le.s32.totalorder 1, %s9
    %p161 = scmp.lt.s32.totalorder %s9, 9
    %p162 = pnand %p160, %p161
    %p163 = pneg %p162
    // Predicated region
    $region29: #{dec_forward.12} parent=5 // pred_check
      _
    $region30: #{dec_forward.12} parent=5 // pred_check_branch
      %165 = sbr.rel (%p162) target = $region32
    $region31: #{dec_forward.12} parent=5 // pred_region
      %s166 = ssub.s32 %s9, 1
      %s167 = smul.u32 32, %s18
      %p168 = scmp.lt.s32.totalorder %s167, 255
      %s169 = scalar_select %p168, %s167, 255
      %s170 = smul.addr %s169, 8
      %s171 = scalar_lea.vmem %s0, %s170
      %p172 = pneg %p47
      %p173 = pneg %p44
      %p174 = pneg %p68
      %p175 = pneg %p65
      %p176 = scmp.lt.s32.totalorder %s19, 0
      %s177 = scalar_select %p176, %s19, 0
      %s178 = smul.addr %s177, 4
      %s179 = scalar_lea.vmem %s2, %s178
      %p180 = pneg %p94
      %p181 = pneg %p91
      %p182 = pneg %p122
      %p183 = pneg %p119
      %s184 = smul.u32 32, %s18
      %p185 = scmp.lt.s32.totalorder %s184, 255
      %s186 = scalar_select %p185, %s184, 255
      %p187 = scmp.lt.s32.totalorder %s19, 0
      %s188 = scalar_select %p187, %s19, 0
      %s189 = sadd.s32 %s188, %s186
      %s190 = smul.addr %s189, 8
      %s191 = scalar_lea.vmem %s3, %s190
      %s192 = smul.u32 32, %s18
      %p193 = scmp.lt.s32.totalorder %s192, 255
      %s194 = scalar_select %p193, %s192, 255
      %s195 = smul.addr %s194, 8
      %s196 = scalar_lea.vmem %s0, %s195
      %s197 = smul.u32 32, %s18
      %p198 = scmp.lt.s32.totalorder %s19, 0
      %s199 = scalar_select %p198, %s19, 0
      %s200 = smul.addr %s199, 4
      %s201 = scalar_lea.vmem %s2, %s200
      %s202 = smul.u32 32, %s18
      %p203 = scmp.lt.s32.totalorder %s202, 255
      %s204 = scalar_select %p203, %s202, 255
      %p205 = scmp.lt.s32.totalorder %s19, 0
      %s206 = scalar_select %p205, %s19, 0
      %s207 = sadd.s32 %s206, %s204
      %s208 = smul.addr %s207, 8
      %s209 = scalar_lea.vmem %s3, %s208
      %s210 = smul.u32 32, %s18
      %v212 = vld [vmem:[%s196] sm:$0xff]
      %v213 = vld [vmem:[%s196 + $0x8] sm:$0xff]
      %v214 = vld [vmem:[%s196 + $0x10] sm:$0xff]
      %v215 = vld [vmem:[%s196 + $0x18] sm:$0xff]
      %v216 = vld [vmem:[%s196 + $0x20] sm:$0xff]
      %v217 = vld [vmem:[%s196 + $0x28] sm:$0xff]
      %v218 = vld [vmem:[%s196 + $0x30] sm:$0xff]
      %v219 = vld [vmem:[%s196 + $0x38] sm:$0xff]
      %v220 = vld [vmem:[%s196 + $0x40] sm:$0xff]
      %v221 = vld [vmem:[%s196 + $0x48] sm:$0xff]
      %v222 = vld [vmem:[%s196 + $0x50] sm:$0xff]
      %v223 = vld [vmem:[%s196 + $0x58] sm:$0xff]
      %v224 = vld [vmem:[%s196 + $0x60] sm:$0xff]
      %v225 = vld [vmem:[%s196 + $0x68] sm:$0xff]
      %v226 = vld [vmem:[%s196 + $0x70] sm:$0xff]
      %v227 = vld [vmem:[%s196 + $0x78] sm:$0xff]
      %v228 = vld [vmem:[%s196 + $0x80] sm:$0xff]
      %v229 = vld [vmem:[%s196 + $0x88] sm:$0xff]
      %v230 = vld [vmem:[%s196 + $0x90] sm:$0xff]
      %v231 = vld [vmem:[%s196 + $0x98] sm:$0xff]
      %v232 = vld [vmem:[%s196 + $0xa0] sm:$0xff]
      %v233 = vld [vmem:[%s196 + $0xa8] sm:$0xff]
      %v234 = vld [vmem:[%s196 + $0xb0] sm:$0xff]
      %v235 = vld [vmem:[%s196 + $0xb8] sm:$0xff]
      %v236 = vld [vmem:[%s196 + $0xc0] sm:$0xff]
      %v237 = vld [vmem:[%s196 + $0xc8] sm:$0xff]
      %v238 = vld [vmem:[%s196 + $0xd0] sm:$0xff]
      %v239 = vld [vmem:[%s196 + $0xd8] sm:$0xff]
      %v240 = vld [vmem:[%s196 + $0xe0] sm:$0xff]
      %v241 = vld [vmem:[%s196 + $0xe8] sm:$0xff]
      %v242 = vld [vmem:[%s196 + $0xf0] sm:$0xff]
      %v243 = vld [vmem:[%s196 + $0xf8] sm:$0xff]
      %v244 = vld [vmem:[%s1] sm:$0x1]
      %v246 = vperm.slane %v244, 0
      %v248 = vadd.f32 %v212, %v246
      %v249 = vadd.f32 %v213, %v246
      %v250 = vadd.f32 %v214, %v246
      %v251 = vadd.f32 %v215, %v246
      %v252 = vadd.f32 %v216, %v246
      %v253 = vadd.f32 %v217, %v246
      %v254 = vadd.f32 %v218, %v246
      %v255 = vadd.f32 %v219, %v246
      %v256 = vadd.f32 %v220, %v246
      %v257 = vadd.f32 %v221, %v246
      %v258 = vadd.f32 %v222, %v246
      %v259 = vadd.f32 %v223, %v246
      %v260 = vadd.f32 %v224, %v246
      %v261 = vadd.f32 %v225, %v246
      %v262 = vadd.f32 %v226, %v246
      %v263 = vadd.f32 %v227, %v246
      %v264 = vadd.f32 %v228, %v246
      %v265 = vadd.f32 %v229, %v246
      %v266 = vadd.f32 %v230, %v246
      %v267 = vadd.f32 %v231, %v246
      %v268 = vadd.f32 %v232, %v246
      %v269 = vadd.f32 %v233, %v246
      %v270 = vadd.f32 %v234, %v246
      %v271 = vadd.f32 %v235, %v246
      %v272 = vadd.f32 %v236, %v246
      %v273 = vadd.f32 %v237, %v246
      %v274 = vadd.f32 %v238, %v246
      %v275 = vadd.f32 %v239, %v246
      %v276 = vadd.f32 %v240, %v246
      %v277 = vadd.f32 %v241, %v246
      %v278 = vadd.f32 %v242, %v246
      %v279 = vadd.f32 %v243, %v246
      %v280 = vmax.f32 %v248, 0.0
      %v281 = vmax.f32 %v249, 0.0
      %v282 = vmax.f32 %v250, 0.0
      %v283 = vmax.f32 %v251, 0.0
      %v284 = vmax.f32 %v252, 0.0
      %v285 = vmax.f32 %v253, 0.0
      %v286 = vmax.f32 %v254, 0.0
      %v287 = vmax.f32 %v255, 0.0
      %v288 = vmax.f32 %v256, 0.0
      %v289 = vmax.f32 %v257, 0.0
      %v290 = vmax.f32 %v258, 0.0
      %v291 = vmax.f32 %v259, 0.0
      %v292 = vmax.f32 %v260, 0.0
      %v293 = vmax.f32 %v261, 0.0
      %v294 = vmax.f32 %v262, 0.0
      %v295 = vmax.f32 %v263, 0.0
      %v296 = vmax.f32 %v264, 0.0
      %v297 = vmax.f32 %v265, 0.0
      %v298 = vmax.f32 %v266, 0.0
      %v299 = vmax.f32 %v267, 0.0
      %v300 = vmax.f32 %v268, 0.0
      %v301 = vmax.f32 %v269, 0.0
      %v302 = vmax.f32 %v270, 0.0
      %v303 = vmax.f32 %v271, 0.0
      %v304 = vmax.f32 %v272, 0.0
      %v305 = vmax.f32 %v273, 0.0
      %v306 = vmax.f32 %v274, 0.0
      %v307 = vmax.f32 %v275, 0.0
      %v308 = vmax.f32 %v276, 0.0
      %v309 = vmax.f32 %v277, 0.0
      %v310 = vmax.f32 %v278, 0.0
      %v311 = vmax.f32 %v279, 0.0
      %v312 = vpack.c.bf16 %v281, %v280
      %v313 = vpack.c.bf16 %v283, %v282
      %v314 = vpack.c.bf16 %v285, %v284
      %v315 = vpack.c.bf16 %v287, %v286
      %v316 = vpack.c.bf16 %v289, %v288
      %v317 = vpack.c.bf16 %v291, %v290
      %v318 = vpack.c.bf16 %v293, %v292
      %v319 = vpack.c.bf16 %v295, %v294
      %v320 = vpack.c.bf16 %v297, %v296
      %v321 = vpack.c.bf16 %v299, %v298
      %v322 = vpack.c.bf16 %v301, %v300
      %v323 = vpack.c.bf16 %v303, %v302
      %v324 = vpack.c.bf16 %v305, %v304
      %v325 = vpack.c.bf16 %v307, %v306
      %v326 = vpack.c.bf16 %v309, %v308
      %v327 = vpack.c.bf16 %v311, %v310
      %v328 = vld [vmem:[%s201] sm:$0xf]
      %v329 = vld [vmem:[%s201 + $0x4] sm:$0xf]
      %v330 = vld [vmem:[%s201 + $0x8] sm:$0xf]
      %v331 = vld [vmem:[%s201 + $0xc] sm:$0xf]
      %v336 = vunpack.c.l.b16 %v328
      %v337 = vunpack.c.l.b16 %v329
      %v338 = vunpack.c.l.b16 %v330
      %v339 = vunpack.c.l.b16 %v331
      %v340 = vpack.c.b16 %v337, %v336
      %v341 = vpack.c.b16 %v339, %v338
      %vm344 = vcmask 261120
      %v346 = vsel %vm344, %v312, 0
      %v349 = vsel %vm344, %v313, 0
      %v352 = vsel %vm344, %v314, 0
      %v355 = vsel %vm344, %v315, 0
      %v358 = vsel %vm344, %v316, 0
      %v361 = vsel %vm344, %v317, 0
      %v364 = vsel %vm344, %v318, 0
      %v367 = vsel %vm344, %v319, 0
      %v370 = vsel %vm344, %v320, 0
      %v373 = vsel %vm344, %v321, 0
      %v376 = vsel %vm344, %v322, 0
      %v379 = vsel %vm344, %v323, 0
      %v382 = vsel %vm344, %v324, 0
      %v385 = vsel %vm344, %v325, 0
      %v388 = vsel %vm344, %v326, 0
      %v391 = vsel %vm344, %v327, 0
      %393 = vmatpush.bf16.msra.mxu0 0
      %394 = vmatpush.bf16.msra.mxu0 0
      %395 = vmatpush.bf16.msra.mxu0 0
      %396 = vmatpush.bf16.msra.mxu0 0
      %397 = vmatpush.bf16.msra.mxu0 0
      %398 = vmatpush.bf16.msra.mxu0 0
      %399 = vmatpush.bf16.msra.mxu0 %v341
      %400 = vmatpush.bf16.msra.mxu0 %v340
      %401 = vmatmul.bf16.gmra.mxu0 %v346
      %v402 = vpop.f32.mrf.mxu0
      %v403 = vadd.f32 0.0, %v402
      %v404 = vpop.f32.mrf.mxu0
      %v405 = vadd.f32 0.0, %v404
      %406 = vmatmul.bf16.gmra.mxu0 %v349
      %v407 = vpop.f32.mrf.mxu0
      %v408 = vadd.f32 0.0, %v407
      %v409 = vpop.f32.mrf.mxu0
      %v410 = vadd.f32 0.0, %v409
      %411 = vmatmul.bf16.gmra.mxu0 %v352
      %v412 = vpop.f32.mrf.mxu0
      %v413 = vadd.f32 0.0, %v412
      %v414 = vpop.f32.mrf.mxu0
      %v415 = vadd.f32 0.0, %v414
      %416 = vmatmul.bf16.gmra.mxu0 %v355
      %v417 = vpop.f32.mrf.mxu0
      %v418 = vadd.f32 0.0, %v417
      %v419 = vpop.f32.mrf.mxu0
      %v420 = vadd.f32 0.0, %v419
      %421 = vmatmul.bf16.gmra.mxu0 %v358
      %v422 = vpop.f32.mrf.mxu0
      %v423 = vadd.f32 0.0, %v422
      %v424 = vpop.f32.mrf.mxu0
      %v425 = vadd.f32 0.0, %v424
      %426 = vmatmul.bf16.gmra.mxu0 %v361
      %v427 = vpop.f32.mrf.mxu0
      %v428 = vadd.f32 0.0, %v427
      %v429 = vpop.f32.mrf.mxu0
      %v430 = vadd.f32 0.0, %v429
      %431 = vmatmul.bf16.gmra.mxu0 %v364
      %v432 = vpop.f32.mrf.mxu0
      %v433 = vadd.f32 0.0, %v432
      %v434 = vpop.f32.mrf.mxu0
      %v435 = vadd.f32 0.0, %v434
      %436 = vmatmul.bf16.gmra.mxu0 %v367
      %v437 = vpop.f32.mrf.mxu0
      %v438 = vadd.f32 0.0, %v437
      %v439 = vpop.f32.mrf.mxu0
      %v440 = vadd.f32 0.0, %v439
      %441 = vmatmul.bf16.gmra.mxu0 %v370
      %v442 = vpop.f32.mrf.mxu0
      %v443 = vadd.f32 0.0, %v442
      %v444 = vpop.f32.mrf.mxu0
      %v445 = vadd.f32 0.0, %v444
      %446 = vmatmul.bf16.gmra.mxu0 %v373
      %v447 = vpop.f32.mrf.mxu0
      %v448 = vadd.f32 0.0, %v447
      %v449 = vpop.f32.mrf.mxu0
      %v450 = vadd.f32 0.0, %v449
      %451 = vmatmul.bf16.gmra.mxu0 %v376
      %v452 = vpop.f32.mrf.mxu0
      %v453 = vadd.f32 0.0, %v452
      %v454 = vpop.f32.mrf.mxu0
      %v455 = vadd.f32 0.0, %v454
      %456 = vmatmul.bf16.gmra.mxu0 %v379
      %v457 = vpop.f32.mrf.mxu0
      %v458 = vadd.f32 0.0, %v457
      %v459 = vpop.f32.mrf.mxu0
      %v460 = vadd.f32 0.0, %v459
      %461 = vmatmul.bf16.gmra.mxu0 %v382
      %v462 = vpop.f32.mrf.mxu0
      %v463 = vadd.f32 0.0, %v462
      %v464 = vpop.f32.mrf.mxu0
      %v465 = vadd.f32 0.0, %v464
      %466 = vmatmul.bf16.gmra.mxu0 %v385
      %v467 = vpop.f32.mrf.mxu0
      %v468 = vadd.f32 0.0, %v467
      %v469 = vpop.f32.mrf.mxu0
      %v470 = vadd.f32 0.0, %v469
      %471 = vmatmul.bf16.gmra.mxu0 %v388
      %v472 = vpop.f32.mrf.mxu0
      %v473 = vadd.f32 0.0, %v472
      %v474 = vpop.f32.mrf.mxu0
      %v475 = vadd.f32 0.0, %v474
      %476 = vmatmul.bf16.gmra.mxu0 %v391
      %v477 = vpop.f32.mrf.mxu0
      %v478 = vadd.f32 0.0, %v477
      %v479 = vpop.f32.mrf.mxu0
      %v480 = vadd.f32 0.0, %v479
      %481 = vdwg.mxu0
      %vm482 = vcmask 130048
      %483 = vst.msk [vmem:[%s209] sm:$0xff] %vm482, %v403
      %484 = vst.msk [vmem:[%s209 + $0x8] sm:$0xff] %vm482, %v405
      %485 = vst.msk [vmem:[%s209 + $0x10] sm:$0xff] %vm482, %v408
      %486 = vst.msk [vmem:[%s209 + $0x18] sm:$0xff] %vm482, %v410
      %487 = vst.msk [vmem:[%s209 + $0x20] sm:$0xff] %vm482, %v413
      %488 = vst.msk [vmem:[%s209 + $0x28] sm:$0xff] %vm482, %v415
      %489 = vst.msk [vmem:[%s209 + $0x30] sm:$0xff] %vm482, %v418
      %490 = vst.msk [vmem:[%s209 + $0x38] sm:$0xff] %vm482, %v420
      %491 = vst.msk [vmem:[%s209 + $0x40] sm:$0xff] %vm482, %v423
      %492 = vst.msk [vmem:[%s209 + $0x48] sm:$0xff] %vm482, %v425
      %493 = vst.msk [vmem:[%s209 + $0x50] sm:$0xff] %vm482, %v428
      %494 = vst.msk [vmem:[%s209 + $0x58] sm:$0xff] %vm482, %v430
      %495 = vst.msk [vmem:[%s209 + $0x60] sm:$0xff] %vm482, %v433
      %496 = vst.msk [vmem:[%s209 + $0x68] sm:$0xff] %vm482, %v435
      %497 = vst.msk [vmem:[%s209 + $0x70] sm:$0xff] %vm482, %v438
      %498 = vst.msk [vmem:[%s209 + $0x78] sm:$0xff] %vm482, %v440
      %499 = vst.msk [vmem:[%s209 + $0x80] sm:$0xff] %vm482, %v443
      %500 = vst.msk [vmem:[%s209 + $0x88] sm:$0xff] %vm482, %v445
      %501 = vst.msk [vmem:[%s209 + $0x90] sm:$0xff] %vm482, %v448
      %502 = vst.msk [vmem:[%s209 + $0x98] sm:$0xff] %vm482, %v450
      %503 = vst.msk [vmem:[%s209 + $0xa0] sm:$0xff] %vm482, %v453
      %504 = vst.msk [vmem:[%s209 + $0xa8] sm:$0xff] %vm482, %v455
      %505 = vst.msk [vmem:[%s209 + $0xb0] sm:$0xff] %vm482, %v458
      %506 = vst.msk [vmem:[%s209 + $0xb8] sm:$0xff] %vm482, %v460
      %507 = vst.msk [vmem:[%s209 + $0xc0] sm:$0xff] %vm482, %v463
      %508 = vst.msk [vmem:[%s209 + $0xc8] sm:$0xff] %vm482, %v465
      %509 = vst.msk [vmem:[%s209 + $0xd0] sm:$0xff] %vm482, %v468
      %510 = vst.msk [vmem:[%s209 + $0xd8] sm:$0xff] %vm482, %v470
      %511 = vst.msk [vmem:[%s209 + $0xe0] sm:$0xff] %vm482, %v473
      %512 = vst.msk [vmem:[%s209 + $0xe8] sm:$0xff] %vm482, %v475
      %513 = vst.msk [vmem:[%s209 + $0xf0] sm:$0xff] %vm482, %v478
      %514 = vst.msk [vmem:[%s209 + $0xf8] sm:$0xff] %vm482, %v480
      %s515 = smul.u32 32, %s18
      %p516 = scmp.lt.s32.totalorder %s515, 255
      %s517 = scalar_select %p516, %s515, 255
      %p518 = scmp.lt.s32.totalorder %s19, 0
      %s519 = scalar_select %p518, %s19, 0
      %s520 = sadd.s32 %s519, %s517
      %s521 = smul.addr %s520, 8
      %s522 = scalar_lea.vmem %s3, %s521
      // Predicated region
      $region33: #{dec_forward.12} parent=31 // pred_check
        %p523 = pneg %p119
      $region34: #{dec_forward.12} parent=31 // pred_check_branch
        %525 = sbr.rel (%p523) target = $region36
      $region35: #{dec_forward.12} parent=31 // pred_region
        %s526 = smul.u32 32, %s18
      $region36: #{dec_forward.12} parent=31 // pred_fallthru
        _
    $region32: #{dec_forward.12} parent=5 // pred_fallthru
      _
    %p527 = scmp.le.s32.totalorder 2, %s9
    // Predicated region
    $region37: #{dec_forward.12} parent=5 // pred_check
      %p528 = pneg %p527
    $region38: #{dec_forward.12} parent=5 // pred_check_branch
      %530 = sbr.rel (%p528) target = $region40
    $region39: #{dec_forward.12} parent=5 // pred_region
      %s531 = ssub.s32 %s9, 2
      // Predicated region
      $region41: #{dec_forward.12} parent=39 // pred_check
        %p532 = pneg %p125
      $region42: #{dec_forward.12} parent=39 // pred_check_branch
        %534 = sbr.rel (%p532) target = $region44
      $region43: #{dec_forward.12} parent=39 // pred_region
        %s535 = smul.u32 32, %s20
        %p536 = scmp.lt.s32.totalorder %s535, 255
        %s537 = scalar_select %p536, %s535, 255
        %p538 = scmp.lt.s32.totalorder %s21, 0
        %s539 = scalar_select %p538, %s21, 0
        %s540 = sadd.s32 %s539, %s537
        %s541 = smul.addr %s540, 8
        %s542 = scalar_lea.vmem %s3, %s541
      $region44: #{dec_forward.12} parent=39 // pred_fallthru
        _
    $region40: #{dec_forward.12} parent=5 // pred_fallthru
      _
  $region6: #{dec_forward.12} parent=0 // loop_footer
    %s13 = sadd.s32 1, %s9
  $region7: #{dec_forward.12} parent=0 // loop_footer_branch
    %8 = sbr.rel target = $region3
  $region8: #{dec_forward.12} parent=0 // loop_exit
    _

// kernel: dec_forward.13
$region0: #{dec_forward.13}
  #allocation0 [shape = 'u32[]', space=smem, size = 0x4, offset = 0x4, fixed_abs, tag = 'smem constant byte address 0x4 - core index']
  #allocation1 [shape = 'u32[72,128]{1,0:T(1,128)}', space=vmem, size = 0x9000, scoped, tag = 'internal scratch']
  %s0 = inlined_call_operand.vmem [shape: f32[64,128], index: 0, kind: input, shape index: {}]
  %s1 = inlined_call_operand.vmem [shape: f32[1,128], index: 1, kind: input, shape index: {}]
  %s2 = inlined_call_operand.vmem [shape: bf16[128,1664], index: 2, kind: input, shape index: {}]
  %s3 = inlined_call_operand.vmem [shape: f32[1,1664], index: 3, kind: input, shape index: {}]
  %s4 = inlined_call_operand.hbm [shape: f32[64,1664], index: 4, kind: output, shape index: {}]
  %s5 = sld [smem:[#allocation0]]
  $region90: #{dec_forward.13} parent=0
    _
  %s7 = ssub.s32 1, %s5
  %s8 = scalar_select 0, %s7, %s5
  $region1: #{dec_forward.13} parent=0
    #allocation2 [shape = 'u8[65536]{0}', space=vmem, size = 0x10000, scoped, tag = 'input window, operand 2']
    #allocation3 [shape = 'u8[65536]{0}', space=vmem, size = 0x10000, scoped, tag = 'output window, operand 0']
    #allocation4 [shape = 's32[2]{0}', space=sflag, size = 0x8, scoped, tag = 'scoped memory for dec_forward.13']
    %9 = vsyncpa [#allocation4], 0
    %s10 = scalar_lea.sflag [#allocation4], 1
    %11 = vsyncpa %s10, 0
    loop: start=0, step=1, limit=15
    $region2: #{dec_forward.13} parent=1 // loop_pre_header
      _
    $region3: #{dec_forward.13} parent=1 // loop_header
      %s13 = sphi 0, %s17
      %p14 = scmp.ge.s32.totalorder %s13, 15
      %s20 = sphi 0, %s32
      %s21 = sphi 0, %s28
      %s22 = sphi 0, %s20
      %s23 = sphi 0, %s21
      %s24 = sphi 0, %s22
      %s25 = sphi 0, %s23
      %s35 = sphi 0, %s37
      %s38 = sphi 0, %s35
      %s39 = sphi 0, %s38
      %s55 = sphi 0, %s39
      %s59 = sphi 0, %s59
      %s61 = sphi 0, %s59
      %s62 = sphi 0, %s61
      %s76 = sphi 0, %s62
      %s82 = sphi 0, %s84
      %s85 = sphi 0, %s82
      %s86 = sphi 0, %s85
      %s102 = sphi 0, %s86
      %s108 = sphi 0, %s110
      %s111 = sphi 0, %s108
      %s112 = sphi 0, %s111
      %s128 = sphi 0, %s112
      %s136 = sphi 0, %s138
      %s139 = sphi 0, %s136
      %s140 = sphi 0, %s139
      %s156 = sphi 0, %s140
    $region4: #{dec_forward.13} parent=1 // loop_header_branch
      %16 = sbr.rel (%p14) target = $region8
    $region5: #{dec_forward.13} parent=1 // loop_body
      %s18 = ssub.s32 %s13, 1
      %s19 = ssub.s32 %s13, 2
      %s26 = sadd.s32 1, %s21
      %p27 = scmp.ge.s32.totalorder %s26, 13
      %s28 = scalar_select %p27, 0, %s26
      %s29 = sadd.s32 1, %s20
      %s30 = scalar_select %p27, %s29, %s20
      %p31 = scmp.ge.s32.totalorder %s30, 1
      %s32 = scalar_select %p31, 0, %s30
      %s33 = ssub.s32 %s20, %s32
      %p34 = scmp.eq.s32.totalorder %s33, 0
      %s36 = sadd.s32 %s35, 1
      %s37 = scalar_select %p34, %s35, %s36
      %p40 = pneg %p34
      %p41 = scmp.eq.s32.totalorder %s13, 12
      %p42 = por %p40, %p41
      %p43 = scmp.ne.s32.totalorder %s35, %s38
      %p44 = scmp.eq.s32.totalorder %s13, 0
      %p45 = por %p43, %p44
      %p46 = scmp.ne.s32.totalorder %s35, %s38
      %p47 = scmp.eq.s32.totalorder %s18, 12
      %p48 = por %p46, %p47
      %p49 = scmp.ne.s32.totalorder %s38, %s39
      %p50 = scmp.eq.s32.totalorder %s18, 0
      %p51 = por %p49, %p50
      %p52 = scmp.ne.s32.totalorder %s38, %s39
      %p53 = scmp.eq.s32.totalorder %s19, 12
      %p54 = por %p52, %p53
      %p56 = scmp.ne.s32.totalorder %s39, %s55
      %p57 = scmp.eq.s32.totalorder %s19, 0
      %p58 = por %p56, %p57
      %s60 = sadd.s32 %s59, 1
      %p63 = scmp.eq.s32.totalorder %s13, 12
      %p64 = scmp.ne.s32.totalorder %s59, %s61
      %p65 = scmp.eq.s32.totalorder %s13, 0
      %p66 = por %p64, %p65
      %p67 = scmp.ne.s32.totalorder %s59, %s61
      %p68 = scmp.eq.s32.totalorder %s18, 12
      %p69 = por %p67, %p68
      %p70 = scmp.ne.s32.totalorder %s61, %s62
      %p71 = scmp.eq.s32.totalorder %s18, 0
      %p72 = por %p70, %p71
      %p73 = scmp.ne.s32.totalorder %s61, %s62
      %p74 = scmp.eq.s32.totalorder %s19, 12
      %p75 = por %p73, %p74
      %p77 = scmp.ne.s32.totalorder %s62, %s76
      %p78 = scmp.eq.s32.totalorder %s19, 0
      %p79 = por %p77, %p78
      %s80 = ssub.s32 %s21, %s28
      %p81 = scmp.eq.s32.totalorder %s80, 0
      %s83 = sadd.s32 %s82, 1
      %s84 = scalar_select %p81, %s82, %s83
      %p87 = pneg %p81
      %p88 = scmp.eq.s32.totalorder %s13, 12
      %p89 = por %p87, %p88
      %p90 = scmp.ne.s32.totalorder %s82, %s85
      %p91 = scmp.eq.s32.totalorder %s13, 0
      %p92 = por %p90, %p91
      %p93 = scmp.ne.s32.totalorder %s82, %s85
      %p94 = scmp.eq.s32.totalorder %s18, 12
      %p95 = por %p93, %p94
      %p96 = scmp.ne.s32.totalorder %s85, %s86
      %p97 = scmp.eq.s32.totalorder %s18, 0
      %p98 = por %p96, %p97
      %p99 = scmp.ne.s32.totalorder %s85, %s86
      %p100 = scmp.eq.s32.totalorder %s19, 12
      %p101 = por %p99, %p100
      %p103 = scmp.ne.s32.totalorder %s86, %s102
      %p104 = scmp.eq.s32.totalorder %s19, 0
      %p105 = por %p103, %p104
      %s106 = ssub.s32 %s21, %s28
      %p107 = scmp.eq.s32.totalorder %s106, 0
      %s109 = sadd.s32 %s108, 1
      %s110 = scalar_select %p107, %s108, %s109
      %p113 = pneg %p107
      %p114 = scmp.eq.s32.totalorder %s13, 12
      %p115 = por %p113, %p114
      %p116 = scmp.ne.s32.totalorder %s108, %s111
      %p117 = scmp.eq.s32.totalorder %s13, 0
      %p118 = por %p116, %p117
      %p119 = scmp.ne.s32.totalorder %s108, %s111
      %p120 = scmp.eq.s32.totalorder %s18, 12
      %p121 = por %p119, %p120
      %p122 = scmp.ne.s32.totalorder %s111, %s112
      %p123 = scmp.eq.s32.totalorder %s18, 0
      %p124 = por %p122, %p123
      %p125 = scmp.ne.s32.totalorder %s111, %s112
      %p126 = scmp.eq.s32.totalorder %s19, 12
      %p127 = por %p125, %p126
      %p129 = scmp.ne.s32.totalorder %s112, %s128
      %p130 = scmp.eq.s32.totalorder %s19, 0
      %p131 = por %p129, %p130
      %s132 = ssub.s32 %s20, %s32
      %s133 = ssub.s32 %s21, %s28
      %s134 = sor.u32 %s132, %s133
      %p135 = scmp.eq.s32.totalorder %s134, 0
      %s137 = sadd.s32 %s136, 1
      %s138 = scalar_select %p135, %s136, %s137
      %p141 = pneg %p135
      %p142 = scmp.eq.s32.totalorder %s13, 12
      %p143 = por %p141, %p142
      %p144 = scmp.ne.s32.totalorder %s136, %s139
      %p145 = scmp.eq.s32.totalorder %s13, 0
      %p146 = por %p144, %p145
      %p147 = scmp.ne.s32.totalorder %s136, %s139
      %p148 = scmp.eq.s32.totalorder %s18, 12
      %p149 = por %p147, %p148
      %p150 = scmp.ne.s32.totalorder %s139, %s140
      %p151 = scmp.eq.s32.totalorder %s18, 0
      %p152 = por %p150, %p151
      %p153 = scmp.ne.s32.totalorder %s139, %s140
      %p154 = scmp.eq.s32.totalorder %s19, 12
      %p155 = por %p153, %p154
      %p157 = scmp.ne.s32.totalorder %s140, %s156
      %p158 = scmp.eq.s32.totalorder %s19, 0
      %p159 = por %p157, %p158
      %p160 = scmp.le.s32.totalorder 1, %s13
      %p161 = scmp.lt.s32.totalorder %s13, 14
      %p162 = pnand %p160, %p161
      %p163 = pneg %p162
      // Predicated region
      $region9: #{dec_forward.13} parent=5 // pred_check
        _
      $region10: #{dec_forward.13} parent=5 // pred_check_branch
        %165 = sbr.rel (%p162) target = $region12
      $region11: #{dec_forward.13} parent=5 // pred_region
        %s166 = ssub.s32 %s13, 1
        // Predicated region
        $region13: #{dec_forward.13} parent=11 // pred_check
          %p167 = pneg %p51
        $region14: #{dec_forward.13} parent=11 // pred_check_branch
          %169 = sbr.rel (%p167) target = $region16
        $region15: #{dec_forward.13} parent=11 // pred_region
          %s170 = smul.u32 8, %s22
          %p171 = scmp.lt.s32.totalorder %s170, 7
          %s172 = scalar_select %p171, %s170, 7
          %s173 = smul.addr %s172, 8
          %s174 = scalar_lea.vmem %s0, %s173
          %s175 = smul.u32 8, %s22
        $region16: #{dec_forward.13} parent=11 // pred_fallthru
          _
        // Predicated region
        $region17: #{dec_forward.13} parent=11 // pred_check
          %p176 = pneg %p72
        $region18: #{dec_forward.13} parent=11 // pred_check_branch
          %178 = sbr.rel (%p176) target = $region20
        $region19: #{dec_forward.13} parent=11 // pred_region
          _
        $region20: #{dec_forward.13} parent=11 // pred_fallthru
          _
      $region12: #{dec_forward.13} parent=5 // pred_fallthru
        _
      %p179 = scmp.lt.s32.totalorder %s13, 13
      // Predicated region
      $region21: #{dec_forward.13} parent=5 // pred_check
        %p180 = pneg %p179
      $region22: #{dec_forward.13} parent=5 // pred_check_branch
        %182 = sbr.rel (%p180) target = $region24
      $region23: #{dec_forward.13} parent=5 // pred_region
        // Predicated region
        $region25: #{dec_forward.13} parent=23 // pred_check
          %p183 = pneg %p92
        $region26: #{dec_forward.13} parent=23 // pred_check_branch
          %185 = sbr.rel (%p183) target = $region28
        $region27: #{dec_forward.13} parent=23 // pred_region
          %s186 = sand.u32 %s82, 1
          %s187 = sand.u32 %s82, 1
          %s188 = smul.addr %s187, 64
          %s189 = scalar_lea.vmem [#allocation2], %s188
          %s190 = smul.addr %s21, 4
          %s191 = scalar_lea.vmem %s2, %s190
          // Predicated region
          $region29: #{dec_forward.13} parent=27 // pred_check
            _
          $region30: #{dec_forward.13} parent=27 // pred_check_branch
            %193 = sbr.rel (0) target = $region32
          $region31: #{dec_forward.13} parent=27 // pred_region
            // Predicated region
            $region33: #{dec_forward.13} parent=31 // pred_check
              _
            $region34: #{dec_forward.13} parent=31 // pred_check_branch
              %195 = sbr.rel target = $region36
            $region35: #{dec_forward.13} parent=31 // pred_region
              // Predicated region
              $region48: #{dec_forward.13} parent=35 // pred_check
                _
              $region49: #{dec_forward.13} parent=35 // pred_check_branch
                %241 = sbr.rel (0) target = $region51
              $region50: #{dec_forward.13} parent=35 // pred_region
                loop: start=0, step=1, limit=1
                $region52: #{dec_forward.13} parent=50 // loop_pre_header
                  _
                $region53: #{dec_forward.13} parent=50 // loop_header
                  %s243 = sphi 0, %s247
                  %p244 = scmp.ge.s32.totalorder %s243, 1
                  %s248 = sphi %s191, %s191
                  %s249 = sphi %s189, %s189
                $region54: #{dec_forward.13} parent=50 // loop_header_branch
                  %246 = sbr.rel (%p244) target = $region58
                $region55: #{dec_forward.13} parent=50 // loop_body
                  _
                $region56: #{dec_forward.13} parent=50 // loop_footer
                  %s247 = sadd.s32 1, %s243
                $region57: #{dec_forward.13} parent=50 // loop_footer_branch
                  %242 = sbr.rel target = $region53
                $region58: #{dec_forward.13} parent=50 // loop_exit
                  _
                %s251 = ssub.s32 16, 1
                loop: start=0, step=1, limit=1
                $region59: #{dec_forward.13} parent=50 // loop_pre_header
                  _
                $region60: #{dec_forward.13} parent=50 // loop_header
                  %s253 = sphi 0, %s257
                  %p254 = scmp.ge.s32.totalorder %s253, 1
                  %s258 = sphi %s191, %s191
                  %s259 = sphi %s189, %s189
                $region61: #{dec_forward.13} parent=50 // loop_header_branch
                  %256 = sbr.rel (%p254) target = $region65
                $region62: #{dec_forward.13} parent=50 // loop_body
                  %v260 = vld [vmem:[%s258] sm:%s251]
                  %261 = vst [vmem:[%s259] sm:%s251] %v260
                  %v262 = vld [vmem:[%s258 + $0x34] sm:%s251]
                  %263 = vst [vmem:[%s259 + $0x4] sm:%s251] %v262
                  %v264 = vld [vmem:[%s258 + $0x68] sm:%s251]
                  %265 = vst [vmem:[%s259 + $0x8] sm:%s251] %v264
                  %v266 = vld [vmem:[%s258 + $0x9c] sm:%s251]
                  %267 = vst [vmem:[%s259 + $0xc] sm:%s251] %v266
                  %v268 = vld [vmem:[%s258 + $0xd0] sm:%s251]
                  %269 = vst [vmem:[%s259 + $0x10] sm:%s251] %v268
                  %v270 = vld [vmem:[%s258 + $0x104] sm:%s251]
                  %271 = vst [vmem:[%s259 + $0x14] sm:%s251] %v270
                  %v272 = vld [vmem:[%s258 + $0x138] sm:%s251]
                  %273 = vst [vmem:[%s259 + $0x18] sm:%s251] %v272
                  %v274 = vld [vmem:[%s258 + $0x16c] sm:%s251]
                  %275 = vst [vmem:[%s259 + $0x1c] sm:%s251] %v274
                  %v276 = vld [vmem:[%s258 + $0x1a0] sm:%s251]
                  %277 = vst [vmem:[%s259 + $0x20] sm:%s251] %v276
                  %v278 = vld [vmem:[%s258 + $0x1d4] sm:%s251]
                  %279 = vst [vmem:[%s259 + $0x24] sm:%s251] %v278
                  %v280 = vld [vmem:[%s258 + $0x208] sm:%s251]
                  %281 = vst [vmem:[%s259 + $0x28] sm:%s251] %v280
                  %v282 = vld [vmem:[%s258 + $0x23c] sm:%s251]
                  %283 = vst [vmem:[%s259 + $0x2c] sm:%s251] %v282
                  %v284 = vld [vmem:[%s258 + $0x270] sm:%s251]
                  %285 = vst [vmem:[%s259 + $0x30] sm:%s251] %v284
                  %v286 = vld [vmem:[%s258 + $0x2a4] sm:%s251]
                  %287 = vst [vmem:[%s259 + $0x34] sm:%s251] %v286
                  %v288 = vld [vmem:[%s258 + $0x2d8] sm:%s251]
                  %289 = vst [vmem:[%s259 + $0x38] sm:%s251] %v288
                  %v290 = vld [vmem:[%s258 + $0x30c] sm:%s251]
                  %291 = vst [vmem:[%s259 + $0x3c] sm:%s251] %v290
                $region63: #{dec_forward.13} parent=50 // loop_footer
                  %s257 = sadd.s32 1, %s253
                $region64: #{dec_forward.13} parent=50 // loop_footer_branch
                  %252 = sbr.rel target = $region60
                $region65: #{dec_forward.13} parent=50 // loop_exit
                  _
              $region51: #{dec_forward.13} parent=35 // pred_fallthru
                _
            $region36: #{dec_forward.13} parent=31 // pred_fallthru
              _
            // Predicated region
            $region37: #{dec_forward.13} parent=31 // pred_check
              _
            $region38: #{dec_forward.13} parent=31 // pred_check_branch
              %197 = sbr.rel (0) target = $region40
            $region39: #{dec_forward.13} parent=31 // pred_region
              %s199 = ssub.s32 16, 1
              loop: start=0, step=1, limit=1
              $region41: #{dec_forward.13} parent=39 // loop_pre_header
                _
              $region42: #{dec_forward.13} parent=39 // loop_header
                %s201 = sphi 0, %s205
                %p202 = scmp.ge.s32.totalorder %s201, 1
                %s206 = sphi %s191, %s191
                %s207 = sphi %s189, %s189
              $region43: #{dec_forward.13} parent=39 // loop_header_branch
                %204 = sbr.rel (%p202) target = $region47
              $region44: #{dec_forward.13} parent=39 // loop_body
                %v208 = vld [vmem:[%s206] sm:%s199]
                %209 = vst [vmem:[%s207] sm:%s199] %v208
                %v210 = vld [vmem:[%s206 + $0x34] sm:%s199]
                %211 = vst [vmem:[%s207 + $0x4] sm:%s199] %v210
                %v212 = vld [vmem:[%s206 + $0x68] sm:%s199]
                %213 = vst [vmem:[%s207 + $0x8] sm:%s199] %v212
                %v214 = vld [vmem:[%s206 + $0x9c] sm:%s199]
                %215 = vst [vmem:[%s207 + $0xc] sm:%s199] %v214
                %v216 = vld [vmem:[%s206 + $0xd0] sm:%s199]
                %217 = vst [vmem:[%s207 + $0x10] sm:%s199] %v216
                %v218 = vld [vmem:[%s206 + $0x104] sm:%s199]
                %219 = vst [vmem:[%s207 + $0x14] sm:%s199] %v218
                %v220 = vld [vmem:[%s206 + $0x138] sm:%s199]
                %221 = vst [vmem:[%s207 + $0x18] sm:%s199] %v220
                %v222 = vld [vmem:[%s206 + $0x16c] sm:%s199]
                %223 = vst [vmem:[%s207 + $0x1c] sm:%s199] %v222
                %v224 = vld [vmem:[%s206 + $0x1a0] sm:%s199]
                %225 = vst [vmem:[%s207 + $0x20] sm:%s199] %v224
                %v226 = vld [vmem:[%s206 + $0x1d4] sm:%s199]
                %227 = vst [vmem:[%s207 + $0x24] sm:%s199] %v226
                %v228 = vld [vmem:[%s206 + $0x208] sm:%s199]
                %229 = vst [vmem:[%s207 + $0x28] sm:%s199] %v228
                %v230 = vld [vmem:[%s206 + $0x23c] sm:%s199]
                %231 = vst [vmem:[%s207 + $0x2c] sm:%s199] %v230
                %v232 = vld [vmem:[%s206 + $0x270] sm:%s199]
                %233 = vst [vmem:[%s207 + $0x30] sm:%s199] %v232
                %v234 = vld [vmem:[%s206 + $0x2a4] sm:%s199]
                %235 = vst [vmem:[%s207 + $0x34] sm:%s199] %v234
                %v236 = vld [vmem:[%s206 + $0x2d8] sm:%s199]
                %237 = vst [vmem:[%s207 + $0x38] sm:%s199] %v236
                %v238 = vld [vmem:[%s206 + $0x30c] sm:%s199]
                %239 = vst [vmem:[%s207 + $0x3c] sm:%s199] %v238
              $region45: #{dec_forward.13} parent=39 // loop_footer
                %s205 = sadd.s32 1, %s201
              $region46: #{dec_forward.13} parent=39 // loop_footer_branch
                %200 = sbr.rel target = $region42
              $region47: #{dec_forward.13} parent=39 // loop_exit
                _
            $region40: #{dec_forward.13} parent=31 // pred_fallthru
              _
          $region32: #{dec_forward.13} parent=27 // pred_fallthru
            _
          %292 = vnop
        $region28: #{dec_forward.13} parent=23 // pred_fallthru
          _
        // Predicated region
        $region66: #{dec_forward.13} parent=23 // pred_check
          %p293 = pneg %p118
        $region67: #{dec_forward.13} parent=23 // pred_check_branch
          %295 = sbr.rel (%p293) target = $region69
        $region68: #{dec_forward.13} parent=23 // pred_region
          %p296 = scmp.lt.s32.totalorder %s21, 12
          %s297 = scalar_select %p296, %s21, 12
          %s298 = scalar_lea.vmem %s3, %s297
        $region69: #{dec_forward.13} parent=23 // pred_fallthru
          _
      $region24: #{dec_forward.13} parent=5 // pred_fallthru
        _
      %p299 = scmp.le.s32.totalorder 1, %s13
      %p300 = scmp.lt.s32.totalorder %s13, 14
      %p301 = pnand %p299, %p300
      %p302 = pneg %p301
      // Predicated region
      $region70: #{dec_forward.13} parent=5 // pred_check
        _
      $region71: #{dec_forward.13} parent=5 // pred_check_branch
        %304 = sbr.rel (%p301) target = $region73
      $region72: #{dec_forward.13} parent=5 // pred_region
        %s305 = ssub.s32 %s13, 1
        %s306 = sand.u32 %s85, 1
        %s307 = sand.u32 %s85, 1
        %s308 = smul.addr %s307, 64
        %s309 = scalar_lea.vmem [#allocation2], %s308
        // Predicated region
        $region74: #{dec_forward.13} parent=72 // pred_check
          %p310 = pneg %p98
        $region75: #{dec_forward.13} parent=72 // pred_check_branch
          %312 = sbr.rel (%p310) target = $region77
        $region76: #{dec_forward.13} parent=72 // pred_region
          _
        $region77: #{dec_forward.13} parent=72 // pred_fallthru
          _
        %s313 = smul.u32 8, %s22
        %p314 = scmp.lt.s32.totalorder %s313, 7
        %s315 = scalar_select %p314, %s313, 7
        %s316 = smul.addr %s315, 8
        %s317 = scalar_lea.vmem %s0, %s316
        %p318 = pneg %p51
        %p319 = pneg %p48
        %p320 = pneg %p72
        %p321 = pneg %p69
        %s322 = sand.u32 %s85, 1
        %s323 = sand.u32 %s85, 1
        %s324 = smul.addr %s323, 64
        %s325 = scalar_lea.vmem [#allocation2], %s324
        %p326 = pneg %p98
        %p327 = pneg %p95
        %p328 = scmp.lt.s32.totalorder %s23, 12
        %s329 = scalar_select %p328, %s23, 12
        %s330 = scalar_lea.vmem %s3, %s329
        %p331 = pneg %p124
        %p332 = pneg %p121
        %p333 = pneg %p152
        %p334 = pneg %p149
        %s335 = sand.u32 %s139, 1
        %s336 = scalar_lea.sflag [#allocation4], %s335
        %s337 = sand.u32 %s139, 1
        %s338 = smul.addr %s337, 64
        %s339 = scalar_lea.vmem [#allocation3], %s338
        %s340 = smul.u32 8, %s22
        %p341 = scmp.lt.s32.totalorder %s340, 7
        %s342 = scalar_select %p341, %s340, 7
        %s343 = smul.addr %s342, 8
        %s344 = scalar_lea.vmem %s0, %s343
        %s345 = smul.u32 8, %s22
        %p346 = scmp.lt.s32.totalorder %s23, 12
        %s347 = scalar_select %p346, %s23, 12
        %s348 = scalar_lea.vmem %s3, %s347
        %s349 = smul.u32 8, %s22
        %v350 = vld [vmem:[%s344] sm:$0xff]
        %v351 = vld [vmem:[%s344 + $0x8] sm:$0xff]
        %v352 = vld [vmem:[%s344 + $0x10] sm:$0xff]
        %v353 = vld [vmem:[%s344 + $0x18] sm:$0xff]
        %v354 = vld [vmem:[%s344 + $0x20] sm:$0xff]
        %v355 = vld [vmem:[%s344 + $0x28] sm:$0xff]
        %v356 = vld [vmem:[%s344 + $0x30] sm:$0xff]
        %v357 = vld [vmem:[%s344 + $0x38] sm:$0xff]
        %v358 = vld [vmem:[%s1] sm:$0x1]
        %v360 = vperm.slane %v358, 0
        %v362 = vadd.f32 %v350, %v360
        %v363 = vadd.f32 %v351, %v360
        %v364 = vadd.f32 %v352, %v360
        %v365 = vadd.f32 %v353, %v360
        %v366 = vadd.f32 %v354, %v360
        %v367 = vadd.f32 %v355, %v360
        %v368 = vadd.f32 %v356, %v360
        %v369 = vadd.f32 %v357, %v360
        %v370 = vmax.f32 %v362, 0.0
        %v371 = vmax.f32 %v363, 0.0
        %v372 = vmax.f32 %v364, 0.0
        %v373 = vmax.f32 %v365, 0.0
        %v374 = vmax.f32 %v366, 0.0
        %v375 = vmax.f32 %v367, 0.0
        %v376 = vmax.f32 %v368, 0.0
        %v377 = vmax.f32 %v369, 0.0
        %v378 = vpack.c.bf16 %v371, %v370
        %v379 = vpack.c.bf16 %v373, %v372
        %v380 = vpack.c.bf16 %v375, %v374
        %v381 = vpack.c.bf16 %v377, %v376
        %v382 = vld [vmem:[%s309] sm:$0xf]
        %v383 = vld [vmem:[%s309 + $0x4] sm:$0xf]
        %v384 = vld [vmem:[%s309 + $0x8] sm:$0xf]
        %v385 = vld [vmem:[%s309 + $0xc] sm:$0xf]
        %v386 = vld [vmem:[%s309 + $0x10] sm:$0xf]
        %v387 = vld [vmem:[%s309 + $0x14] sm:$0xf]
        %v388 = vld [vmem:[%s309 + $0x18] sm:$0xf]
        %v389 = vld [vmem:[%s309 + $0x1c] sm:$0xf]
        %v390 = vld [vmem:[%s309 + $0x20] sm:$0xf]
        %v391 = vld [vmem:[%s309 + $0x24] sm:$0xf]
        %v392 = vld [vmem:[%s309 + $0x28] sm:$0xf]
        %v393 = vld [vmem:[%s309 + $0x2c] sm:$0xf]
        %v394 = vld [vmem:[%s309 + $0x30] sm:$0xf]
        %v395 = vld [vmem:[%s309 + $0x34] sm:$0xf]
        %v396 = vld [vmem:[%s309 + $0x38] sm:$0xf]
        %v397 = vld [vmem:[%s309 + $0x3c] sm:$0xf]
        %v398 = vld [vmem:[%s348] sm:$0x1]
        %v400 = vperm.slane %v398, 0
        %v418 = vunpack.c.l.b16 %v382
        %v419 = vunpack.c.l.b16 %v383
        %v420 = vunpack.c.l.b16 %v384
        %v421 = vunpack.c.l.b16 %v385
        %v422 = vunpack.c.l.b16 %v386
        %v423 = vunpack.c.l.b16 %v387
        %v424 = vunpack.c.l.b16 %v388
        %v425 = vunpack.c.l.b16 %v389
        %v426 = vunpack.c.l.b16 %v390
        %v427 = vunpack.c.l.b16 %v391
        %v428 = vunpack.c.l.b16 %v392
        %v429 = vunpack.c.l.b16 %v393
        %v430 = vunpack.c.l.b16 %v394
        %v431 = vunpack.c.l.b16 %v395
        %v432 = vunpack.c.l.b16 %v396
        %v433 = vunpack.c.l.b16 %v397
        %v434 = vpack.c.b16 %v419, %v418
        %v435 = vpack.c.b16 %v421, %v420
        %v436 = vpack.c.b16 %v423, %v422
        %v437 = vpack.c.b16 %v425, %v424
        %v438 = vpack.c.b16 %v427, %v426
        %v439 = vpack.c.b16 %v429, %v428
        %v440 = vpack.c.b16 %v431, %v430
        %v441 = vpack.c.b16 %v433, %v432
        %450 = vmatpush.bf16.msra.mxu0 %v441
        %451 = vmatpush.bf16.msra.mxu0 %v440
        %452 = vmatpush.bf16.msra.mxu0 %v439
        %453 = vmatpush.bf16.msra.mxu0 %v438
        %454 = vmatpush.bf16.msra.mxu0 %v437
        %455 = vmatpush.bf16.msra.mxu0 %v436
        %456 = vmatpush.bf16.msra.mxu0 %v435
        %457 = vmatpush.bf16.msra.mxu0 %v434
        %458 = vmatmul.bf16.gmra.mxu0 %v378
        %v459 = vpop.f32.mrf.mxu0
        %v460 = vadd.f32 %v400, %v459
        %v461 = vpop.f32.mrf.mxu0
        %v462 = vadd.f32 %v400, %v461
        %463 = vmatmul.bf16.gmra.mxu0 %v379
        %v464 = vpop.f32.mrf.mxu0
        %v465 = vadd.f32 %v400, %v464
        %v466 = vpop.f32.mrf.mxu0
        %v467 = vadd.f32 %v400, %v466
        %468 = vmatmul.bf16.gmra.mxu0 %v380
        %v469 = vpop.f32.mrf.mxu0
        %v470 = vadd.f32 %v400, %v469
        %v471 = vpop.f32.mrf.mxu0
        %v472 = vadd.f32 %v400, %v471
        %473 = vmatmul.bf16.gmra.mxu0 %v381
        %v474 = vpop.f32.mrf.mxu0
        %v475 = vadd.f32 %v400, %v474
        %v476 = vpop.f32.mrf.mxu0
        %v477 = vadd.f32 %v400, %v476
        %478 = vdwg.mxu0
        %479 = vst [vmem:[%s339] sm:$0xff] %v460
        %480 = vst [vmem:[%s339 + $0x8] sm:$0xff] %v462
        %481 = vst [vmem:[%s339 + $0x10] sm:$0xff] %v465
        %482 = vst [vmem:[%s339 + $0x18] sm:$0xff] %v467
        %483 = vst [vmem:[%s339 + $0x20] sm:$0xff] %v470
        %484 = vst [vmem:[%s339 + $0x28] sm:$0xff] %v472
        %485 = vst [vmem:[%s339 + $0x30] sm:$0xff] %v475
        %486 = vst [vmem:[%s339 + $0x38] sm:$0xff] %v477
        %s487 = sand.u32 %s139, 1
        %s488 = scalar_lea.sflag [#allocation4], %s487
        %s489 = sand.u32 %s139, 1
        %s490 = smul.addr %s489, 64
        %s491 = scalar_lea.vmem [#allocation3], %s490
        // Predicated region
        $region78: #{dec_forward.13} parent=72 // pred_check
          %p492 = pneg %p149
        $region79: #{dec_forward.13} parent=72 // pred_check_branch
          %494 = sbr.rel (%p492) target = $region81
        $region80: #{dec_forward.13} parent=72 // pred_region
          %s495 = smul.u32 8, %s22
          %497 = vsyncadd %s488, 0
          %s498 = smul.addr %s495, 13
          %s499 = sadd.s32 %s23, %s498
          %s500 = smul.addr %s499, 8
          %s501 = scalar_lea.hbm %s4, %s500
          %s502 = sshll.u32 %s491, 4
          %s503 = int_to_ptr.vmem [resolvable:$true] %s502
          %s504 = sshll.u32 %s501, 4
          %s505 = int_to_ptr.hbm [resolvable:$true] %s504
          %510 = dma.vmem_to_hbm [thread:$0]  %s503, 1024, %s505, %s488, 128, 1664, 8
        $region81: #{dec_forward.13} parent=72 // pred_fallthru
          _
      $region73: #{dec_forward.13} parent=5 // pred_fallthru
        _
      %p511 = scmp.le.s32.totalorder 2, %s13
      // Predicated region
      $region82: #{dec_forward.13} parent=5 // pred_check
        %p512 = pneg %p511
      $region83: #{dec_forward.13} parent=5 // pred_check_branch
        %514 = sbr.rel (%p512) target = $region85
      $region84: #{dec_forward.13} parent=5 // pred_region
        %s515 = ssub.s32 %s13, 2
        // Predicated region
        $region86: #{dec_forward.13} parent=84 // pred_check
          %p516 = pneg %p155
        $region87: #{dec_forward.13} parent=84 // pred_check_branch
          %518 = sbr.rel (%p516) target = $region89
        $region88: #{dec_forward.13} parent=84 // pred_region
          %s519 = sand.u32 %s140, 1
          %s520 = scalar_lea.sflag [#allocation4], %s519
          %s521 = sand.u32 %s140, 1
          %s522 = smul.addr %s521, 64
          %s523 = scalar_lea.vmem [#allocation3], %s522
          %525 = dma.done %s520, 1024
        $region89: #{dec_forward.13} parent=84 // pred_fallthru
          _
      $region85: #{dec_forward.13} parent=5 // pred_fallthru
        _
    $region6: #{dec_forward.13} parent=1 // loop_footer
      %s17 = sadd.s32 1, %s13
    $region7: #{dec_forward.13} parent=1 // loop_footer_branch
      %12 = sbr.rel target = $region3
    $region8: #{dec_forward.13} parent=1 // loop_exit
      _
    %526 = vsyncpa [#allocation4], 1
    %s527 = scalar_lea.sflag [#allocation4], 1
    %528 = vsyncpa %s527, 1

</llo_original>
